<compile_context>
chip_gen: v5e
topology: v5e:2x2
jax: 0.10.0
libtpu: 0.0.40
codegen_flags: <defaults>
</compile_context>

<pallas_src>
import functools

import jax
import jax.numpy as jnp
from jax.experimental import pallas as pl
from jax.experimental.pallas import tpu as pltpu

T_TOKENS = 5          # z has exactly 5 tokens (x, y, r, g, b)
D_MODEL = 128         # d_model of the transformer layer
D_FF = 2048           # nn.TransformerEncoderLayer default dim_feedforward
LN_EPS = 1e-5         # nn.LayerNorm default eps
NEG_INF = -1e30       # additive mask value for cross-batch attention entries


def _round_up(x, m):
    return ((x + m - 1) // m) * m


def _layernorm(x, w, b):
    mu = jnp.mean(x, axis=-1, keepdims=True)
    xc = x - mu
    var = jnp.mean(xc * xc, axis=-1, keepdims=True)
    return xc * jax.lax.rsqrt(var + LN_EPS) * w + b


def decoder_kernel(num_head,
                   z_ref,
                   Wemb_ref, bemb_ref,
                   Wqkv_ref, bqkv_ref,
                   Wo_ref, bo_ref,
                   ln1w_ref, ln1b_ref,
                   W1_ref, b1_ref,
                   W2_ref, b2_ref,
                   ln2w_ref, ln2b_ref,
                   Whead_ref, bhead_ref,
                   Wfc_ref, bfc_ref,
                   out_ref):
    BT = z_ref.shape[1]                  # batch elements in this tile
    N = T_TOKENS * BT                    # flattened token-major rows
    head_dim = D_MODEL // num_head
    scale = 1.0 / (head_dim ** 0.5)

    # ---- per-token embedders + ReLU (token-major rows: row = t*BT + b) -----
    rows = []
    for t in range(T_TOKENS):
        r = jnp.dot(z_ref[t], Wemb_ref[t],
                    preferred_element_type=jnp.float32) + bemb_ref[t:t + 1, :]
        rows.append(jnp.maximum(r, 0.0))
    h = jnp.concatenate(rows, axis=0)                      # (N, 128)

    # ---- fused QKV projection ----------------------------------------------
    qkv = jnp.dot(h, Wqkv_ref[...],
                  preferred_element_type=jnp.float32) + bqkv_ref[...]  # (N, 384)
    q = qkv[:, 0:D_MODEL]
    k = qkv[:, D_MODEL:2 * D_MODEL]
    v = qkv[:, 2 * D_MODEL:3 * D_MODEL]

    # ---- additive attention mask generated in-kernel (no HBM traffic) ------
    # row = t*BT + b  =>  row % BT == batch element id.
    row_b = jax.lax.broadcasted_iota(jnp.int32, (N, N), 0)
    col_b = jax.lax.broadcasted_iota(jnp.int32, (N, N), 1)
    mask_bias = jnp.where((row_b % BT) == (col_b % BT),
                          jnp.float32(0.0), jnp.float32(NEG_INF))     # (N, N)

    # ---- multi-head attention as masked dense attention over the N rows ----
    head_outs = []
    for hh in range(num_head):
        sl = slice(hh * head_dim, (hh + 1) * head_dim)
        qh, kh, vh = q[:, sl], k[:, sl], v[:, sl]          # (N, hd) each
        s = jax.lax.dot_general(qh, kh, (((1,), (1,)), ((), ())),
                                preferred_element_type=jnp.float32)    # (N, N)
        s = s * scale + mask_bias
        s = s - jnp.max(s, axis=-1, keepdims=True)
        e = jnp.exp(s)
        p = e * pl.reciprocal(jnp.sum(e, axis=-1, keepdims=True), approx=True)
        head_outs.append(jnp.dot(p, vh, preferred_element_type=jnp.float32))
    attn = jnp.concatenate(head_outs, axis=-1)             # (N, 128)
    attn = jnp.dot(attn, Wo_ref[...],
                   preferred_element_type=jnp.float32) + bo_ref[...]

    # ---- residual + LayerNorm (post-norm), eval mode: dropout = identity ---
    x1 = _layernorm(h + attn, ln1w_ref[...], ln1b_ref[...])

    # ---- feed-forward (bf16 weights, f32 accumulation) ----------------------
    f = jnp.dot(x1.astype(jnp.bfloat16), W1_ref[...],
                preferred_element_type=jnp.float32) + b1_ref[...]
    f = jnp.maximum(f, 0.0)
    f = jnp.dot(f.astype(jnp.bfloat16), W2_ref[...],
                preferred_element_type=jnp.float32) + b2_ref[...]
    x2 = _layernorm(x1 + f, ln2w_ref[...], ln2b_ref[...])

    # ---- per-token output heads + ReLU --------------------------------------
    rows = []
    for t in range(T_TOKENS):
        r = jnp.dot(x2[t * BT:(t + 1) * BT, :], Whead_ref[t],
                    preferred_element_type=jnp.float32) + bhead_ref[t:t + 1, :]
        rows.append(jnp.maximum(r, 0.0))
    y = jnp.concatenate(rows, axis=0)                      # (N, 128)

    # ---- final Linear (lane-padded to 128) + sigmoid ------------------------
    logits = jnp.dot(y, Wfc_ref[...],
                     preferred_element_type=jnp.float32) + bfc_ref[...]
    sig = jax.nn.sigmoid(logits).astype(out_ref.dtype)     # (N, out_pad)
    out_ref[...] = sig.reshape(T_TOKENS, BT, out_ref.shape[-1])


def init_params(key, latent_dim, output_dim):
    ks = jax.random.split(key, 20)
    n = lambda k, shape, s=0.05: (s * jax.random.normal(k, shape)).astype(jnp.float32)
    params = dict(
        Wemb=n(ks[0], (T_TOKENS, latent_dim, D_MODEL)),
        bemb=n(ks[1], (T_TOKENS, D_MODEL)),
        Wqkv=n(ks[2], (D_MODEL, 3 * D_MODEL)),
        bqkv=n(ks[3], (1, 3 * D_MODEL)),
        Wo=n(ks[4], (D_MODEL, D_MODEL)),
        bo=n(ks[5], (1, D_MODEL)),
        ln1w=jnp.ones((1, D_MODEL), jnp.float32),
        ln1b=jnp.zeros((1, D_MODEL), jnp.float32),
        W1=n(ks[6], (D_MODEL, D_FF)),
        b1=n(ks[7], (1, D_FF)),
        W2=n(ks[8], (D_FF, D_MODEL)),
        b2=n(ks[9], (1, D_MODEL)),
        ln2w=jnp.ones((1, D_MODEL), jnp.float32),
        ln2b=jnp.zeros((1, D_MODEL), jnp.float32),
        Whead=n(ks[10], (T_TOKENS, D_MODEL, D_MODEL)),
        bhead=n(ks[11], (T_TOKENS, D_MODEL)),
        Wfc=n(ks[12], (D_MODEL, output_dim)),
        bfc=n(ks[13], (1, output_dim)),
    )
    return params


PARAM_ORDER = ["Wemb", "bemb", "Wqkv", "bqkv", "Wo", "bo", "ln1w", "ln1b",
               "W1", "b1", "W2", "b2", "ln2w", "ln2b",
               "Whead", "bhead", "Wfc", "bfc"]


def decoder_forward(z, params, num_head, block_b=64):
    B, T, L = z.shape
    assert T == T_TOKENS
    out_dim = params["Wfc"].shape[1]
    out_pad = _round_up(out_dim, 128)

    # ---- batch tiling / padding --------------------------------------------
    if B >= block_b:
        BT = block_b
        B_pad = _round_up(B, BT)
    else:
        B_pad = _round_up(B, 8)
        BT = B_pad
    if B_pad != B:
        z = jnp.concatenate(
            [z, jnp.zeros((B_pad - B, T, L), z.dtype)], axis=0)

    # token-major layout for the kernel: (T, B_pad, L)
    z_t = jnp.transpose(z, (1, 0, 2))

    # weights: bf16 FFN weights, zero-pad the final projection to 128 lanes.
    w = dict(params)
    w["W1"] = params["W1"].astype(jnp.bfloat16)
    w["W2"] = params["W2"].astype(jnp.bfloat16)
    w["Wfc"] = jnp.pad(params["Wfc"], ((0, 0), (0, out_pad - out_dim)))
    w["bfc"] = jnp.pad(params["bfc"], ((0, 0), (0, out_pad - out_dim)))
    weights = [w[k] for k in PARAM_ORDER]

    in_specs = [pl.BlockSpec((T_TOKENS, BT, L), lambda i: (0, i, 0))] + [
        pl.BlockSpec(x.shape, lambda i, nd=x.ndim: (0,) * nd) for x in weights
    ]
    out_spec = pl.BlockSpec((T_TOKENS, BT, out_pad), lambda i: (0, i, 0))

    kernel = functools.partial(decoder_kernel, num_head)
    out_t = pl.pallas_call(
        kernel,
        out_shape=jax.ShapeDtypeStruct((T_TOKENS, B_pad, out_pad), jnp.float32),
        grid_spec=pltpu.PrefetchScalarGridSpec(
            num_scalar_prefetch=0,
            grid=(B_pad // BT,),
            in_specs=in_specs,
            out_specs=out_spec,
        ),
        compiler_params=pltpu.CompilerParams(
            dimension_semantics=("parallel",),
            vmem_limit_bytes=32 << 20,
        ),
    )(z_t, *weights)

    # back to batch-first (B, T, out_dim)
    return jnp.transpose(out_t, (1, 0, 2))[:B, :, :out_dim]


if __name__ == "__main__":
    latent_dim = 32
    output_dim = 16
    num_head = 4
    batch = 2

    key = jax.random.PRNGKey(0)
    kz, kp = jax.random.split(key)
    z = jax.random.normal(kz, (batch, T_TOKENS, latent_dim), dtype=jnp.float32)
    params = init_params(kp, latent_dim, output_dim)

    # TODO(synk): dropout inside TransformerEncoderLayer is implemented as
    # identity (eval-mode semantics).
    out = decoder_forward(z, params, num_head)
    out = jax.block_until_ready(out)
    assert out.shape == (batch, T_TOKENS, output_dim)
    assert bool(jnp.all(jnp.isfinite(out)))
    print("KERNEL_OK")
</pallas_src>

<mosaic_0001>
module attributes {stable_mosaic.version = 11 : i64} {
  func.func @decoder_kernel(%arg0: i32, %arg1: memref<5x8x32xf32, #tpu.memory_space<vmem>>, %arg2: memref<5x32x128xf32, #tpu.memory_space<vmem>>, %arg3: memref<5x128xf32, #tpu.memory_space<vmem>>, %arg4: memref<128x384xf32, #tpu.memory_space<vmem>>, %arg5: memref<1x384xf32, #tpu.memory_space<vmem>>, %arg6: memref<128x128xf32, #tpu.memory_space<vmem>>, %arg7: memref<1x128xf32, #tpu.memory_space<vmem>>, %arg8: memref<1x128xf32, #tpu.memory_space<vmem>>, %arg9: memref<1x128xf32, #tpu.memory_space<vmem>>, %arg10: memref<128x2048xbf16, #tpu.memory_space<vmem>>, %arg11: memref<1x2048xf32, #tpu.memory_space<vmem>>, %arg12: memref<2048x128xbf16, #tpu.memory_space<vmem>>, %arg13: memref<1x128xf32, #tpu.memory_space<vmem>>, %arg14: memref<1x128xf32, #tpu.memory_space<vmem>>, %arg15: memref<1x128xf32, #tpu.memory_space<vmem>>, %arg16: memref<5x128x128xf32, #tpu.memory_space<vmem>>, %arg17: memref<5x128xf32, #tpu.memory_space<vmem>>, %arg18: memref<128x128xf32, #tpu.memory_space<vmem>>, %arg19: memref<1x128xf32, #tpu.memory_space<vmem>>, %arg20: memref<5x8x128xf32, #tpu.memory_space<vmem>>) attributes {dimension_semantics = [#tpu.dimension_semantics<parallel>], iteration_bounds = array<i64: 1>, scalar_prefetch = 0 : i64, scratch_operands = 0 : i64, tpu.core_type = #tpu.core_type<tc>, window_params = [{transform_indices = @transform_0, window_bounds = array<i64: 5, 8, 32>}, {pipeline_mode = #tpu.pipeline_mode<synchronous>, transform_indices = @transform_1, window_bounds = array<i64: 5, 32, 128>}, {pipeline_mode = #tpu.pipeline_mode<synchronous>, transform_indices = @transform_2, window_bounds = array<i64: 5, 128>}, {pipeline_mode = #tpu.pipeline_mode<synchronous>, transform_indices = @transform_3, window_bounds = array<i64: 128, 384>}, {pipeline_mode = #tpu.pipeline_mode<synchronous>, transform_indices = @transform_4, window_bounds = array<i64: 1, 384>}, {pipeline_mode = #tpu.pipeline_mode<synchronous>, transform_indices = @transform_5, window_bounds = array<i64: 128, 128>}, {pipeline_mode = #tpu.pipeline_mode<synchronous>, transform_indices = @transform_6, window_bounds = array<i64: 1, 128>}, {pipeline_mode = #tpu.pipeline_mode<synchronous>, transform_indices = @transform_7, window_bounds = array<i64: 1, 128>}, {pipeline_mode = #tpu.pipeline_mode<synchronous>, transform_indices = @transform_8, window_bounds = array<i64: 1, 128>}, {pipeline_mode = #tpu.pipeline_mode<synchronous>, transform_indices = @transform_9, window_bounds = array<i64: 128, 2048>}, {pipeline_mode = #tpu.pipeline_mode<synchronous>, transform_indices = @transform_10, window_bounds = array<i64: 1, 2048>}, {pipeline_mode = #tpu.pipeline_mode<synchronous>, transform_indices = @transform_11, window_bounds = array<i64: 2048, 128>}, {pipeline_mode = #tpu.pipeline_mode<synchronous>, transform_indices = @transform_12, window_bounds = array<i64: 1, 128>}, {pipeline_mode = #tpu.pipeline_mode<synchronous>, transform_indices = @transform_13, window_bounds = array<i64: 1, 128>}, {pipeline_mode = #tpu.pipeline_mode<synchronous>, transform_indices = @transform_14, window_bounds = array<i64: 1, 128>}, {pipeline_mode = #tpu.pipeline_mode<synchronous>, transform_indices = @transform_15, window_bounds = array<i64: 5, 128, 128>}, {pipeline_mode = #tpu.pipeline_mode<synchronous>, transform_indices = @transform_16, window_bounds = array<i64: 5, 128>}, {pipeline_mode = #tpu.pipeline_mode<synchronous>, transform_indices = @transform_17, window_bounds = array<i64: 128, 128>}, {pipeline_mode = #tpu.pipeline_mode<synchronous>, transform_indices = @transform_18, window_bounds = array<i64: 1, 128>}, {transform_indices = @transform_19, window_bounds = array<i64: 5, 8, 128>}]} {
    %c0 = arith.constant 0 : index
    %c0_0 = arith.constant 0 : index
    %c0_1 = arith.constant 0 : index
    %0 = vector.load %arg1[%c0, %c0_0, %c0_1] : memref<5x8x32xf32, #tpu.memory_space<vmem>>, vector<1x8x32xf32>
    %1 = vector.shape_cast %0 : vector<1x8x32xf32> to vector<8x32xf32>
    %c0_2 = arith.constant 0 : index
    %c0_3 = arith.constant 0 : index
    %c0_4 = arith.constant 0 : index
    %2 = vector.load %arg2[%c0_2, %c0_3, %c0_4] : memref<5x32x128xf32, #tpu.memory_space<vmem>>, vector<1x32x128xf32>
    %3 = vector.shape_cast %2 : vector<1x32x128xf32> to vector<32x128xf32>
    %cst = arith.constant dense<0.000000e+00> : vector<8x128xf32>
    %4 = tpu.matmul %1, %3, %cst {dimension_numbers = #tpu.dot_dimension_numbers<[1], [0], [0], [1], [0, 0, 1, 1], [], []>} : vector<8x32xf32>, vector<32x128xf32>, vector<8x128xf32> -> vector<8x128xf32>
    %c0_5 = arith.constant 0 : index
    %c0_6 = arith.constant 0 : index
    %5 = vector.load %arg3[%c0_5, %c0_6] : memref<5x128xf32, #tpu.memory_space<vmem>>, vector<1x128xf32>
    %6 = vector.broadcast %5 : vector<1x128xf32> to vector<8x128xf32>
    %7 = arith.addf %4, %6 : vector<8x128xf32>
    %cst_7 = arith.constant 0.000000e+00 : f32
    %8 = vector.broadcast %cst_7 : f32 to vector<8x128xf32>
    %9 = arith.maximumf %7, %8 : vector<8x128xf32>
    %c1 = arith.constant 1 : index
    %c0_8 = arith.constant 0 : index
    %c0_9 = arith.constant 0 : index
    %10 = vector.load %arg1[%c1, %c0_8, %c0_9] : memref<5x8x32xf32, #tpu.memory_space<vmem>>, vector<1x8x32xf32>
    %11 = vector.shape_cast %10 : vector<1x8x32xf32> to vector<8x32xf32>
    %c1_10 = arith.constant 1 : index
    %c0_11 = arith.constant 0 : index
    %c0_12 = arith.constant 0 : index
    %12 = vector.load %arg2[%c1_10, %c0_11, %c0_12] : memref<5x32x128xf32, #tpu.memory_space<vmem>>, vector<1x32x128xf32>
    %13 = vector.shape_cast %12 : vector<1x32x128xf32> to vector<32x128xf32>
    %cst_13 = arith.constant dense<0.000000e+00> : vector<8x128xf32>
    %14 = tpu.matmul %11, %13, %cst_13 {dimension_numbers = #tpu.dot_dimension_numbers<[1], [0], [0], [1], [0, 0, 1, 1], [], []>} : vector<8x32xf32>, vector<32x128xf32>, vector<8x128xf32> -> vector<8x128xf32>
    %c1_14 = arith.constant 1 : index
    %c0_15 = arith.constant 0 : index
    %15 = vector.load %arg3[%c1_14, %c0_15] : memref<5x128xf32, #tpu.memory_space<vmem>>, vector<1x128xf32>
    %16 = vector.broadcast %15 : vector<1x128xf32> to vector<8x128xf32>
    %17 = arith.addf %14, %16 : vector<8x128xf32>
    %cst_16 = arith.constant 0.000000e+00 : f32
    %18 = vector.broadcast %cst_16 : f32 to vector<8x128xf32>
    %19 = arith.maximumf %17, %18 : vector<8x128xf32>
    %c2 = arith.constant 2 : index
    %c0_17 = arith.constant 0 : index
    %c0_18 = arith.constant 0 : index
    %20 = vector.load %arg1[%c2, %c0_17, %c0_18] : memref<5x8x32xf32, #tpu.memory_space<vmem>>, vector<1x8x32xf32>
    %21 = vector.shape_cast %20 : vector<1x8x32xf32> to vector<8x32xf32>
    %c2_19 = arith.constant 2 : index
    %c0_20 = arith.constant 0 : index
    %c0_21 = arith.constant 0 : index
    %22 = vector.load %arg2[%c2_19, %c0_20, %c0_21] : memref<5x32x128xf32, #tpu.memory_space<vmem>>, vector<1x32x128xf32>
    %23 = vector.shape_cast %22 : vector<1x32x128xf32> to vector<32x128xf32>
    %cst_22 = arith.constant dense<0.000000e+00> : vector<8x128xf32>
    %24 = tpu.matmul %21, %23, %cst_22 {dimension_numbers = #tpu.dot_dimension_numbers<[1], [0], [0], [1], [0, 0, 1, 1], [], []>} : vector<8x32xf32>, vector<32x128xf32>, vector<8x128xf32> -> vector<8x128xf32>
    %c2_23 = arith.constant 2 : index
    %c0_24 = arith.constant 0 : index
    %25 = vector.load %arg3[%c2_23, %c0_24] : memref<5x128xf32, #tpu.memory_space<vmem>>, vector<1x128xf32>
    %26 = vector.broadcast %25 : vector<1x128xf32> to vector<8x128xf32>
    %27 = arith.addf %24, %26 : vector<8x128xf32>
    %cst_25 = arith.constant 0.000000e+00 : f32
    %28 = vector.broadcast %cst_25 : f32 to vector<8x128xf32>
    %29 = arith.maximumf %27, %28 : vector<8x128xf32>
    %c3 = arith.constant 3 : index
    %c0_26 = arith.constant 0 : index
    %c0_27 = arith.constant 0 : index
    %30 = vector.load %arg1[%c3, %c0_26, %c0_27] : memref<5x8x32xf32, #tpu.memory_space<vmem>>, vector<1x8x32xf32>
    %31 = vector.shape_cast %30 : vector<1x8x32xf32> to vector<8x32xf32>
    %c3_28 = arith.constant 3 : index
    %c0_29 = arith.constant 0 : index
    %c0_30 = arith.constant 0 : index
    %32 = vector.load %arg2[%c3_28, %c0_29, %c0_30] : memref<5x32x128xf32, #tpu.memory_space<vmem>>, vector<1x32x128xf32>
    %33 = vector.shape_cast %32 : vector<1x32x128xf32> to vector<32x128xf32>
    %cst_31 = arith.constant dense<0.000000e+00> : vector<8x128xf32>
    %34 = tpu.matmul %31, %33, %cst_31 {dimension_numbers = #tpu.dot_dimension_numbers<[1], [0], [0], [1], [0, 0, 1, 1], [], []>} : vector<8x32xf32>, vector<32x128xf32>, vector<8x128xf32> -> vector<8x128xf32>
    %c3_32 = arith.constant 3 : index
    %c0_33 = arith.constant 0 : index
    %35 = vector.load %arg3[%c3_32, %c0_33] : memref<5x128xf32, #tpu.memory_space<vmem>>, vector<1x128xf32>
    %36 = vector.broadcast %35 : vector<1x128xf32> to vector<8x128xf32>
    %37 = arith.addf %34, %36 : vector<8x128xf32>
    %cst_34 = arith.constant 0.000000e+00 : f32
    %38 = vector.broadcast %cst_34 : f32 to vector<8x128xf32>
    %39 = arith.maximumf %37, %38 : vector<8x128xf32>
    %c4 = arith.constant 4 : index
    %c0_35 = arith.constant 0 : index
    %c0_36 = arith.constant 0 : index
    %40 = vector.load %arg1[%c4, %c0_35, %c0_36] : memref<5x8x32xf32, #tpu.memory_space<vmem>>, vector<1x8x32xf32>
    %41 = vector.shape_cast %40 : vector<1x8x32xf32> to vector<8x32xf32>
    %c4_37 = arith.constant 4 : index
    %c0_38 = arith.constant 0 : index
    %c0_39 = arith.constant 0 : index
    %42 = vector.load %arg2[%c4_37, %c0_38, %c0_39] : memref<5x32x128xf32, #tpu.memory_space<vmem>>, vector<1x32x128xf32>
    %43 = vector.shape_cast %42 : vector<1x32x128xf32> to vector<32x128xf32>
    %cst_40 = arith.constant dense<0.000000e+00> : vector<8x128xf32>
    %44 = tpu.matmul %41, %43, %cst_40 {dimension_numbers = #tpu.dot_dimension_numbers<[1], [0], [0], [1], [0, 0, 1, 1], [], []>} : vector<8x32xf32>, vector<32x128xf32>, vector<8x128xf32> -> vector<8x128xf32>
    %c4_41 = arith.constant 4 : index
    %c0_42 = arith.constant 0 : index
    %45 = vector.load %arg3[%c4_41, %c0_42] : memref<5x128xf32, #tpu.memory_space<vmem>>, vector<1x128xf32>
    %46 = vector.broadcast %45 : vector<1x128xf32> to vector<8x128xf32>
    %47 = arith.addf %44, %46 : vector<8x128xf32>
    %cst_43 = arith.constant 0.000000e+00 : f32
    %48 = vector.broadcast %cst_43 : f32 to vector<8x128xf32>
    %49 = arith.maximumf %47, %48 : vector<8x128xf32>
    %50 = tpu.concatenate %9, %19, %29, %39, %49 in 0 : vector<8x128xf32>, vector<8x128xf32>, vector<8x128xf32>, vector<8x128xf32>, vector<8x128xf32> -> vector<40x128xf32>
    %c0_44 = arith.constant 0 : index
    %c0_45 = arith.constant 0 : index
    %51 = vector.load %arg4[%c0_44, %c0_45] : memref<128x384xf32, #tpu.memory_space<vmem>>, vector<128x384xf32>
    %cst_46 = arith.constant dense<0.000000e+00> : vector<40x384xf32>
    %52 = tpu.matmul %50, %51, %cst_46 {dimension_numbers = #tpu.dot_dimension_numbers<[1], [0], [0], [1], [0, 0, 1, 1], [], []>} : vector<40x128xf32>, vector<128x384xf32>, vector<40x384xf32> -> vector<40x384xf32>
    %c0_47 = arith.constant 0 : index
    %c0_48 = arith.constant 0 : index
    %53 = vector.load %arg5[%c0_47, %c0_48] : memref<1x384xf32, #tpu.memory_space<vmem>>, vector<1x384xf32>
    %54 = vector.broadcast %53 : vector<1x384xf32> to vector<40x384xf32>
    %55 = arith.addf %52, %54 : vector<40x384xf32>
    %56 = vector.extract_strided_slice %55 {offsets = [0, 0], sizes = [40, 128], strides = [1, 1]} : vector<40x384xf32> to vector<40x128xf32>
    %57 = vector.extract_strided_slice %55 {offsets = [0, 128], sizes = [40, 128], strides = [1, 1]} : vector<40x384xf32> to vector<40x128xf32>
    %58 = vector.extract_strided_slice %55 {offsets = [0, 256], sizes = [40, 128], strides = [1, 1]} : vector<40x384xf32> to vector<40x128xf32>
    %59 = tpu.iota {dimensions = array<i32: 0>} : vector<40x40xi32>
    %60 = tpu.iota {dimensions = array<i32: 1>} : vector<40x40xi32>
    %c8_i32 = arith.constant 8 : i32
    %c0_i32 = arith.constant 0 : i32
    %61 = arith.cmpi eq, %c8_i32, %c0_i32 : i32
    %c1_i32 = arith.constant 1 : i32
    %62 = arith.select %61, %c1_i32, %c8_i32 : i32
    %63 = vector.broadcast %62 : i32 to vector<40x40xi32>
    %64 = arith.remsi %59, %63 : vector<40x40xi32>
    %c0_i32_49 = arith.constant 0 : i32
    %65 = vector.broadcast %c0_i32_49 : i32 to vector<40x40xi32>
    %66 = arith.cmpi ne, %64, %65 : vector<40x40xi32>
    %c0_i32_50 = arith.constant 0 : i32
    %67 = vector.broadcast %c0_i32_50 : i32 to vector<40x40xi32>
    %68 = arith.cmpi slt, %64, %67 : vector<40x40xi32>
    %c0_i32_51 = arith.constant 0 : i32
    %69 = arith.cmpi slt, %62, %c0_i32_51 : i32
    %70 = vector.broadcast %69 : i1 to vector<40x40xi1>
    %71 = vector.broadcast %70 : vector<40x40xi1> to vector<40x40xi1>
    %72 = arith.xori %68, %71 : vector<40x40xi1>
    %73 = arith.andi %72, %66 : vector<40x40xi1>
    %74 = vector.broadcast %62 : i32 to vector<40x40xi32>
    %75 = arith.addi %64, %74 : vector<40x40xi32>
    %76 = arith.select %73, %75, %64 : vector<40x40xi1>, vector<40x40xi32>
    %c8_i32_52 = arith.constant 8 : i32
    %c0_i32_53 = arith.constant 0 : i32
    %77 = arith.cmpi eq, %c8_i32_52, %c0_i32_53 : i32
    %c1_i32_54 = arith.constant 1 : i32
    %78 = arith.select %77, %c1_i32_54, %c8_i32_52 : i32
    %79 = vector.broadcast %78 : i32 to vector<40x40xi32>
    %80 = arith.remsi %60, %79 : vector<40x40xi32>
    %c0_i32_55 = arith.constant 0 : i32
    %81 = vector.broadcast %c0_i32_55 : i32 to vector<40x40xi32>
    %82 = arith.cmpi ne, %80, %81 : vector<40x40xi32>
    %c0_i32_56 = arith.constant 0 : i32
    %83 = vector.broadcast %c0_i32_56 : i32 to vector<40x40xi32>
    %84 = arith.cmpi slt, %80, %83 : vector<40x40xi32>
    %c0_i32_57 = arith.constant 0 : i32
    %85 = arith.cmpi slt, %78, %c0_i32_57 : i32
    %86 = vector.broadcast %85 : i1 to vector<40x40xi1>
    %87 = vector.broadcast %86 : vector<40x40xi1> to vector<40x40xi1>
    %88 = arith.xori %84, %87 : vector<40x40xi1>
    %89 = arith.andi %88, %82 : vector<40x40xi1>
    %90 = vector.broadcast %78 : i32 to vector<40x40xi32>
    %91 = arith.addi %80, %90 : vector<40x40xi32>
    %92 = arith.select %89, %91, %80 : vector<40x40xi1>, vector<40x40xi32>
    %93 = arith.cmpi eq, %76, %92 : vector<40x40xi32>
    %cst_58 = arith.constant 0.000000e+00 : f32
    %cst_59 = arith.constant -1.000000e+30 : f32
    %94 = vector.broadcast %cst_58 : f32 to vector<40x40xf32>
    %95 = vector.broadcast %cst_59 : f32 to vector<40x40xf32>
    %96 = arith.select %93, %94, %95 : vector<40x40xi1>, vector<40x40xf32>
    %97 = vector.extract_strided_slice %56 {offsets = [0, 0], sizes = [40, 32], strides = [1, 1]} : vector<40x128xf32> to vector<40x32xf32>
    %98 = vector.extract_strided_slice %57 {offsets = [0, 0], sizes = [40, 32], strides = [1, 1]} : vector<40x128xf32> to vector<40x32xf32>
    %99 = vector.extract_strided_slice %58 {offsets = [0, 0], sizes = [40, 32], strides = [1, 1]} : vector<40x128xf32> to vector<40x32xf32>
    %cst_60 = arith.constant dense<0.000000e+00> : vector<40x40xf32>
    %100 = tpu.matmul %97, %98, %cst_60 {dimension_numbers = #tpu.dot_dimension_numbers<[1], [1], [0], [0], [0, 0, 1, 0], [], []>} : vector<40x32xf32>, vector<40x32xf32>, vector<40x40xf32> -> vector<40x40xf32>
    %cst_61 = arith.constant 0.176776692 : f32
    %101 = vector.broadcast %cst_61 : f32 to vector<40x40xf32>
    %102 = arith.mulf %100, %101 : vector<40x40xf32>
    %103 = arith.addf %102, %96 : vector<40x40xf32>
    %cst_62 = arith.constant dense<0xFF800000> : vector<40xf32>
    %104 = vector.multi_reduction <maximumf>, %103, %cst_62 [1] : vector<40x40xf32> to vector<40xf32>
    %105 = vector.shape_cast %104 : vector<40xf32> to vector<40x1xf32>
    %106 = vector.broadcast %105 : vector<40x1xf32> to vector<40x40xf32>
    %107 = arith.subf %103, %106 : vector<40x40xf32>
    %108 = math.exp %107 : vector<40x40xf32>
    %cst_63 = arith.constant dense<0.000000e+00> : vector<40xf32>
    %109 = vector.multi_reduction <add>, %108, %cst_63 [1] : vector<40x40xf32> to vector<40xf32>
    %110 = vector.shape_cast %109 : vector<40xf32> to vector<40x1xf32>
    %111 = tpu.reciprocal %110 {approx = true} : vector<40x1xf32> -> vector<40x1xf32>
    %112 = vector.broadcast %111 : vector<40x1xf32> to vector<40x40xf32>
    %113 = arith.mulf %108, %112 : vector<40x40xf32>
    %cst_64 = arith.constant dense<0.000000e+00> : vector<40x32xf32>
    %114 = tpu.matmul %113, %99, %cst_64 {dimension_numbers = #tpu.dot_dimension_numbers<[1], [0], [0], [1], [0, 0, 1, 1], [], []>} : vector<40x40xf32>, vector<40x32xf32>, vector<40x32xf32> -> vector<40x32xf32>
    %115 = vector.extract_strided_slice %56 {offsets = [0, 32], sizes = [40, 32], strides = [1, 1]} : vector<40x128xf32> to vector<40x32xf32>
    %116 = vector.extract_strided_slice %57 {offsets = [0, 32], sizes = [40, 32], strides = [1, 1]} : vector<40x128xf32> to vector<40x32xf32>
    %117 = vector.extract_strided_slice %58 {offsets = [0, 32], sizes = [40, 32], strides = [1, 1]} : vector<40x128xf32> to vector<40x32xf32>
    %cst_65 = arith.constant dense<0.000000e+00> : vector<40x40xf32>
    %118 = tpu.matmul %115, %116, %cst_65 {dimension_numbers = #tpu.dot_dimension_numbers<[1], [1], [0], [0], [0, 0, 1, 0], [], []>} : vector<40x32xf32>, vector<40x32xf32>, vector<40x40xf32> -> vector<40x40xf32>
    %cst_66 = arith.constant 0.176776692 : f32
    %119 = vector.broadcast %cst_66 : f32 to vector<40x40xf32>
    %120 = arith.mulf %118, %119 : vector<40x40xf32>
    %121 = arith.addf %120, %96 : vector<40x40xf32>
    %cst_67 = arith.constant dense<0xFF800000> : vector<40xf32>
    %122 = vector.multi_reduction <maximumf>, %121, %cst_67 [1] : vector<40x40xf32> to vector<40xf32>
    %123 = vector.shape_cast %122 : vector<40xf32> to vector<40x1xf32>
    %124 = vector.broadcast %123 : vector<40x1xf32> to vector<40x40xf32>
    %125 = arith.subf %121, %124 : vector<40x40xf32>
    %126 = math.exp %125 : vector<40x40xf32>
    %cst_68 = arith.constant dense<0.000000e+00> : vector<40xf32>
    %127 = vector.multi_reduction <add>, %126, %cst_68 [1] : vector<40x40xf32> to vector<40xf32>
    %128 = vector.shape_cast %127 : vector<40xf32> to vector<40x1xf32>
    %129 = tpu.reciprocal %128 {approx = true} : vector<40x1xf32> -> vector<40x1xf32>
    %130 = vector.broadcast %129 : vector<40x1xf32> to vector<40x40xf32>
    %131 = arith.mulf %126, %130 : vector<40x40xf32>
    %cst_69 = arith.constant dense<0.000000e+00> : vector<40x32xf32>
    %132 = tpu.matmul %131, %117, %cst_69 {dimension_numbers = #tpu.dot_dimension_numbers<[1], [0], [0], [1], [0, 0, 1, 1], [], []>} : vector<40x40xf32>, vector<40x32xf32>, vector<40x32xf32> -> vector<40x32xf32>
    %133 = vector.extract_strided_slice %56 {offsets = [0, 64], sizes = [40, 32], strides = [1, 1]} : vector<40x128xf32> to vector<40x32xf32>
    %134 = vector.extract_strided_slice %57 {offsets = [0, 64], sizes = [40, 32], strides = [1, 1]} : vector<40x128xf32> to vector<40x32xf32>
    %135 = vector.extract_strided_slice %58 {offsets = [0, 64], sizes = [40, 32], strides = [1, 1]} : vector<40x128xf32> to vector<40x32xf32>
    %cst_70 = arith.constant dense<0.000000e+00> : vector<40x40xf32>
    %136 = tpu.matmul %133, %134, %cst_70 {dimension_numbers = #tpu.dot_dimension_numbers<[1], [1], [0], [0], [0, 0, 1, 0], [], []>} : vector<40x32xf32>, vector<40x32xf32>, vector<40x40xf32> -> vector<40x40xf32>
    %cst_71 = arith.constant 0.176776692 : f32
    %137 = vector.broadcast %cst_71 : f32 to vector<40x40xf32>
    %138 = arith.mulf %136, %137 : vector<40x40xf32>
    %139 = arith.addf %138, %96 : vector<40x40xf32>
    %cst_72 = arith.constant dense<0xFF800000> : vector<40xf32>
    %140 = vector.multi_reduction <maximumf>, %139, %cst_72 [1] : vector<40x40xf32> to vector<40xf32>
    %141 = vector.shape_cast %140 : vector<40xf32> to vector<40x1xf32>
    %142 = vector.broadcast %141 : vector<40x1xf32> to vector<40x40xf32>
    %143 = arith.subf %139, %142 : vector<40x40xf32>
    %144 = math.exp %143 : vector<40x40xf32>
    %cst_73 = arith.constant dense<0.000000e+00> : vector<40xf32>
    %145 = vector.multi_reduction <add>, %144, %cst_73 [1] : vector<40x40xf32> to vector<40xf32>
    %146 = vector.shape_cast %145 : vector<40xf32> to vector<40x1xf32>
    %147 = tpu.reciprocal %146 {approx = true} : vector<40x1xf32> -> vector<40x1xf32>
    %148 = vector.broadcast %147 : vector<40x1xf32> to vector<40x40xf32>
    %149 = arith.mulf %144, %148 : vector<40x40xf32>
    %cst_74 = arith.constant dense<0.000000e+00> : vector<40x32xf32>
    %150 = tpu.matmul %149, %135, %cst_74 {dimension_numbers = #tpu.dot_dimension_numbers<[1], [0], [0], [1], [0, 0, 1, 1], [], []>} : vector<40x40xf32>, vector<40x32xf32>, vector<40x32xf32> -> vector<40x32xf32>
    %151 = vector.extract_strided_slice %56 {offsets = [0, 96], sizes = [40, 32], strides = [1, 1]} : vector<40x128xf32> to vector<40x32xf32>
    %152 = vector.extract_strided_slice %57 {offsets = [0, 96], sizes = [40, 32], strides = [1, 1]} : vector<40x128xf32> to vector<40x32xf32>
    %153 = vector.extract_strided_slice %58 {offsets = [0, 96], sizes = [40, 32], strides = [1, 1]} : vector<40x128xf32> to vector<40x32xf32>
    %cst_75 = arith.constant dense<0.000000e+00> : vector<40x40xf32>
    %154 = tpu.matmul %151, %152, %cst_75 {dimension_numbers = #tpu.dot_dimension_numbers<[1], [1], [0], [0], [0, 0, 1, 0], [], []>} : vector<40x32xf32>, vector<40x32xf32>, vector<40x40xf32> -> vector<40x40xf32>
    %cst_76 = arith.constant 0.176776692 : f32
    %155 = vector.broadcast %cst_76 : f32 to vector<40x40xf32>
    %156 = arith.mulf %154, %155 : vector<40x40xf32>
    %157 = arith.addf %156, %96 : vector<40x40xf32>
    %cst_77 = arith.constant dense<0xFF800000> : vector<40xf32>
    %158 = vector.multi_reduction <maximumf>, %157, %cst_77 [1] : vector<40x40xf32> to vector<40xf32>
    %159 = vector.shape_cast %158 : vector<40xf32> to vector<40x1xf32>
    %160 = vector.broadcast %159 : vector<40x1xf32> to vector<40x40xf32>
    %161 = arith.subf %157, %160 : vector<40x40xf32>
    %162 = math.exp %161 : vector<40x40xf32>
    %cst_78 = arith.constant dense<0.000000e+00> : vector<40xf32>
    %163 = vector.multi_reduction <add>, %162, %cst_78 [1] : vector<40x40xf32> to vector<40xf32>
    %164 = vector.shape_cast %163 : vector<40xf32> to vector<40x1xf32>
    %165 = tpu.reciprocal %164 {approx = true} : vector<40x1xf32> -> vector<40x1xf32>
    %166 = vector.broadcast %165 : vector<40x1xf32> to vector<40x40xf32>
    %167 = arith.mulf %162, %166 : vector<40x40xf32>
    %cst_79 = arith.constant dense<0.000000e+00> : vector<40x32xf32>
    %168 = tpu.matmul %167, %153, %cst_79 {dimension_numbers = #tpu.dot_dimension_numbers<[1], [0], [0], [1], [0, 0, 1, 1], [], []>} : vector<40x40xf32>, vector<40x32xf32>, vector<40x32xf32> -> vector<40x32xf32>
    %169 = tpu.concatenate %114, %132, %150, %168 in 1 : vector<40x32xf32>, vector<40x32xf32>, vector<40x32xf32>, vector<40x32xf32> -> vector<40x128xf32>
    %c0_80 = arith.constant 0 : index
    %c0_81 = arith.constant 0 : index
    %170 = vector.load %arg6[%c0_80, %c0_81] : memref<128x128xf32, #tpu.memory_space<vmem>>, vector<128x128xf32>
    %cst_82 = arith.constant dense<0.000000e+00> : vector<40x128xf32>
    %171 = tpu.matmul %169, %170, %cst_82 {dimension_numbers = #tpu.dot_dimension_numbers<[1], [0], [0], [1], [0, 0, 1, 1], [], []>} : vector<40x128xf32>, vector<128x128xf32>, vector<40x128xf32> -> vector<40x128xf32>
    %c0_83 = arith.constant 0 : index
    %c0_84 = arith.constant 0 : index
    %172 = vector.load %arg7[%c0_83, %c0_84] : memref<1x128xf32, #tpu.memory_space<vmem>>, vector<1x128xf32>
    %173 = vector.broadcast %172 : vector<1x128xf32> to vector<40x128xf32>
    %174 = arith.addf %171, %173 : vector<40x128xf32>
    %175 = arith.addf %50, %174 : vector<40x128xf32>
    %c0_85 = arith.constant 0 : index
    %c0_86 = arith.constant 0 : index
    %176 = vector.load %arg8[%c0_85, %c0_86] : memref<1x128xf32, #tpu.memory_space<vmem>>, vector<1x128xf32>
    %c0_87 = arith.constant 0 : index
    %c0_88 = arith.constant 0 : index
    %177 = vector.load %arg9[%c0_87, %c0_88] : memref<1x128xf32, #tpu.memory_space<vmem>>, vector<1x128xf32>
    %cst_89 = arith.constant dense<0.000000e+00> : vector<40xf32>
    %178 = vector.multi_reduction <add>, %175, %cst_89 [1] : vector<40x128xf32> to vector<40xf32>
    %179 = vector.shape_cast %178 : vector<40xf32> to vector<40x1xf32>
    %cst_90 = arith.constant 1.280000e+02 : f32
    %180 = vector.broadcast %cst_90 : f32 to vector<40x1xf32>
    %181 = arith.divf %179, %180 : vector<40x1xf32>
    %182 = vector.broadcast %181 : vector<40x1xf32> to vector<40x128xf32>
    %183 = arith.subf %175, %182 : vector<40x128xf32>
    %184 = arith.mulf %183, %183 : vector<40x128xf32>
    %cst_91 = arith.constant dense<0.000000e+00> : vector<40xf32>
    %185 = vector.multi_reduction <add>, %184, %cst_91 [1] : vector<40x128xf32> to vector<40xf32>
    %186 = vector.shape_cast %185 : vector<40xf32> to vector<40x1xf32>
    %cst_92 = arith.constant 1.280000e+02 : f32
    %187 = vector.broadcast %cst_92 : f32 to vector<40x1xf32>
    %188 = arith.divf %186, %187 : vector<40x1xf32>
    %cst_93 = arith.constant 9.99999974E-6 : f32
    %189 = vector.broadcast %cst_93 : f32 to vector<40x1xf32>
    %190 = arith.addf %188, %189 : vector<40x1xf32>
    %191 = math.rsqrt %190 : vector<40x1xf32>
    %192 = vector.broadcast %191 : vector<40x1xf32> to vector<40x128xf32>
    %193 = arith.mulf %183, %192 : vector<40x128xf32>
    %194 = vector.broadcast %176 : vector<1x128xf32> to vector<40x128xf32>
    %195 = arith.mulf %193, %194 : vector<40x128xf32>
    %196 = vector.broadcast %177 : vector<1x128xf32> to vector<40x128xf32>
    %197 = arith.addf %195, %196 : vector<40x128xf32>
    %198 = arith.truncf %197 : vector<40x128xf32> to vector<40x128xbf16>
    %c0_94 = arith.constant 0 : index
    %c0_95 = arith.constant 0 : index
    %199 = vector.load %arg10[%c0_94, %c0_95] : memref<128x2048xbf16, #tpu.memory_space<vmem>>, vector<128x2048xbf16>
    %cst_96 = arith.constant dense<0.000000e+00> : vector<40x2048xf32>
    %200 = tpu.matmul %198, %199, %cst_96 {dimension_numbers = #tpu.dot_dimension_numbers<[1], [0], [0], [1], [0, 0, 1, 1], [], []>} : vector<40x128xbf16>, vector<128x2048xbf16>, vector<40x2048xf32> -> vector<40x2048xf32>
    %c0_97 = arith.constant 0 : index
    %c0_98 = arith.constant 0 : index
    %201 = vector.load %arg11[%c0_97, %c0_98] : memref<1x2048xf32, #tpu.memory_space<vmem>>, vector<1x2048xf32>
    %202 = vector.broadcast %201 : vector<1x2048xf32> to vector<40x2048xf32>
    %203 = arith.addf %200, %202 : vector<40x2048xf32>
    %cst_99 = arith.constant 0.000000e+00 : f32
    %204 = vector.broadcast %cst_99 : f32 to vector<40x2048xf32>
    %205 = arith.maximumf %203, %204 : vector<40x2048xf32>
    %206 = arith.truncf %205 : vector<40x2048xf32> to vector<40x2048xbf16>
    %c0_100 = arith.constant 0 : index
    %c0_101 = arith.constant 0 : index
    %207 = vector.load %arg12[%c0_100, %c0_101] : memref<2048x128xbf16, #tpu.memory_space<vmem>>, vector<2048x128xbf16>
    %cst_102 = arith.constant dense<0.000000e+00> : vector<40x128xf32>
    %208 = tpu.matmul %206, %207, %cst_102 {dimension_numbers = #tpu.dot_dimension_numbers<[1], [0], [0], [1], [0, 0, 1, 1], [], []>} : vector<40x2048xbf16>, vector<2048x128xbf16>, vector<40x128xf32> -> vector<40x128xf32>
    %c0_103 = arith.constant 0 : index
    %c0_104 = arith.constant 0 : index
    %209 = vector.load %arg13[%c0_103, %c0_104] : memref<1x128xf32, #tpu.memory_space<vmem>>, vector<1x128xf32>
    %210 = vector.broadcast %209 : vector<1x128xf32> to vector<40x128xf32>
    %211 = arith.addf %208, %210 : vector<40x128xf32>
    %212 = arith.addf %197, %211 : vector<40x128xf32>
    %c0_105 = arith.constant 0 : index
    %c0_106 = arith.constant 0 : index
    %213 = vector.load %arg14[%c0_105, %c0_106] : memref<1x128xf32, #tpu.memory_space<vmem>>, vector<1x128xf32>
    %c0_107 = arith.constant 0 : index
    %c0_108 = arith.constant 0 : index
    %214 = vector.load %arg15[%c0_107, %c0_108] : memref<1x128xf32, #tpu.memory_space<vmem>>, vector<1x128xf32>
    %cst_109 = arith.constant dense<0.000000e+00> : vector<40xf32>
    %215 = vector.multi_reduction <add>, %212, %cst_109 [1] : vector<40x128xf32> to vector<40xf32>
    %216 = vector.shape_cast %215 : vector<40xf32> to vector<40x1xf32>
    %cst_110 = arith.constant 1.280000e+02 : f32
    %217 = vector.broadcast %cst_110 : f32 to vector<40x1xf32>
    %218 = arith.divf %216, %217 : vector<40x1xf32>
    %219 = vector.broadcast %218 : vector<40x1xf32> to vector<40x128xf32>
    %220 = arith.subf %212, %219 : vector<40x128xf32>
    %221 = arith.mulf %220, %220 : vector<40x128xf32>
    %cst_111 = arith.constant dense<0.000000e+00> : vector<40xf32>
    %222 = vector.multi_reduction <add>, %221, %cst_111 [1] : vector<40x128xf32> to vector<40xf32>
    %223 = vector.shape_cast %222 : vector<40xf32> to vector<40x1xf32>
    %cst_112 = arith.constant 1.280000e+02 : f32
    %224 = vector.broadcast %cst_112 : f32 to vector<40x1xf32>
    %225 = arith.divf %223, %224 : vector<40x1xf32>
    %cst_113 = arith.constant 9.99999974E-6 : f32
    %226 = vector.broadcast %cst_113 : f32 to vector<40x1xf32>
    %227 = arith.addf %225, %226 : vector<40x1xf32>
    %228 = math.rsqrt %227 : vector<40x1xf32>
    %229 = vector.broadcast %228 : vector<40x1xf32> to vector<40x128xf32>
    %230 = arith.mulf %220, %229 : vector<40x128xf32>
    %231 = vector.broadcast %213 : vector<1x128xf32> to vector<40x128xf32>
    %232 = arith.mulf %230, %231 : vector<40x128xf32>
    %233 = vector.broadcast %214 : vector<1x128xf32> to vector<40x128xf32>
    %234 = arith.addf %232, %233 : vector<40x128xf32>
    %235 = vector.extract_strided_slice %234 {offsets = [0, 0], sizes = [8, 128], strides = [1, 1]} : vector<40x128xf32> to vector<8x128xf32>
    %c0_114 = arith.constant 0 : index
    %c0_115 = arith.constant 0 : index
    %c0_116 = arith.constant 0 : index
    %236 = vector.load %arg16[%c0_114, %c0_115, %c0_116] : memref<5x128x128xf32, #tpu.memory_space<vmem>>, vector<1x128x128xf32>
    %237 = vector.shape_cast %236 : vector<1x128x128xf32> to vector<128x128xf32>
    %cst_117 = arith.constant dense<0.000000e+00> : vector<8x128xf32>
    %238 = tpu.matmul %235, %237, %cst_117 {dimension_numbers = #tpu.dot_dimension_numbers<[1], [0], [0], [1], [0, 0, 1, 1], [], []>} : vector<8x128xf32>, vector<128x128xf32>, vector<8x128xf32> -> vector<8x128xf32>
    %c0_118 = arith.constant 0 : index
    %c0_119 = arith.constant 0 : index
    %239 = vector.load %arg17[%c0_118, %c0_119] : memref<5x128xf32, #tpu.memory_space<vmem>>, vector<1x128xf32>
    %240 = vector.broadcast %239 : vector<1x128xf32> to vector<8x128xf32>
    %241 = arith.addf %238, %240 : vector<8x128xf32>
    %cst_120 = arith.constant 0.000000e+00 : f32
    %242 = vector.broadcast %cst_120 : f32 to vector<8x128xf32>
    %243 = arith.maximumf %241, %242 : vector<8x128xf32>
    %244 = vector.extract_strided_slice %234 {offsets = [8, 0], sizes = [8, 128], strides = [1, 1]} : vector<40x128xf32> to vector<8x128xf32>
    %c1_121 = arith.constant 1 : index
    %c0_122 = arith.constant 0 : index
    %c0_123 = arith.constant 0 : index
    %245 = vector.load %arg16[%c1_121, %c0_122, %c0_123] : memref<5x128x128xf32, #tpu.memory_space<vmem>>, vector<1x128x128xf32>
    %246 = vector.shape_cast %245 : vector<1x128x128xf32> to vector<128x128xf32>
    %cst_124 = arith.constant dense<0.000000e+00> : vector<8x128xf32>
    %247 = tpu.matmul %244, %246, %cst_124 {dimension_numbers = #tpu.dot_dimension_numbers<[1], [0], [0], [1], [0, 0, 1, 1], [], []>} : vector<8x128xf32>, vector<128x128xf32>, vector<8x128xf32> -> vector<8x128xf32>
    %c1_125 = arith.constant 1 : index
    %c0_126 = arith.constant 0 : index
    %248 = vector.load %arg17[%c1_125, %c0_126] : memref<5x128xf32, #tpu.memory_space<vmem>>, vector<1x128xf32>
    %249 = vector.broadcast %248 : vector<1x128xf32> to vector<8x128xf32>
    %250 = arith.addf %247, %249 : vector<8x128xf32>
    %cst_127 = arith.constant 0.000000e+00 : f32
    %251 = vector.broadcast %cst_127 : f32 to vector<8x128xf32>
    %252 = arith.maximumf %250, %251 : vector<8x128xf32>
    %253 = vector.extract_strided_slice %234 {offsets = [16, 0], sizes = [8, 128], strides = [1, 1]} : vector<40x128xf32> to vector<8x128xf32>
    %c2_128 = arith.constant 2 : index
    %c0_129 = arith.constant 0 : index
    %c0_130 = arith.constant 0 : index
    %254 = vector.load %arg16[%c2_128, %c0_129, %c0_130] : memref<5x128x128xf32, #tpu.memory_space<vmem>>, vector<1x128x128xf32>
    %255 = vector.shape_cast %254 : vector<1x128x128xf32> to vector<128x128xf32>
    %cst_131 = arith.constant dense<0.000000e+00> : vector<8x128xf32>
    %256 = tpu.matmul %253, %255, %cst_131 {dimension_numbers = #tpu.dot_dimension_numbers<[1], [0], [0], [1], [0, 0, 1, 1], [], []>} : vector<8x128xf32>, vector<128x128xf32>, vector<8x128xf32> -> vector<8x128xf32>
    %c2_132 = arith.constant 2 : index
    %c0_133 = arith.constant 0 : index
    %257 = vector.load %arg17[%c2_132, %c0_133] : memref<5x128xf32, #tpu.memory_space<vmem>>, vector<1x128xf32>
    %258 = vector.broadcast %257 : vector<1x128xf32> to vector<8x128xf32>
    %259 = arith.addf %256, %258 : vector<8x128xf32>
    %cst_134 = arith.constant 0.000000e+00 : f32
    %260 = vector.broadcast %cst_134 : f32 to vector<8x128xf32>
    %261 = arith.maximumf %259, %260 : vector<8x128xf32>
    %262 = vector.extract_strided_slice %234 {offsets = [24, 0], sizes = [8, 128], strides = [1, 1]} : vector<40x128xf32> to vector<8x128xf32>
    %c3_135 = arith.constant 3 : index
    %c0_136 = arith.constant 0 : index
    %c0_137 = arith.constant 0 : index
    %263 = vector.load %arg16[%c3_135, %c0_136, %c0_137] : memref<5x128x128xf32, #tpu.memory_space<vmem>>, vector<1x128x128xf32>
    %264 = vector.shape_cast %263 : vector<1x128x128xf32> to vector<128x128xf32>
    %cst_138 = arith.constant dense<0.000000e+00> : vector<8x128xf32>
    %265 = tpu.matmul %262, %264, %cst_138 {dimension_numbers = #tpu.dot_dimension_numbers<[1], [0], [0], [1], [0, 0, 1, 1], [], []>} : vector<8x128xf32>, vector<128x128xf32>, vector<8x128xf32> -> vector<8x128xf32>
    %c3_139 = arith.constant 3 : index
    %c0_140 = arith.constant 0 : index
    %266 = vector.load %arg17[%c3_139, %c0_140] : memref<5x128xf32, #tpu.memory_space<vmem>>, vector<1x128xf32>
    %267 = vector.broadcast %266 : vector<1x128xf32> to vector<8x128xf32>
    %268 = arith.addf %265, %267 : vector<8x128xf32>
    %cst_141 = arith.constant 0.000000e+00 : f32
    %269 = vector.broadcast %cst_141 : f32 to vector<8x128xf32>
    %270 = arith.maximumf %268, %269 : vector<8x128xf32>
    %271 = vector.extract_strided_slice %234 {offsets = [32, 0], sizes = [8, 128], strides = [1, 1]} : vector<40x128xf32> to vector<8x128xf32>
    %c4_142 = arith.constant 4 : index
    %c0_143 = arith.constant 0 : index
    %c0_144 = arith.constant 0 : index
    %272 = vector.load %arg16[%c4_142, %c0_143, %c0_144] : memref<5x128x128xf32, #tpu.memory_space<vmem>>, vector<1x128x128xf32>
    %273 = vector.shape_cast %272 : vector<1x128x128xf32> to vector<128x128xf32>
    %cst_145 = arith.constant dense<0.000000e+00> : vector<8x128xf32>
    %274 = tpu.matmul %271, %273, %cst_145 {dimension_numbers = #tpu.dot_dimension_numbers<[1], [0], [0], [1], [0, 0, 1, 1], [], []>} : vector<8x128xf32>, vector<128x128xf32>, vector<8x128xf32> -> vector<8x128xf32>
    %c4_146 = arith.constant 4 : index
    %c0_147 = arith.constant 0 : index
    %275 = vector.load %arg17[%c4_146, %c0_147] : memref<5x128xf32, #tpu.memory_space<vmem>>, vector<1x128xf32>
    %276 = vector.broadcast %275 : vector<1x128xf32> to vector<8x128xf32>
    %277 = arith.addf %274, %276 : vector<8x128xf32>
    %cst_148 = arith.constant 0.000000e+00 : f32
    %278 = vector.broadcast %cst_148 : f32 to vector<8x128xf32>
    %279 = arith.maximumf %277, %278 : vector<8x128xf32>
    %280 = tpu.concatenate %243, %252, %261, %270, %279 in 0 : vector<8x128xf32>, vector<8x128xf32>, vector<8x128xf32>, vector<8x128xf32>, vector<8x128xf32> -> vector<40x128xf32>
    %c0_149 = arith.constant 0 : index
    %c0_150 = arith.constant 0 : index
    %281 = vector.load %arg18[%c0_149, %c0_150] : memref<128x128xf32, #tpu.memory_space<vmem>>, vector<128x128xf32>
    %cst_151 = arith.constant dense<0.000000e+00> : vector<40x128xf32>
    %282 = tpu.matmul %280, %281, %cst_151 {dimension_numbers = #tpu.dot_dimension_numbers<[1], [0], [0], [1], [0, 0, 1, 1], [], []>} : vector<40x128xf32>, vector<128x128xf32>, vector<40x128xf32> -> vector<40x128xf32>
    %c0_152 = arith.constant 0 : index
    %c0_153 = arith.constant 0 : index
    %283 = vector.load %arg19[%c0_152, %c0_153] : memref<1x128xf32, #tpu.memory_space<vmem>>, vector<1x128xf32>
    %284 = vector.broadcast %283 : vector<1x128xf32> to vector<40x128xf32>
    %285 = arith.addf %282, %284 : vector<40x128xf32>
    %286 = arith.negf %285 : vector<40x128xf32>
    %287 = math.exp %286 : vector<40x128xf32>
    %cst_154 = arith.constant 1.000000e+00 : f32
    %288 = vector.broadcast %cst_154 : f32 to vector<40x128xf32>
    %289 = arith.addf %288, %287 : vector<40x128xf32>
    %290 = arith.divf %288, %289 : vector<40x128xf32>
    %291 = vector.shape_cast %290 : vector<40x128xf32> to vector<5x8x128xf32>
    %c0_155 = arith.constant 0 : index
    %c0_156 = arith.constant 0 : index
    %c0_157 = arith.constant 0 : index
    %292 = vector.load %arg20[%c0_155, %c0_156, %c0_157] : memref<5x8x128xf32, #tpu.memory_space<vmem>>, vector<5x8x128xf32>
    tpu.vector_store %arg20[%c0_155, %c0_156, %c0_157], %291 {strides = array<i32>} : memref<5x8x128xf32, #tpu.memory_space<vmem>>, vector<5x8x128xf32>,
    return
  }
  func.func @transform_0(%arg0: i32) -> (i32, i32, i32) {
    %c0_i32 = arith.constant 0 : i32
    %c0_i32_0 = arith.constant 0 : i32
    %c0_i32_1 = arith.constant 0 : i32
    return %c0_i32, %arg0, %c0_i32_0 : i32, i32, i32
  }
  func.func @transform_1(%arg0: i32) -> (i32, i32, i32) {
    %c0_i32 = arith.constant 0 : i32
    %c0_i32_0 = arith.constant 0 : i32
    %c0_i32_1 = arith.constant 0 : i32
    %c0_i32_2 = arith.constant 0 : i32
    return %c0_i32, %c0_i32_0, %c0_i32_1 : i32, i32, i32
  }
  func.func @transform_2(%arg0: i32) -> (i32, i32) {
    %c0_i32 = arith.constant 0 : i32
    %c0_i32_0 = arith.constant 0 : i32
    %c0_i32_1 = arith.constant 0 : i32
    return %c0_i32, %c0_i32_0 : i32, i32
  }
  func.func @transform_3(%arg0: i32) -> (i32, i32) {
    %c0_i32 = arith.constant 0 : i32
    %c0_i32_0 = arith.constant 0 : i32
    %c0_i32_1 = arith.constant 0 : i32
    return %c0_i32, %c0_i32_0 : i32, i32
  }
  func.func @transform_4(%arg0: i32) -> (i32, i32) {
    %c0_i32 = arith.constant 0 : i32
    %c0_i32_0 = arith.constant 0 : i32
    %c0_i32_1 = arith.constant 0 : i32
    return %c0_i32, %c0_i32_0 : i32, i32
  }
  func.func @transform_5(%arg0: i32) -> (i32, i32) {
    %c0_i32 = arith.constant 0 : i32
    %c0_i32_0 = arith.constant 0 : i32
    %c0_i32_1 = arith.constant 0 : i32
    return %c0_i32, %c0_i32_0 : i32, i32
  }
  func.func @transform_6(%arg0: i32) -> (i32, i32) {
    %c0_i32 = arith.constant 0 : i32
    %c0_i32_0 = arith.constant 0 : i32
    %c0_i32_1 = arith.constant 0 : i32
    return %c0_i32, %c0_i32_0 : i32, i32
  }
  func.func @transform_7(%arg0: i32) -> (i32, i32) {
    %c0_i32 = arith.constant 0 : i32
    %c0_i32_0 = arith.constant 0 : i32
    %c0_i32_1 = arith.constant 0 : i32
    return %c0_i32, %c0_i32_0 : i32, i32
  }
  func.func @transform_8(%arg0: i32) -> (i32, i32) {
    %c0_i32 = arith.constant 0 : i32
    %c0_i32_0 = arith.constant 0 : i32
    %c0_i32_1 = arith.constant 0 : i32
    return %c0_i32, %c0_i32_0 : i32, i32
  }
  func.func @transform_9(%arg0: i32) -> (i32, i32) {
    %c0_i32 = arith.constant 0 : i32
    %c0_i32_0 = arith.constant 0 : i32
    %c0_i32_1 = arith.constant 0 : i32
    return %c0_i32, %c0_i32_0 : i32, i32
  }
  func.func @transform_10(%arg0: i32) -> (i32, i32) {
    %c0_i32 = arith.constant 0 : i32
    %c0_i32_0 = arith.constant 0 : i32
    %c0_i32_1 = arith.constant 0 : i32
    return %c0_i32, %c0_i32_0 : i32, i32
  }
  func.func @transform_11(%arg0: i32) -> (i32, i32) {
    %c0_i32 = arith.constant 0 : i32
    %c0_i32_0 = arith.constant 0 : i32
    %c0_i32_1 = arith.constant 0 : i32
    return %c0_i32, %c0_i32_0 : i32, i32
  }
  func.func @transform_12(%arg0: i32) -> (i32, i32) {
    %c0_i32 = arith.constant 0 : i32
    %c0_i32_0 = arith.constant 0 : i32
    %c0_i32_1 = arith.constant 0 : i32
    return %c0_i32, %c0_i32_0 : i32, i32
  }
  func.func @transform_13(%arg0: i32) -> (i32, i32) {
    %c0_i32 = arith.constant 0 : i32
    %c0_i32_0 = arith.constant 0 : i32
    %c0_i32_1 = arith.constant 0 : i32
    return %c0_i32, %c0_i32_0 : i32, i32
  }
  func.func @transform_14(%arg0: i32) -> (i32, i32) {
    %c0_i32 = arith.constant 0 : i32
    %c0_i32_0 = arith.constant 0 : i32
    %c0_i32_1 = arith.constant 0 : i32
    return %c0_i32, %c0_i32_0 : i32, i32
  }
  func.func @transform_15(%arg0: i32) -> (i32, i32, i32) {
    %c0_i32 = arith.constant 0 : i32
    %c0_i32_0 = arith.constant 0 : i32
    %c0_i32_1 = arith.constant 0 : i32
    %c0_i32_2 = arith.constant 0 : i32
    return %c0_i32, %c0_i32_0, %c0_i32_1 : i32, i32, i32
  }
  func.func @transform_16(%arg0: i32) -> (i32, i32) {
    %c0_i32 = arith.constant 0 : i32
    %c0_i32_0 = arith.constant 0 : i32
    %c0_i32_1 = arith.constant 0 : i32
    return %c0_i32, %c0_i32_0 : i32, i32
  }
  func.func @transform_17(%arg0: i32) -> (i32, i32) {
    %c0_i32 = arith.constant 0 : i32
    %c0_i32_0 = arith.constant 0 : i32
    %c0_i32_1 = arith.constant 0 : i32
    return %c0_i32, %c0_i32_0 : i32, i32
  }
  func.func @transform_18(%arg0: i32) -> (i32, i32) {
    %c0_i32 = arith.constant 0 : i32
    %c0_i32_0 = arith.constant 0 : i32
    %c0_i32_1 = arith.constant 0 : i32
    return %c0_i32, %c0_i32_0 : i32, i32
  }
  func.func @transform_19(%arg0: i32) -> (i32, i32, i32) {
    %c0_i32 = arith.constant 0 : i32
    %c0_i32_0 = arith.constant 0 : i32
    %c0_i32_1 = arith.constant 0 : i32
    return %c0_i32, %arg0, %c0_i32_0 : i32, i32, i32
  }
}

</mosaic_0001>

<llo_original>
// kernel: tpu_custom_call.1
$region0: #{tpu_custom_call.1}
  #allocation0 [shape = 'u32[]', space=smem, size = 0x4, offset = 0x4, fixed_abs, tag = 'smem constant byte address 0x4 - core index']
  #allocation1 [shape = 'u32[72,128]{1,0:T(1,128)}', space=vmem, size = 0x9000, scoped, tag = 'internal scratch']
  %s0 = inlined_call_operand.hbm [shape: f32[5,8,32], index: 0, kind: input, shape index: {}]
  %s1 = inlined_call_operand.hbm [shape: f32[5,32,128], index: 1, kind: input, shape index: {}]
  %s2 = inlined_call_operand.hbm [shape: f32[5,128], index: 2, kind: input, shape index: {}]
  %s3 = inlined_call_operand.hbm [shape: f32[128,384], index: 3, kind: input, shape index: {}]
  %s4 = inlined_call_operand.vmem [shape: f32[1,384], index: 4, kind: input, shape index: {}]
  %s5 = inlined_call_operand.hbm [shape: f32[128,128], index: 5, kind: input, shape index: {}]
  %s6 = inlined_call_operand.vmem [shape: f32[1,128], index: 6, kind: input, shape index: {}]
  %s7 = inlined_call_operand.vmem [shape: f32[1,128], index: 7, kind: input, shape index: {}]
  %s8 = inlined_call_operand.vmem [shape: f32[1,128], index: 8, kind: input, shape index: {}]
  %s9 = inlined_call_operand.hbm [shape: bf16[128,2048], index: 9, kind: input, shape index: {}]
  %s10 = inlined_call_operand.hbm [shape: f32[1,2048], index: 10, kind: input, shape index: {}]
  %s11 = inlined_call_operand.hbm [shape: bf16[2048,128], index: 11, kind: input, shape index: {}]
  %s12 = inlined_call_operand.vmem [shape: f32[1,128], index: 12, kind: input, shape index: {}]
  %s13 = inlined_call_operand.hbm [shape: f32[1,128], index: 13, kind: input, shape index: {}]
  %s14 = inlined_call_operand.hbm [shape: f32[1,128], index: 14, kind: input, shape index: {}]
  %s15 = inlined_call_operand.hbm [shape: f32[5,128,128], index: 15, kind: input, shape index: {}]
  %s16 = inlined_call_operand.vmem [shape: f32[5,128], index: 16, kind: input, shape index: {}]
  %s17 = inlined_call_operand.hbm [shape: f32[128,128], index: 17, kind: input, shape index: {}]
  %s18 = inlined_call_operand.vmem [shape: f32[1,128], index: 18, kind: input, shape index: {}]
  %s19 = inlined_call_operand.hbm [shape: f32[5,8,128], index: 19, kind: output, shape index: {}]
  %s20 = sld [smem:[#allocation0]]
  $region134: #{tpu_custom_call.1} parent=0
    _
  %s22 = ssub.s32 1, %s20
  %s23 = scalar_select 0, %s22, %s20
  $region1: #{tpu_custom_call.1} parent=0
    #allocation2 [shape = 'u8[20480]{0}', space=vmem, size = 0x5000, scoped, tag = 'input window, operand 0, single buffered']
    #allocation3 [shape = 's32[1]{0}', space=sflag, size = 0x4, scoped, tag = 'scoped memory for tpu_custom_call.1']
    #allocation4 [shape = 's32[1]{0}', space=sflag, size = 0x4, scoped, tag = 'scoped memory for tpu_custom_call.1']
    #allocation5 [shape = 'u8[81920]{0}', space=vmem, size = 0x14000, scoped, tag = 'input window, operand 1, single buffered']
    #allocation6 [shape = 's32[1]{0}', space=sflag, size = 0x4, scoped, tag = 'scoped memory for tpu_custom_call.1']
    #allocation7 [shape = 'u8[4096]{0}', space=vmem, size = 0x1000, scoped, tag = 'input window, operand 2, single buffered']
    #allocation8 [shape = 'u8[196608]{0}', space=vmem, size = 0x30000, scoped, tag = 'input window, operand 3, single buffered']
    #allocation9 [shape = 's32[1]{0}', space=sflag, size = 0x4, scoped, tag = 'scoped memory for tpu_custom_call.1']
    #allocation10 [shape = 'u8[65536]{0}', space=vmem, size = 0x10000, scoped, tag = 'input window, operand 5, single buffered']
    #allocation11 [shape = 'u8[524288]{0}', space=vmem, size = 0x80000, scoped, tag = 'input window, operand 9, single buffered']
    #allocation12 [shape = 's32[1]{0}', space=sflag, size = 0x4, scoped, tag = 'scoped memory for tpu_custom_call.1']
    #allocation13 [shape = 'u8[8192]{0}', space=vmem, size = 0x2000, scoped, tag = 'input window, operand 10, single buffered']
    #allocation14 [shape = 'u8[524288]{0}', space=vmem, size = 0x80000, scoped, tag = 'input window, operand 11, single buffered']
    #allocation15 [shape = 's32[1]{0}', space=sflag, size = 0x4, scoped, tag = 'scoped memory for tpu_custom_call.1']
    #allocation16 [shape = 'u8[512]{0}', space=vmem, size = 0x400, scoped, tag = 'input window, operand 13, single buffered']
    #allocation17 [shape = 'u8[512]{0}', space=vmem, size = 0x400, scoped, tag = 'input window, operand 14, single buffered']
    #allocation18 [shape = 's32[1]{0}', space=sflag, size = 0x4, scoped, tag = 'scoped memory for tpu_custom_call.1']
    #allocation19 [shape = 'u8[327680]{0}', space=vmem, size = 0x50000, scoped, tag = 'input window, operand 15, single buffered']
    #allocation20 [shape = 'u8[65536]{0}', space=vmem, size = 0x10000, scoped, tag = 'input window, operand 17, single buffered']
    #allocation21 [shape = 's32[1]{0}', space=sflag, size = 0x4, scoped, tag = 'scoped memory for tpu_custom_call.1']
    #allocation22 [shape = 'u8[20480]{0}', space=vmem, size = 0x5000, scoped, tag = 'output window, operand 0, single buffered']
    %24 = vsyncpa [#allocation3], 0
    %25 = vsyncpa [#allocation6], 0
    %26 = vsyncpa [#allocation9], 0
    %27 = vsyncpa [#allocation12], 0
    %28 = vsyncpa [#allocation15], 0
    %29 = vsyncpa [#allocation18], 0
    %30 = vsyncpa [#allocation21], 0
    %31 = vsyncpa [#allocation4], 0
    // Predicated region
    $region2: #{tpu_custom_call.1} parent=1 // pred_check
      _
    $region3: #{tpu_custom_call.1} parent=1 // pred_check_branch
      %33 = sbr.rel (0) target = $region5
    $region4: #{tpu_custom_call.1} parent=1 // pred_region
      %35 = vsyncadd [#allocation3], 0
      %s36 = sshll.u32 %s0, 4
      %s37 = int_to_ptr.hbm [resolvable:$true] %s36
      %s38 = sshll.u32 [#allocation2], 4
      %s39 = int_to_ptr.vmem [resolvable:$true] %s38
      %44 = dma.hbm_to_vmem [thread:$0]  %s37, 640, %s39, [#allocation3], 128, 128, 8
    $region5: #{tpu_custom_call.1} parent=1 // pred_fallthru
      _
    // Predicated region
    $region6: #{tpu_custom_call.1} parent=1 // pred_check
      _
    $region7: #{tpu_custom_call.1} parent=1 // pred_check_branch
      %46 = sbr.rel (0) target = $region9
    $region8: #{tpu_custom_call.1} parent=1 // pred_region
      %48 = vsyncadd [#allocation6], 0
      %s49 = sshll.u32 %s1, 4
      %s50 = int_to_ptr.hbm [resolvable:$true] %s49
      %s51 = sshll.u32 [#allocation5], 4
      %s52 = int_to_ptr.vmem [resolvable:$true] %s51
      %57 = dma.hbm_to_vmem [thread:$0]  %s50, 2560, %s52, [#allocation6], 128, 128, 8
    $region9: #{tpu_custom_call.1} parent=1 // pred_fallthru
      _
    // Predicated region
    $region10: #{tpu_custom_call.1} parent=1 // pred_check
      _
    $region11: #{tpu_custom_call.1} parent=1 // pred_check_branch
      %59 = sbr.rel (0) target = $region13
    $region12: #{tpu_custom_call.1} parent=1 // pred_region
      %61 = vsyncadd [#allocation6], 0
      %s63 = sshll.u32 %s2, 4
      %s64 = int_to_ptr.hbm [resolvable:$true] %s63
      %s65 = sshll.u32 [#allocation7], 4
      %s66 = int_to_ptr.vmem [resolvable:$true] %s65
      %68 = dma.hbm_to_vmem [thread:$0]  %s64, 128, %s66, [#allocation6]
    $region13: #{tpu_custom_call.1} parent=1 // pred_fallthru
      _
    // Predicated region
    $region14: #{tpu_custom_call.1} parent=1 // pred_check
      _
    $region15: #{tpu_custom_call.1} parent=1 // pred_check_branch
      %70 = sbr.rel (0) target = $region17
    $region16: #{tpu_custom_call.1} parent=1 // pred_region
      %72 = vsyncadd [#allocation9], 0
      %s73 = sshll.u32 %s3, 4
      %s74 = int_to_ptr.hbm [resolvable:$true] %s73
      %s75 = sshll.u32 [#allocation8], 4
      %s76 = int_to_ptr.vmem [resolvable:$true] %s75
      %81 = dma.hbm_to_vmem [thread:$0]  %s74, 6144, %s76, [#allocation9], 384, 384, 24
    $region17: #{tpu_custom_call.1} parent=1 // pred_fallthru
      _
    // Predicated region
    $region18: #{tpu_custom_call.1} parent=1 // pred_check
      _
    $region19: #{tpu_custom_call.1} parent=1 // pred_check_branch
      %83 = sbr.rel (0) target = $region21
    $region20: #{tpu_custom_call.1} parent=1 // pred_region
      _
    $region21: #{tpu_custom_call.1} parent=1 // pred_fallthru
      _
    // Predicated region
    $region22: #{tpu_custom_call.1} parent=1 // pred_check
      _
    $region23: #{tpu_custom_call.1} parent=1 // pred_check_branch
      %85 = sbr.rel (0) target = $region25
    $region24: #{tpu_custom_call.1} parent=1 // pred_region
      %87 = vsyncadd [#allocation9], 0
      %s88 = sshll.u32 %s5, 4
      %s89 = int_to_ptr.hbm [resolvable:$true] %s88
      %s90 = sshll.u32 [#allocation10], 4
      %s91 = int_to_ptr.vmem [resolvable:$true] %s90
      %96 = dma.hbm_to_vmem [thread:$0]  %s89, 2048, %s91, [#allocation9], 128, 128, 8
    $region25: #{tpu_custom_call.1} parent=1 // pred_fallthru
      _
    // Predicated region
    $region26: #{tpu_custom_call.1} parent=1 // pred_check
      _
    $region27: #{tpu_custom_call.1} parent=1 // pred_check_branch
      %98 = sbr.rel (0) target = $region29
    $region28: #{tpu_custom_call.1} parent=1 // pred_region
      _
    $region29: #{tpu_custom_call.1} parent=1 // pred_fallthru
      _
    // Predicated region
    $region30: #{tpu_custom_call.1} parent=1 // pred_check
      _
    $region31: #{tpu_custom_call.1} parent=1 // pred_check_branch
      %100 = sbr.rel (0) target = $region33
    $region32: #{tpu_custom_call.1} parent=1 // pred_region
      _
    $region33: #{tpu_custom_call.1} parent=1 // pred_fallthru
      _
    // Predicated region
    $region34: #{tpu_custom_call.1} parent=1 // pred_check
      _
    $region35: #{tpu_custom_call.1} parent=1 // pred_check_branch
      %102 = sbr.rel (0) target = $region37
    $region36: #{tpu_custom_call.1} parent=1 // pred_region
      _
    $region37: #{tpu_custom_call.1} parent=1 // pred_fallthru
      _
    // Predicated region
    $region38: #{tpu_custom_call.1} parent=1 // pred_check
      _
    $region39: #{tpu_custom_call.1} parent=1 // pred_check_branch
      %104 = sbr.rel (0) target = $region41
    $region40: #{tpu_custom_call.1} parent=1 // pred_region
      %106 = vsyncadd [#allocation12], 0
      %s107 = sshll.u32 %s9, 4
      %s108 = int_to_ptr.hbm [resolvable:$true] %s107
      %s109 = sshll.u32 [#allocation11], 4
      %s110 = int_to_ptr.vmem [resolvable:$true] %s109
      %115 = dma.hbm_to_vmem [thread:$0]  %s108, 16384, %s110, [#allocation12], 1024, 1024, 64
    $region41: #{tpu_custom_call.1} parent=1 // pred_fallthru
      _
    // Predicated region
    $region42: #{tpu_custom_call.1} parent=1 // pred_check
      _
    $region43: #{tpu_custom_call.1} parent=1 // pred_check_branch
      %117 = sbr.rel (0) target = $region45
    $region44: #{tpu_custom_call.1} parent=1 // pred_region
      %119 = vsyncadd [#allocation12], 0
      %s121 = sshll.u32 %s10, 4
      %s122 = int_to_ptr.hbm [resolvable:$true] %s121
      %s123 = sshll.u32 [#allocation13], 4
      %s124 = int_to_ptr.vmem [resolvable:$true] %s123
      %126 = dma.hbm_to_vmem [thread:$0]  %s122, 256, %s124, [#allocation12]
    $region45: #{tpu_custom_call.1} parent=1 // pred_fallthru
      _
    // Predicated region
    $region46: #{tpu_custom_call.1} parent=1 // pred_check
      _
    $region47: #{tpu_custom_call.1} parent=1 // pred_check_branch
      %128 = sbr.rel (0) target = $region49
    $region48: #{tpu_custom_call.1} parent=1 // pred_region
      %130 = vsyncadd [#allocation15], 0
      %s131 = sshll.u32 %s11, 4
      %s132 = int_to_ptr.hbm [resolvable:$true] %s131
      %s133 = sshll.u32 [#allocation14], 4
      %s134 = int_to_ptr.vmem [resolvable:$true] %s133
      %139 = dma.hbm_to_vmem [thread:$0]  %s132, 16384, %s134, [#allocation15], 64, 64, 4
    $region49: #{tpu_custom_call.1} parent=1 // pred_fallthru
      _
    // Predicated region
    $region50: #{tpu_custom_call.1} parent=1 // pred_check
      _
    $region51: #{tpu_custom_call.1} parent=1 // pred_check_branch
      %141 = sbr.rel (0) target = $region53
    $region52: #{tpu_custom_call.1} parent=1 // pred_region
      _
    $region53: #{tpu_custom_call.1} parent=1 // pred_fallthru
      _
    // Predicated region
    $region54: #{tpu_custom_call.1} parent=1 // pred_check
      _
    $region55: #{tpu_custom_call.1} parent=1 // pred_check_branch
      %143 = sbr.rel (0) target = $region57
    $region56: #{tpu_custom_call.1} parent=1 // pred_region
      %145 = vsyncadd [#allocation15], 0
      %s147 = sshll.u32 %s13, 4
      %s148 = int_to_ptr.hbm [resolvable:$true] %s147
      %s149 = sshll.u32 [#allocation16], 4
      %s150 = int_to_ptr.vmem [resolvable:$true] %s149
      %152 = dma.hbm_to_vmem [thread:$0]  %s148, 16, %s150, [#allocation15]
    $region57: #{tpu_custom_call.1} parent=1 // pred_fallthru
      _
    // Predicated region
    $region58: #{tpu_custom_call.1} parent=1 // pred_check
      _
    $region59: #{tpu_custom_call.1} parent=1 // pred_check_branch
      %154 = sbr.rel (0) target = $region61
    $region60: #{tpu_custom_call.1} parent=1 // pred_region
      %156 = vsyncadd [#allocation18], 0
      %s158 = sshll.u32 %s14, 4
      %s159 = int_to_ptr.hbm [resolvable:$true] %s158
      %s160 = sshll.u32 [#allocation17], 4
      %s161 = int_to_ptr.vmem [resolvable:$true] %s160
      %163 = dma.hbm_to_vmem [thread:$0]  %s159, 16, %s161, [#allocation18]
    $region61: #{tpu_custom_call.1} parent=1 // pred_fallthru
      _
    // Predicated region
    $region62: #{tpu_custom_call.1} parent=1 // pred_check
      _
    $region63: #{tpu_custom_call.1} parent=1 // pred_check_branch
      %165 = sbr.rel (0) target = $region65
    $region64: #{tpu_custom_call.1} parent=1 // pred_region
      %167 = vsyncadd [#allocation18], 0
      %s168 = sshll.u32 %s15, 4
      %s169 = int_to_ptr.hbm [resolvable:$true] %s168
      %s170 = sshll.u32 [#allocation19], 4
      %s171 = int_to_ptr.vmem [resolvable:$true] %s170
      %176 = dma.hbm_to_vmem [thread:$0]  %s169, 10240, %s171, [#allocation18], 128, 128, 8
    $region65: #{tpu_custom_call.1} parent=1 // pred_fallthru
      _
    // Predicated region
    $region66: #{tpu_custom_call.1} parent=1 // pred_check
      _
    $region67: #{tpu_custom_call.1} parent=1 // pred_check_branch
      %178 = sbr.rel (0) target = $region69
    $region68: #{tpu_custom_call.1} parent=1 // pred_region
      _
    $region69: #{tpu_custom_call.1} parent=1 // pred_fallthru
      _
    // Predicated region
    $region70: #{tpu_custom_call.1} parent=1 // pred_check
      _
    $region71: #{tpu_custom_call.1} parent=1 // pred_check_branch
      %180 = sbr.rel (0) target = $region73
    $region72: #{tpu_custom_call.1} parent=1 // pred_region
      %182 = vsyncadd [#allocation21], 0
      %s183 = sshll.u32 %s17, 4
      %s184 = int_to_ptr.hbm [resolvable:$true] %s183
      %s185 = sshll.u32 [#allocation20], 4
      %s186 = int_to_ptr.vmem [resolvable:$true] %s185
      %191 = dma.hbm_to_vmem [thread:$0]  %s184, 2048, %s186, [#allocation21], 128, 128, 8
    $region73: #{tpu_custom_call.1} parent=1 // pred_fallthru
      _
    // Predicated region
    $region74: #{tpu_custom_call.1} parent=1 // pred_check
      _
    $region75: #{tpu_custom_call.1} parent=1 // pred_check_branch
      %193 = sbr.rel (0) target = $region77
    $region76: #{tpu_custom_call.1} parent=1 // pred_region
      _
    $region77: #{tpu_custom_call.1} parent=1 // pred_fallthru
      _
    // Predicated region
    $region78: #{tpu_custom_call.1} parent=1 // pred_check
      _
    $region79: #{tpu_custom_call.1} parent=1 // pred_check_branch
      %195 = sbr.rel (0) target = $region81
    $region80: #{tpu_custom_call.1} parent=1 // pred_region
      %197 = dma.done [#allocation3], 640
    $region81: #{tpu_custom_call.1} parent=1 // pred_fallthru
      _
    // Predicated region
    $region82: #{tpu_custom_call.1} parent=1 // pred_check
      _
    $region83: #{tpu_custom_call.1} parent=1 // pred_check_branch
      %199 = sbr.rel (0) target = $region85
    $region84: #{tpu_custom_call.1} parent=1 // pred_region
      %201 = dma.done [#allocation6], 2560
    $region85: #{tpu_custom_call.1} parent=1 // pred_fallthru
      _
    // Predicated region
    $region86: #{tpu_custom_call.1} parent=1 // pred_check
      _
    $region87: #{tpu_custom_call.1} parent=1 // pred_check_branch
      %203 = sbr.rel (0) target = $region89
    $region88: #{tpu_custom_call.1} parent=1 // pred_region
      %205 = dma.done [#allocation6], 128
    $region89: #{tpu_custom_call.1} parent=1 // pred_fallthru
      _
    // Predicated region
    $region90: #{tpu_custom_call.1} parent=1 // pred_check
      _
    $region91: #{tpu_custom_call.1} parent=1 // pred_check_branch
      %207 = sbr.rel (0) target = $region93
    $region92: #{tpu_custom_call.1} parent=1 // pred_region
      %209 = dma.done [#allocation9], 6144
    $region93: #{tpu_custom_call.1} parent=1 // pred_fallthru
      _
    // Predicated region
    $region94: #{tpu_custom_call.1} parent=1 // pred_check
      _
    $region95: #{tpu_custom_call.1} parent=1 // pred_check_branch
      %211 = sbr.rel (0) target = $region97
    $region96: #{tpu_custom_call.1} parent=1 // pred_region
      %213 = dma.done [#allocation9], 2048
    $region97: #{tpu_custom_call.1} parent=1 // pred_fallthru
      _
    // Predicated region
    $region98: #{tpu_custom_call.1} parent=1 // pred_check
      _
    $region99: #{tpu_custom_call.1} parent=1 // pred_check_branch
      %215 = sbr.rel (0) target = $region101
    $region100: #{tpu_custom_call.1} parent=1 // pred_region
      %217 = dma.done [#allocation12], 16384
    $region101: #{tpu_custom_call.1} parent=1 // pred_fallthru
      _
    // Predicated region
    $region102: #{tpu_custom_call.1} parent=1 // pred_check
      _
    $region103: #{tpu_custom_call.1} parent=1 // pred_check_branch
      %219 = sbr.rel (0) target = $region105
    $region104: #{tpu_custom_call.1} parent=1 // pred_region
      %221 = dma.done [#allocation12], 256
    $region105: #{tpu_custom_call.1} parent=1 // pred_fallthru
      _
    // Predicated region
    $region106: #{tpu_custom_call.1} parent=1 // pred_check
      _
    $region107: #{tpu_custom_call.1} parent=1 // pred_check_branch
      %223 = sbr.rel (0) target = $region109
    $region108: #{tpu_custom_call.1} parent=1 // pred_region
      %225 = dma.done [#allocation15], 16384
    $region109: #{tpu_custom_call.1} parent=1 // pred_fallthru
      _
    // Predicated region
    $region110: #{tpu_custom_call.1} parent=1 // pred_check
      _
    $region111: #{tpu_custom_call.1} parent=1 // pred_check_branch
      %227 = sbr.rel (0) target = $region113
    $region112: #{tpu_custom_call.1} parent=1 // pred_region
      %229 = dma.done [#allocation15], 16
    $region113: #{tpu_custom_call.1} parent=1 // pred_fallthru
      _
    // Predicated region
    $region114: #{tpu_custom_call.1} parent=1 // pred_check
      _
    $region115: #{tpu_custom_call.1} parent=1 // pred_check_branch
      %231 = sbr.rel (0) target = $region117
    $region116: #{tpu_custom_call.1} parent=1 // pred_region
      %233 = dma.done [#allocation18], 16
    $region117: #{tpu_custom_call.1} parent=1 // pred_fallthru
      _
    // Predicated region
    $region118: #{tpu_custom_call.1} parent=1 // pred_check
      _
    $region119: #{tpu_custom_call.1} parent=1 // pred_check_branch
      %235 = sbr.rel (0) target = $region121
    $region120: #{tpu_custom_call.1} parent=1 // pred_region
      %237 = dma.done [#allocation18], 10240
    $region121: #{tpu_custom_call.1} parent=1 // pred_fallthru
      _
    // Predicated region
    $region122: #{tpu_custom_call.1} parent=1 // pred_check
      _
    $region123: #{tpu_custom_call.1} parent=1 // pred_check_branch
      %239 = sbr.rel (0) target = $region125
    $region124: #{tpu_custom_call.1} parent=1 // pred_region
      %241 = dma.done [#allocation21], 2048
    $region125: #{tpu_custom_call.1} parent=1 // pred_fallthru
      _
    %v242 = vld [vmem:[#allocation2] sm:$0xff]
    %v243 = vld [vmem:[#allocation5] sm:$0xff]
    %v244 = vld [vmem:[#allocation5 + $0x8] sm:$0xff]
    %v245 = vld [vmem:[#allocation5 + $0x10] sm:$0xff]
    %v246 = vld [vmem:[#allocation5 + $0x18] sm:$0xff]
    %v247 = vld [vmem:[#allocation7] sm:$0x1]
    %v248 = vperm.slane %v247, 0
    %vm249 = vcmask 261120
    %v251 = vsel %vm249, %v242, 0
    %253 = vmatpush.msra.mxu0 0.0
    %254 = vmatpush.msra.mxu0 0.0
    %255 = vmatpush.msra.mxu0 0.0
    %256 = vmatpush.msra.mxu0 0.0
    %257 = vmatpush.msra.mxu0 0.0
    %258 = vmatpush.msra.mxu0 0.0
    %259 = vmatpush.msra.mxu0 0.0
    %260 = vmatpush.msra.mxu0 0.0
    %261 = vmatpush.msra.mxu0 0.0
    %262 = vmatpush.msra.mxu0 0.0
    %263 = vmatpush.msra.mxu0 0.0
    %264 = vmatpush.msra.mxu0 0.0
    %265 = vmatpush.msra.mxu0 %v246
    %266 = vmatpush.msra.mxu0 %v245
    %267 = vmatpush.msra.mxu0 %v244
    %268 = vmatpush.msra.mxu0 %v243
    %269 = vmatmul.f32.gmra.mxu0 %v251
    %v270 = vpop.f32.mrf.mxu0
    %v271 = vadd.f32 %v248, %v270
    %272 = vdwg.mxu0
    %v273 = vmax.f32 %v271, 0.0
    %s274 = scalar_lea.vmem [#allocation2], 8
    %v275 = vld [vmem:[%s274] sm:$0xff]
    %s276 = scalar_lea.vmem [#allocation5], 32
    %v277 = vld [vmem:[%s276] sm:$0xff]
    %v278 = vld [vmem:[%s276 + $0x8] sm:$0xff]
    %v279 = vld [vmem:[%s276 + $0x10] sm:$0xff]
    %v280 = vld [vmem:[%s276 + $0x18] sm:$0xff]
    %v281 = vld [vmem:[#allocation7 + $0x1] sm:$0x1]
    %v282 = vperm.slane %v281, 0
    %v284 = vsel %vm249, %v275, 0
    %286 = vmatpush.msra.mxu0 0.0
    %287 = vmatpush.msra.mxu0 0.0
    %288 = vmatpush.msra.mxu0 0.0
    %289 = vmatpush.msra.mxu0 0.0
    %290 = vmatpush.msra.mxu0 0.0
    %291 = vmatpush.msra.mxu0 0.0
    %292 = vmatpush.msra.mxu0 0.0
    %293 = vmatpush.msra.mxu0 0.0
    %294 = vmatpush.msra.mxu0 0.0
    %295 = vmatpush.msra.mxu0 0.0
    %296 = vmatpush.msra.mxu0 0.0
    %297 = vmatpush.msra.mxu0 0.0
    %298 = vmatpush.msra.mxu0 %v280
    %299 = vmatpush.msra.mxu0 %v279
    %300 = vmatpush.msra.mxu0 %v278
    %301 = vmatpush.msra.mxu0 %v277
    %302 = vmatmul.f32.gmra.mxu0 %v284
    %v303 = vpop.f32.mrf.mxu0
    %v304 = vadd.f32 %v282, %v303
    %305 = vdwg.mxu0
    %v306 = vmax.f32 %v304, 0.0
    %s307 = scalar_lea.vmem [#allocation2], 16
    %v308 = vld [vmem:[%s307] sm:$0xff]
    %s309 = scalar_lea.vmem [#allocation5], 64
    %v310 = vld [vmem:[%s309] sm:$0xff]
    %v311 = vld [vmem:[%s309 + $0x8] sm:$0xff]
    %v312 = vld [vmem:[%s309 + $0x10] sm:$0xff]
    %v313 = vld [vmem:[%s309 + $0x18] sm:$0xff]
    %v314 = vld [vmem:[#allocation7 + $0x2] sm:$0x1]
    %v315 = vperm.slane %v314, 0
    %v317 = vsel %vm249, %v308, 0
    %319 = vmatpush.msra.mxu0 0.0
    %320 = vmatpush.msra.mxu0 0.0
    %321 = vmatpush.msra.mxu0 0.0
    %322 = vmatpush.msra.mxu0 0.0
    %323 = vmatpush.msra.mxu0 0.0
    %324 = vmatpush.msra.mxu0 0.0
    %325 = vmatpush.msra.mxu0 0.0
    %326 = vmatpush.msra.mxu0 0.0
    %327 = vmatpush.msra.mxu0 0.0
    %328 = vmatpush.msra.mxu0 0.0
    %329 = vmatpush.msra.mxu0 0.0
    %330 = vmatpush.msra.mxu0 0.0
    %331 = vmatpush.msra.mxu0 %v313
    %332 = vmatpush.msra.mxu0 %v312
    %333 = vmatpush.msra.mxu0 %v311
    %334 = vmatpush.msra.mxu0 %v310
    %335 = vmatmul.f32.gmra.mxu0 %v317
    %v336 = vpop.f32.mrf.mxu0
    %v337 = vadd.f32 %v315, %v336
    %338 = vdwg.mxu0
    %v339 = vmax.f32 %v337, 0.0
    %s340 = scalar_lea.vmem [#allocation2], 24
    %v341 = vld [vmem:[%s340] sm:$0xff]
    %s342 = scalar_lea.vmem [#allocation5], 96
    %v343 = vld [vmem:[%s342] sm:$0xff]
    %v344 = vld [vmem:[%s342 + $0x8] sm:$0xff]
    %v345 = vld [vmem:[%s342 + $0x10] sm:$0xff]
    %v346 = vld [vmem:[%s342 + $0x18] sm:$0xff]
    %v347 = vld [vmem:[#allocation7 + $0x3] sm:$0x1]
    %v348 = vperm.slane %v347, 0
    %v350 = vsel %vm249, %v341, 0
    %352 = vmatpush.msra.mxu0 0.0
    %353 = vmatpush.msra.mxu0 0.0
    %354 = vmatpush.msra.mxu0 0.0
    %355 = vmatpush.msra.mxu0 0.0
    %356 = vmatpush.msra.mxu0 0.0
    %357 = vmatpush.msra.mxu0 0.0
    %358 = vmatpush.msra.mxu0 0.0
    %359 = vmatpush.msra.mxu0 0.0
    %360 = vmatpush.msra.mxu0 0.0
    %361 = vmatpush.msra.mxu0 0.0
    %362 = vmatpush.msra.mxu0 0.0
    %363 = vmatpush.msra.mxu0 0.0
    %364 = vmatpush.msra.mxu0 %v346
    %365 = vmatpush.msra.mxu0 %v345
    %366 = vmatpush.msra.mxu0 %v344
    %367 = vmatpush.msra.mxu0 %v343
    %368 = vmatmul.f32.gmra.mxu0 %v350
    %v369 = vpop.f32.mrf.mxu0
    %v370 = vadd.f32 %v348, %v369
    %371 = vdwg.mxu0
    %v372 = vmax.f32 %v370, 0.0
    %s373 = scalar_lea.vmem [#allocation2], 32
    %v374 = vld [vmem:[%s373] sm:$0xff]
    %s375 = scalar_lea.vmem [#allocation5], 128
    %v376 = vld [vmem:[%s375] sm:$0xff]
    %v377 = vld [vmem:[%s375 + $0x8] sm:$0xff]
    %v378 = vld [vmem:[%s375 + $0x10] sm:$0xff]
    %v379 = vld [vmem:[%s375 + $0x18] sm:$0xff]
    %v380 = vld [vmem:[#allocation7 + $0x4] sm:$0x1]
    %v381 = vperm.slane %v380, 0
    %v383 = vsel %vm249, %v374, 0
    %385 = vmatpush.msra.mxu0 0.0
    %386 = vmatpush.msra.mxu0 0.0
    %387 = vmatpush.msra.mxu0 0.0
    %388 = vmatpush.msra.mxu0 0.0
    %389 = vmatpush.msra.mxu0 0.0
    %390 = vmatpush.msra.mxu0 0.0
    %391 = vmatpush.msra.mxu0 0.0
    %392 = vmatpush.msra.mxu0 0.0
    %393 = vmatpush.msra.mxu0 0.0
    %394 = vmatpush.msra.mxu0 0.0
    %395 = vmatpush.msra.mxu0 0.0
    %396 = vmatpush.msra.mxu0 0.0
    %397 = vmatpush.msra.mxu0 %v379
    %398 = vmatpush.msra.mxu0 %v378
    %399 = vmatpush.msra.mxu0 %v377
    %400 = vmatpush.msra.mxu0 %v376
    %401 = vmatmul.f32.gmra.mxu0 %v383
    %v402 = vpop.f32.mrf.mxu0
    %v403 = vadd.f32 %v381, %v402
    %404 = vdwg.mxu0
    %v405 = vmax.f32 %v403, 0.0
    %v406 = vld [vmem:[#allocation8] sm:$0xff]
    %v407 = vld [vmem:[#allocation8 + $0x8] sm:$0xff]
    %v408 = vld [vmem:[#allocation8 + $0x10] sm:$0xff]
    %v409 = vld [vmem:[#allocation8 + $0x18] sm:$0xff]
    %v410 = vld [vmem:[#allocation8 + $0x20] sm:$0xff]
    %v411 = vld [vmem:[#allocation8 + $0x28] sm:$0xff]
    %v412 = vld [vmem:[#allocation8 + $0x30] sm:$0xff]
    %v413 = vld [vmem:[#allocation8 + $0x38] sm:$0xff]
    %v414 = vld [vmem:[#allocation8 + $0x40] sm:$0xff]
    %v415 = vld [vmem:[#allocation8 + $0x48] sm:$0xff]
    %v416 = vld [vmem:[#allocation8 + $0x50] sm:$0xff]
    %v417 = vld [vmem:[#allocation8 + $0x58] sm:$0xff]
    %v418 = vld [vmem:[#allocation8 + $0x60] sm:$0xff]
    %v419 = vld [vmem:[#allocation8 + $0x68] sm:$0xff]
    %v420 = vld [vmem:[#allocation8 + $0x70] sm:$0xff]
    %v421 = vld [vmem:[#allocation8 + $0x78] sm:$0xff]
    %v422 = vld [vmem:[#allocation8 + $0x80] sm:$0xff]
    %v423 = vld [vmem:[#allocation8 + $0x88] sm:$0xff]
    %v424 = vld [vmem:[#allocation8 + $0x90] sm:$0xff]
    %v425 = vld [vmem:[#allocation8 + $0x98] sm:$0xff]
    %v426 = vld [vmem:[#allocation8 + $0xa0] sm:$0xff]
    %v427 = vld [vmem:[#allocation8 + $0xa8] sm:$0xff]
    %v428 = vld [vmem:[#allocation8 + $0xb0] sm:$0xff]
    %v429 = vld [vmem:[#allocation8 + $0xb8] sm:$0xff]
    %v430 = vld [vmem:[#allocation8 + $0xc0] sm:$0xff]
    %v431 = vld [vmem:[#allocation8 + $0xc8] sm:$0xff]
    %v432 = vld [vmem:[#allocation8 + $0xd0] sm:$0xff]
    %v433 = vld [vmem:[#allocation8 + $0xd8] sm:$0xff]
    %v434 = vld [vmem:[#allocation8 + $0xe0] sm:$0xff]
    %v435 = vld [vmem:[#allocation8 + $0xe8] sm:$0xff]
    %v436 = vld [vmem:[#allocation8 + $0xf0] sm:$0xff]
    %v437 = vld [vmem:[#allocation8 + $0xf8] sm:$0xff]
    %v438 = vld [vmem:[#allocation8 + $0x100] sm:$0xff]
    %v439 = vld [vmem:[#allocation8 + $0x108] sm:$0xff]
    %v440 = vld [vmem:[#allocation8 + $0x110] sm:$0xff]
    %v441 = vld [vmem:[#allocation8 + $0x118] sm:$0xff]
    %v442 = vld [vmem:[#allocation8 + $0x120] sm:$0xff]
    %v443 = vld [vmem:[#allocation8 + $0x128] sm:$0xff]
    %v444 = vld [vmem:[#allocation8 + $0x130] sm:$0xff]
    %v445 = vld [vmem:[#allocation8 + $0x138] sm:$0xff]
    %v446 = vld [vmem:[#allocation8 + $0x140] sm:$0xff]
    %v447 = vld [vmem:[#allocation8 + $0x148] sm:$0xff]
    %v448 = vld [vmem:[#allocation8 + $0x150] sm:$0xff]
    %v449 = vld [vmem:[#allocation8 + $0x158] sm:$0xff]
    %v450 = vld [vmem:[#allocation8 + $0x160] sm:$0xff]
    %v451 = vld [vmem:[#allocation8 + $0x168] sm:$0xff]
    %v452 = vld [vmem:[#allocation8 + $0x170] sm:$0xff]
    %v453 = vld [vmem:[#allocation8 + $0x178] sm:$0xff]
    %v454 = vld [vmem:[%s4] sm:$0x7]
    %v456 = vperm.slane %v454, 0
    %v457 = vperm.slane %v454, 1
    %v458 = vperm.slane %v454, 2
    %462 = vmatpush.msra.mxu0 %v451
    %463 = vmatpush.msra.mxu0 %v448
    %464 = vmatpush.msra.mxu0 %v445
    %465 = vmatpush.msra.mxu0 %v442
    %466 = vmatpush.msra.mxu0 %v439
    %467 = vmatpush.msra.mxu0 %v436
    %468 = vmatpush.msra.mxu0 %v433
    %469 = vmatpush.msra.mxu0 %v430
    %470 = vmatpush.msra.mxu0 %v427
    %471 = vmatpush.msra.mxu0 %v424
    %472 = vmatpush.msra.mxu0 %v421
    %473 = vmatpush.msra.mxu0 %v418
    %474 = vmatpush.msra.mxu0 %v415
    %475 = vmatpush.msra.mxu0 %v412
    %476 = vmatpush.msra.mxu0 %v409
    %477 = vmatpush.msra.mxu0 %v406
    %478 = vmatmul.f32.gmra.mxu0 %v273
    %v479 = vpop.f32.mrf.mxu0
    %v480 = vadd.f32 %v456, %v479
    %481 = vmatmul.f32.gmra.mxu0 %v306
    %v482 = vpop.f32.mrf.mxu0
    %v483 = vadd.f32 %v456, %v482
    %484 = vmatmul.f32.gmra.mxu0 %v339
    %v485 = vpop.f32.mrf.mxu0
    %v486 = vadd.f32 %v456, %v485
    %487 = vmatmul.f32.gmra.mxu0 %v372
    %v488 = vpop.f32.mrf.mxu0
    %v489 = vadd.f32 %v456, %v488
    %490 = vmatmul.f32.gmra.mxu0 %v405
    %v491 = vpop.f32.mrf.mxu0
    %v492 = vadd.f32 %v456, %v491
    %493 = vdwg.mxu0
    %494 = vmatpush.msra.mxu0 %v452
    %495 = vmatpush.msra.mxu0 %v449
    %496 = vmatpush.msra.mxu0 %v446
    %497 = vmatpush.msra.mxu0 %v443
    %498 = vmatpush.msra.mxu0 %v440
    %499 = vmatpush.msra.mxu0 %v437
    %500 = vmatpush.msra.mxu0 %v434
    %501 = vmatpush.msra.mxu0 %v431
    %502 = vmatpush.msra.mxu0 %v428
    %503 = vmatpush.msra.mxu0 %v425
    %504 = vmatpush.msra.mxu0 %v422
    %505 = vmatpush.msra.mxu0 %v419
    %506 = vmatpush.msra.mxu0 %v416
    %507 = vmatpush.msra.mxu0 %v413
    %508 = vmatpush.msra.mxu0 %v410
    %509 = vmatpush.msra.mxu0 %v407
    %510 = vmatmul.f32.gmra.mxu0 %v273
    %v511 = vpop.f32.mrf.mxu0
    %v512 = vadd.f32 %v457, %v511
    %513 = vmatmul.f32.gmra.mxu0 %v306
    %v514 = vpop.f32.mrf.mxu0
    %v515 = vadd.f32 %v457, %v514
    %516 = vmatmul.f32.gmra.mxu0 %v339
    %v517 = vpop.f32.mrf.mxu0
    %v518 = vadd.f32 %v457, %v517
    %519 = vmatmul.f32.gmra.mxu0 %v372
    %v520 = vpop.f32.mrf.mxu0
    %v521 = vadd.f32 %v457, %v520
    %522 = vmatmul.f32.gmra.mxu0 %v405
    %v523 = vpop.f32.mrf.mxu0
    %v524 = vadd.f32 %v457, %v523
    %525 = vdwg.mxu0
    %526 = vmatpush.msra.mxu0 %v453
    %527 = vmatpush.msra.mxu0 %v450
    %528 = vmatpush.msra.mxu0 %v447
    %529 = vmatpush.msra.mxu0 %v444
    %530 = vmatpush.msra.mxu0 %v441
    %531 = vmatpush.msra.mxu0 %v438
    %532 = vmatpush.msra.mxu0 %v435
    %533 = vmatpush.msra.mxu0 %v432
    %534 = vmatpush.msra.mxu0 %v429
    %535 = vmatpush.msra.mxu0 %v426
    %536 = vmatpush.msra.mxu0 %v423
    %537 = vmatpush.msra.mxu0 %v420
    %538 = vmatpush.msra.mxu0 %v417
    %539 = vmatpush.msra.mxu0 %v414
    %540 = vmatpush.msra.mxu0 %v411
    %541 = vmatpush.msra.mxu0 %v408
    %542 = vmatmul.f32.gmra.mxu0 %v273
    %v543 = vpop.f32.mrf.mxu0
    %v544 = vadd.f32 %v458, %v543
    %545 = vmatmul.f32.gmra.mxu0 %v306
    %v546 = vpop.f32.mrf.mxu0
    %v547 = vadd.f32 %v458, %v546
    %548 = vmatmul.f32.gmra.mxu0 %v339
    %v549 = vpop.f32.mrf.mxu0
    %v550 = vadd.f32 %v458, %v549
    %551 = vmatmul.f32.gmra.mxu0 %v372
    %v552 = vpop.f32.mrf.mxu0
    %v553 = vadd.f32 %v458, %v552
    %554 = vmatmul.f32.gmra.mxu0 %v405
    %v555 = vpop.f32.mrf.mxu0
    %v556 = vadd.f32 %v458, %v555
    %557 = vdwg.mxu0
    %v558 = vlaneseq
    %v559 = vshrl.u32 %v558, 7
    %v560 = vadd.s32 %v559, 8
    %v561 = vadd.s32 %v559, 16
    %v562 = vadd.s32 %v559, 24
    %v563 = vadd.s32 %v559, 32
    %v564 = vlaneseq
    %v565 = vand.u32 %v564, 127
    %vm566 = vcmp.lt.s32.totalorder %v559, 0
    %v567 = vsub.s32 0, %v559
    %v568 = vsel %vm566, %v567, %v559
    %v569 = vshrl.u32 %v568, 3
    %v570 = vand.u32 %v568, 7
    %v571 = vsub.s32 0, %v570
    %v572 = vsel %vm566, %v571, %v570
    %vm573 = vcmp.lt.s32.totalorder %v560, 0
    %v574 = vsub.s32 0, %v560
    %v575 = vsel %vm573, %v574, %v560
    %v576 = vshrl.u32 %v575, 3
    %v577 = vand.u32 %v575, 7
    %v578 = vsub.s32 0, %v577
    %v579 = vsel %vm573, %v578, %v577
    %vm580 = vcmp.lt.s32.totalorder %v561, 0
    %v581 = vsub.s32 0, %v561
    %v582 = vsel %vm580, %v581, %v561
    %v583 = vshrl.u32 %v582, 3
    %v584 = vand.u32 %v582, 7
    %v585 = vsub.s32 0, %v584
    %v586 = vsel %vm580, %v585, %v584
    %vm587 = vcmp.lt.s32.totalorder %v562, 0
    %v588 = vsub.s32 0, %v562
    %v589 = vsel %vm587, %v588, %v562
    %v590 = vshrl.u32 %v589, 3
    %v591 = vand.u32 %v589, 7
    %v592 = vsub.s32 0, %v591
    %v593 = vsel %vm587, %v592, %v591
    %vm594 = vcmp.lt.s32.totalorder %v563, 0
    %v595 = vsub.s32 0, %v563
    %v596 = vsel %vm594, %v595, %v563
    %v597 = vshrl.u32 %v596, 3
    %v598 = vand.u32 %v596, 7
    %v599 = vsub.s32 0, %v598
    %v600 = vsel %vm594, %v599, %v598
    %vm601 = vcmp.ne.s32.totalorder %v572, 0
    %vm602 = vcmp.ne.s32.totalorder %v579, 0
    %vm603 = vcmp.ne.s32.totalorder %v586, 0
    %vm604 = vcmp.ne.s32.totalorder %v593, 0
    %vm605 = vcmp.ne.s32.totalorder %v600, 0
    %vm606 = vcmp.lt.s32.totalorder %v572, 0
    %vm607 = vcmp.lt.s32.totalorder %v579, 0
    %vm608 = vcmp.lt.s32.totalorder %v586, 0
    %vm609 = vcmp.lt.s32.totalorder %v593, 0
    %vm610 = vcmp.lt.s32.totalorder %v600, 0
    %vm611 = vmand %vm606, %vm601
    %vm612 = vmand %vm607, %vm602
    %vm613 = vmand %vm608, %vm603
    %vm614 = vmand %vm609, %vm604
    %vm615 = vmand %vm610, %vm605
    %v616 = vadd.s32 %v572, 8
    %v617 = vadd.s32 %v579, 8
    %v618 = vadd.s32 %v586, 8
    %v619 = vadd.s32 %v593, 8
    %v620 = vadd.s32 %v600, 8
    %v621 = vsel %vm611, %v616, %v572
    %v622 = vsel %vm612, %v617, %v579
    %v623 = vsel %vm613, %v618, %v586
    %v624 = vsel %vm614, %v619, %v593
    %v625 = vsel %vm615, %v620, %v600
    %vm626 = vcmp.lt.s32.totalorder %v565, 0
    %v627 = vsub.s32 0, %v565
    %v628 = vsel %vm626, %v627, %v565
    %v629 = vshrl.u32 %v628, 3
    %v630 = vand.u32 %v628, 7
    %v631 = vsub.s32 0, %v630
    %v632 = vsel %vm626, %v631, %v630
    %vm633 = vcmp.ne.s32.totalorder %v632, 0
    %vm634 = vcmp.lt.s32.totalorder %v632, 0
    %vm635 = vmand %vm634, %vm633
    %v636 = vadd.s32 %v632, 8
    %v637 = vsel %vm635, %v636, %v632
    %vm638 = vcmp.eq.s32.totalorder %v621, %v637
    %vm639 = vcmp.eq.s32.totalorder %v622, %v637
    %vm640 = vcmp.eq.s32.totalorder %v623, %v637
    %vm641 = vcmp.eq.s32.totalorder %v624, %v637
    %vm642 = vcmp.eq.s32.totalorder %v625, %v637
    %v643 = vsel %vm638, 0.0, -1e+30
    %v644 = vsel %vm639, 0.0, -1e+30
    %v645 = vsel %vm640, 0.0, -1e+30
    %v646 = vsel %vm641, 0.0, -1e+30
    %v647 = vsel %vm642, 0.0, -1e+30
    %v649 = vsel %vm249, %v480, 0
    %v652 = vsel %vm249, %v483, 0
    %v655 = vsel %vm249, %v486, 0
    %v658 = vsel %vm249, %v489, 0
    %v661 = vsel %vm249, %v492, 0
    %v664 = vsel %vm249, %v512, 0
    %v667 = vsel %vm249, %v515, 0
    %v670 = vsel %vm249, %v518, 0
    %v673 = vsel %vm249, %v521, 0
    %v676 = vsel %vm249, %v524, 0
    %678 = vmatpush.xpose.msra.mxu0 0.0
    %679 = vmatpush.xpose.msra.mxu0 0.0
    %680 = vmatpush.xpose.msra.mxu0 0.0
    %681 = vmatpush.xpose.msra.mxu0 0.0
    %682 = vmatpush.xpose.msra.mxu0 0.0
    %683 = vmatpush.xpose.msra.mxu0 0.0
    %684 = vmatpush.xpose.msra.mxu0 0.0
    %685 = vmatpush.xpose.msra.mxu0 0.0
    %686 = vmatpush.xpose.msra.mxu0 0.0
    %687 = vmatpush.xpose.msra.mxu0 0.0
    %688 = vmatpush.xpose.msra.mxu0 0.0
    %689 = vmatpush.xpose.msra.mxu0 %v676
    %690 = vmatpush.xpose.msra.mxu0 %v673
    %691 = vmatpush.xpose.msra.mxu0 %v670
    %692 = vmatpush.xpose.msra.mxu0 %v667
    %693 = vmatpush.xpose.msra.mxu0 %v664
    %694 = vmatmul.f32.gmra.mxu0 %v649
    %v695 = vpop.f32.mrf.mxu0
    %v696 = vadd.f32 0.0, %v695
    %697 = vmatmul.f32.gmra.mxu0 %v652
    %v698 = vpop.f32.mrf.mxu0
    %v699 = vadd.f32 0.0, %v698
    %700 = vmatmul.f32.gmra.mxu0 %v655
    %v701 = vpop.f32.mrf.mxu0
    %v702 = vadd.f32 0.0, %v701
    %703 = vmatmul.f32.gmra.mxu0 %v658
    %v704 = vpop.f32.mrf.mxu0
    %v705 = vadd.f32 0.0, %v704
    %706 = vmatmul.f32.gmra.mxu0 %v661
    %v707 = vpop.f32.mrf.mxu0
    %v708 = vadd.f32 0.0, %v707
    %709 = vdwg.mxu0
    %v710 = vmul.f32 %v696, 0.17677669
    %v711 = vmul.f32 %v699, 0.17677669
    %v712 = vmul.f32 %v702, 0.17677669
    %v713 = vmul.f32 %v705, 0.17677669
    %v714 = vmul.f32 %v708, 0.17677669
    %v715 = vadd.f32 %v710, %v643
    %v716 = vadd.f32 %v711, %v644
    %v717 = vadd.f32 %v712, %v645
    %v718 = vadd.f32 %v713, %v646
    %v719 = vadd.f32 %v714, %v647
    %vm720 = vcmask 326656
    %v721 = vsel %vm720, %v715, -inf
    %722 = vmax.xlane.f32.xlu0 %v721
    %v723 = vpop.xlane.xlu0 %722
    %v724 = vsel %vm720, %v716, -inf
    %725 = vmax.xlane.f32.xlu0 %v724
    %v726 = vpop.xlane.xlu0 %725
    %v727 = vsel %vm720, %v717, -inf
    %728 = vmax.xlane.f32.xlu0 %v727
    %v729 = vpop.xlane.xlu0 %728
    %v730 = vsel %vm720, %v718, -inf
    %731 = vmax.xlane.f32.xlu0 %v730
    %v732 = vpop.xlane.xlu0 %731
    %v733 = vsel %vm720, %v719, -inf
    %734 = vmax.xlane.f32.xlu0 %v733
    %v735 = vpop.xlane.xlu0 %734
    %v736 = vsub.f32 %v715, %v723
    %v737 = vsub.f32 %v716, %v726
    %v738 = vsub.f32 %v717, %v729
    %v739 = vsub.f32 %v718, %v732
    %v740 = vsub.f32 %v719, %v735
    %v741 = vmul.f32 %v736, 1.442695
    %v742 = vpow.pop %v741
    %v743 = vmul.f32 %v737, 1.442695
    %v744 = vpow.pop %v743
    %v745 = vmul.f32 %v738, 1.442695
    %v746 = vpow.pop %v745
    %v747 = vmul.f32 %v739, 1.442695
    %v748 = vpow.pop %v747
    %v749 = vmul.f32 %v740, 1.442695
    %v750 = vpow.pop %v749
    %v751 = vsel %vm720, %v742, 0.0
    %752 = vadd.xlane.f32.xlu0 %v751
    %v753 = vpop.xlane.xlu0 %752
    %v754 = vsel %vm720, %v744, 0.0
    %755 = vadd.xlane.f32.xlu0 %v754
    %v756 = vpop.xlane.xlu0 %755
    %v757 = vsel %vm720, %v746, 0.0
    %758 = vadd.xlane.f32.xlu0 %v757
    %v759 = vpop.xlane.xlu0 %758
    %v760 = vsel %vm720, %v748, 0.0
    %761 = vadd.xlane.f32.xlu0 %v760
    %v762 = vpop.xlane.xlu0 %761
    %v763 = vsel %vm720, %v750, 0.0
    %764 = vadd.xlane.f32.xlu0 %v763
    %v765 = vpop.xlane.xlu0 %764
    %v766 = vrcp.pop %v753
    %v767 = vrcp.pop %v756
    %v768 = vrcp.pop %v759
    %v769 = vrcp.pop %v762
    %v770 = vrcp.pop %v765
    %v771 = vmul.f32 %v742, %v766
    %v772 = vmul.f32 %v744, %v767
    %v773 = vmul.f32 %v746, %v768
    %v774 = vmul.f32 %v748, %v769
    %v775 = vmul.f32 %v750, %v770
    %v777 = vsel %vm720, %v771, 0
    %v780 = vsel %vm720, %v772, 0
    %v783 = vsel %vm720, %v773, 0
    %v786 = vsel %vm720, %v774, 0
    %v789 = vsel %vm720, %v775, 0
    %791 = vmatpush.msra.mxu0 0.0
    %792 = vmatpush.msra.mxu0 0.0
    %793 = vmatpush.msra.mxu0 0.0
    %794 = vmatpush.msra.mxu0 0.0
    %795 = vmatpush.msra.mxu0 0.0
    %796 = vmatpush.msra.mxu0 0.0
    %797 = vmatpush.msra.mxu0 0.0
    %798 = vmatpush.msra.mxu0 0.0
    %799 = vmatpush.msra.mxu0 0.0
    %800 = vmatpush.msra.mxu0 0.0
    %801 = vmatpush.msra.mxu0 0.0
    %802 = vmatpush.msra.mxu0 %v556
    %803 = vmatpush.msra.mxu0 %v553
    %804 = vmatpush.msra.mxu0 %v550
    %805 = vmatpush.msra.mxu0 %v547
    %806 = vmatpush.msra.mxu0 %v544
    %807 = vmatmul.f32.gmra.mxu0 %v777
    %v808 = vpop.f32.mrf.mxu0
    %v809 = vadd.f32 0.0, %v808
    %810 = vmatmul.f32.gmra.mxu0 %v780
    %v811 = vpop.f32.mrf.mxu0
    %v812 = vadd.f32 0.0, %v811
    %813 = vmatmul.f32.gmra.mxu0 %v783
    %v814 = vpop.f32.mrf.mxu0
    %v815 = vadd.f32 0.0, %v814
    %816 = vmatmul.f32.gmra.mxu0 %v786
    %v817 = vpop.f32.mrf.mxu0
    %v818 = vadd.f32 0.0, %v817
    %819 = vmatmul.f32.gmra.mxu0 %v789
    %v820 = vpop.f32.mrf.mxu0
    %v821 = vadd.f32 0.0, %v820
    %822 = vdwg.mxu0
    %823 = vrot.lane.b32.xlu0 %v480, 96
    %v824 = vpop.permute.xlu0 %823
    %825 = vrot.lane.b32.xlu0 %v483, 96
    %v826 = vpop.permute.xlu0 %825
    %827 = vrot.lane.b32.xlu0 %v486, 96
    %v828 = vpop.permute.xlu0 %827
    %829 = vrot.lane.b32.xlu0 %v489, 96
    %v830 = vpop.permute.xlu0 %829
    %831 = vrot.lane.b32.xlu0 %v492, 96
    %v832 = vpop.permute.xlu0 %831
    %833 = vrot.lane.b32.xlu0 %v512, 96
    %v834 = vpop.permute.xlu0 %833
    %835 = vrot.lane.b32.xlu0 %v515, 96
    %v836 = vpop.permute.xlu0 %835
    %837 = vrot.lane.b32.xlu0 %v518, 96
    %v838 = vpop.permute.xlu0 %837
    %839 = vrot.lane.b32.xlu0 %v521, 96
    %v840 = vpop.permute.xlu0 %839
    %841 = vrot.lane.b32.xlu0 %v524, 96
    %v842 = vpop.permute.xlu0 %841
    %v843 = vsel %vm249, %v824, 0
    %v845 = vsel %vm249, %v826, 0
    %v847 = vsel %vm249, %v828, 0
    %v849 = vsel %vm249, %v830, 0
    %v851 = vsel %vm249, %v832, 0
    %v853 = vsel %vm249, %v834, 0
    %v855 = vsel %vm249, %v836, 0
    %v857 = vsel %vm249, %v838, 0
    %v859 = vsel %vm249, %v840, 0
    %v861 = vsel %vm249, %v842, 0
    %863 = vmatpush.xpose.msra.mxu0 0.0
    %864 = vmatpush.xpose.msra.mxu0 0.0
    %865 = vmatpush.xpose.msra.mxu0 0.0
    %866 = vmatpush.xpose.msra.mxu0 0.0
    %867 = vmatpush.xpose.msra.mxu0 0.0
    %868 = vmatpush.xpose.msra.mxu0 0.0
    %869 = vmatpush.xpose.msra.mxu0 0.0
    %870 = vmatpush.xpose.msra.mxu0 0.0
    %871 = vmatpush.xpose.msra.mxu0 0.0
    %872 = vmatpush.xpose.msra.mxu0 0.0
    %873 = vmatpush.xpose.msra.mxu0 0.0
    %874 = vmatpush.xpose.msra.mxu0 %v861
    %875 = vmatpush.xpose.msra.mxu0 %v859
    %876 = vmatpush.xpose.msra.mxu0 %v857
    %877 = vmatpush.xpose.msra.mxu0 %v855
    %878 = vmatpush.xpose.msra.mxu0 %v853
    %879 = vmatmul.f32.gmra.mxu0 %v843
    %v880 = vpop.f32.mrf.mxu0
    %v881 = vadd.f32 0.0, %v880
    %882 = vmatmul.f32.gmra.mxu0 %v845
    %v883 = vpop.f32.mrf.mxu0
    %v884 = vadd.f32 0.0, %v883
    %885 = vmatmul.f32.gmra.mxu0 %v847
    %v886 = vpop.f32.mrf.mxu0
    %v887 = vadd.f32 0.0, %v886
    %888 = vmatmul.f32.gmra.mxu0 %v849
    %v889 = vpop.f32.mrf.mxu0
    %v890 = vadd.f32 0.0, %v889
    %891 = vmatmul.f32.gmra.mxu0 %v851
    %v892 = vpop.f32.mrf.mxu0
    %v893 = vadd.f32 0.0, %v892
    %894 = vdwg.mxu0
    %v895 = vmul.f32 %v881, 0.17677669
    %v896 = vmul.f32 %v884, 0.17677669
    %v897 = vmul.f32 %v887, 0.17677669
    %v898 = vmul.f32 %v890, 0.17677669
    %v899 = vmul.f32 %v893, 0.17677669
    %v900 = vadd.f32 %v895, %v643
    %v901 = vadd.f32 %v896, %v644
    %v902 = vadd.f32 %v897, %v645
    %v903 = vadd.f32 %v898, %v646
    %v904 = vadd.f32 %v899, %v647
    %v905 = vsel %vm720, %v900, -inf
    %906 = vmax.xlane.f32.xlu0 %v905
    %v907 = vpop.xlane.xlu0 %906
    %v908 = vsel %vm720, %v901, -inf
    %909 = vmax.xlane.f32.xlu0 %v908
    %v910 = vpop.xlane.xlu0 %909
    %v911 = vsel %vm720, %v902, -inf
    %912 = vmax.xlane.f32.xlu0 %v911
    %v913 = vpop.xlane.xlu0 %912
    %v914 = vsel %vm720, %v903, -inf
    %915 = vmax.xlane.f32.xlu0 %v914
    %v916 = vpop.xlane.xlu0 %915
    %v917 = vsel %vm720, %v904, -inf
    %918 = vmax.xlane.f32.xlu0 %v917
    %v919 = vpop.xlane.xlu0 %918
    %v920 = vsub.f32 %v900, %v907
    %v921 = vsub.f32 %v901, %v910
    %v922 = vsub.f32 %v902, %v913
    %v923 = vsub.f32 %v903, %v916
    %v924 = vsub.f32 %v904, %v919
    %v925 = vmul.f32 %v920, 1.442695
    %v926 = vpow.pop %v925
    %v927 = vmul.f32 %v921, 1.442695
    %v928 = vpow.pop %v927
    %v929 = vmul.f32 %v922, 1.442695
    %v930 = vpow.pop %v929
    %v931 = vmul.f32 %v923, 1.442695
    %v932 = vpow.pop %v931
    %v933 = vmul.f32 %v924, 1.442695
    %v934 = vpow.pop %v933
    %v935 = vsel %vm720, %v926, 0.0
    %936 = vadd.xlane.f32.xlu0 %v935
    %v937 = vpop.xlane.xlu0 %936
    %v938 = vsel %vm720, %v928, 0.0
    %939 = vadd.xlane.f32.xlu0 %v938
    %v940 = vpop.xlane.xlu0 %939
    %v941 = vsel %vm720, %v930, 0.0
    %942 = vadd.xlane.f32.xlu0 %v941
    %v943 = vpop.xlane.xlu0 %942
    %v944 = vsel %vm720, %v932, 0.0
    %945 = vadd.xlane.f32.xlu0 %v944
    %v946 = vpop.xlane.xlu0 %945
    %v947 = vsel %vm720, %v934, 0.0
    %948 = vadd.xlane.f32.xlu0 %v947
    %v949 = vpop.xlane.xlu0 %948
    %v950 = vrcp.pop %v937
    %v951 = vrcp.pop %v940
    %v952 = vrcp.pop %v943
    %v953 = vrcp.pop %v946
    %v954 = vrcp.pop %v949
    %v955 = vmul.f32 %v926, %v950
    %v956 = vmul.f32 %v928, %v951
    %v957 = vmul.f32 %v930, %v952
    %v958 = vmul.f32 %v932, %v953
    %v959 = vmul.f32 %v934, %v954
    %965 = vrot.lane.b32.xlu0 %v544, 96
    %v966 = vpop.permute.xlu0 %965
    %967 = vrot.lane.b32.xlu0 %v547, 96
    %v968 = vpop.permute.xlu0 %967
    %969 = vrot.lane.b32.xlu0 %v550, 96
    %v970 = vpop.permute.xlu0 %969
    %971 = vrot.lane.b32.xlu0 %v553, 96
    %v972 = vpop.permute.xlu0 %971
    %973 = vrot.lane.b32.xlu0 %v556, 96
    %v974 = vpop.permute.xlu0 %973
    %v981 = vsel %vm720, %v955, 0
    %v984 = vsel %vm720, %v956, 0
    %v987 = vsel %vm720, %v957, 0
    %v990 = vsel %vm720, %v958, 0
    %v993 = vsel %vm720, %v959, 0
    %995 = vmatpush.msra.mxu0 0.0
    %996 = vmatpush.msra.mxu0 0.0
    %997 = vmatpush.msra.mxu0 0.0
    %998 = vmatpush.msra.mxu0 0.0
    %999 = vmatpush.msra.mxu0 0.0
    %1000 = vmatpush.msra.mxu0 0.0
    %1001 = vmatpush.msra.mxu0 0.0
    %1002 = vmatpush.msra.mxu0 0.0
    %1003 = vmatpush.msra.mxu0 0.0
    %1004 = vmatpush.msra.mxu0 0.0
    %1005 = vmatpush.msra.mxu0 0.0
    %1006 = vmatpush.msra.mxu0 %v974
    %1007 = vmatpush.msra.mxu0 %v972
    %1008 = vmatpush.msra.mxu0 %v970
    %1009 = vmatpush.msra.mxu0 %v968
    %1010 = vmatpush.msra.mxu0 %v966
    %1011 = vmatmul.f32.gmra.mxu0 %v981
    %v1012 = vpop.f32.mrf.mxu0
    %v1013 = vadd.f32 0.0, %v1012
    %1014 = vmatmul.f32.gmra.mxu0 %v984
    %v1015 = vpop.f32.mrf.mxu0
    %v1016 = vadd.f32 0.0, %v1015
    %1017 = vmatmul.f32.gmra.mxu0 %v987
    %v1018 = vpop.f32.mrf.mxu0
    %v1019 = vadd.f32 0.0, %v1018
    %1020 = vmatmul.f32.gmra.mxu0 %v990
    %v1021 = vpop.f32.mrf.mxu0
    %v1022 = vadd.f32 0.0, %v1021
    %1023 = vmatmul.f32.gmra.mxu0 %v993
    %v1024 = vpop.f32.mrf.mxu0
    %v1025 = vadd.f32 0.0, %v1024
    %1026 = vdwg.mxu0
    %1027 = vrot.lane.b32.xlu0 %v480, 64
    %v1028 = vpop.permute.xlu0 %1027
    %1029 = vrot.lane.b32.xlu0 %v483, 64
    %v1030 = vpop.permute.xlu0 %1029
    %1031 = vrot.lane.b32.xlu0 %v486, 64
    %v1032 = vpop.permute.xlu0 %1031
    %1033 = vrot.lane.b32.xlu0 %v489, 64
    %v1034 = vpop.permute.xlu0 %1033
    %1035 = vrot.lane.b32.xlu0 %v492, 64
    %v1036 = vpop.permute.xlu0 %1035
    %1037 = vrot.lane.b32.xlu0 %v512, 64
    %v1038 = vpop.permute.xlu0 %1037
    %1039 = vrot.lane.b32.xlu0 %v515, 64
    %v1040 = vpop.permute.xlu0 %1039
    %1041 = vrot.lane.b32.xlu0 %v518, 64
    %v1042 = vpop.permute.xlu0 %1041
    %1043 = vrot.lane.b32.xlu0 %v521, 64
    %v1044 = vpop.permute.xlu0 %1043
    %1045 = vrot.lane.b32.xlu0 %v524, 64
    %v1046 = vpop.permute.xlu0 %1045
    %v1047 = vsel %vm249, %v1028, 0
    %v1049 = vsel %vm249, %v1030, 0
    %v1051 = vsel %vm249, %v1032, 0
    %v1053 = vsel %vm249, %v1034, 0
    %v1055 = vsel %vm249, %v1036, 0
    %v1057 = vsel %vm249, %v1038, 0
    %v1059 = vsel %vm249, %v1040, 0
    %v1061 = vsel %vm249, %v1042, 0
    %v1063 = vsel %vm249, %v1044, 0
    %v1065 = vsel %vm249, %v1046, 0
    %1067 = vmatpush.xpose.msra.mxu0 0.0
    %1068 = vmatpush.xpose.msra.mxu0 0.0
    %1069 = vmatpush.xpose.msra.mxu0 0.0
    %1070 = vmatpush.xpose.msra.mxu0 0.0
    %1071 = vmatpush.xpose.msra.mxu0 0.0
    %1072 = vmatpush.xpose.msra.mxu0 0.0
    %1073 = vmatpush.xpose.msra.mxu0 0.0
    %1074 = vmatpush.xpose.msra.mxu0 0.0
    %1075 = vmatpush.xpose.msra.mxu0 0.0
    %1076 = vmatpush.xpose.msra.mxu0 0.0
    %1077 = vmatpush.xpose.msra.mxu0 0.0
    %1078 = vmatpush.xpose.msra.mxu0 %v1065
    %1079 = vmatpush.xpose.msra.mxu0 %v1063
    %1080 = vmatpush.xpose.msra.mxu0 %v1061
    %1081 = vmatpush.xpose.msra.mxu0 %v1059
    %1082 = vmatpush.xpose.msra.mxu0 %v1057
    %1083 = vmatmul.f32.gmra.mxu0 %v1047
    %v1084 = vpop.f32.mrf.mxu0
    %v1085 = vadd.f32 0.0, %v1084
    %1086 = vmatmul.f32.gmra.mxu0 %v1049
    %v1087 = vpop.f32.mrf.mxu0
    %v1088 = vadd.f32 0.0, %v1087
    %1089 = vmatmul.f32.gmra.mxu0 %v1051
    %v1090 = vpop.f32.mrf.mxu0
    %v1091 = vadd.f32 0.0, %v1090
    %1092 = vmatmul.f32.gmra.mxu0 %v1053
    %v1093 = vpop.f32.mrf.mxu0
    %v1094 = vadd.f32 0.0, %v1093
    %1095 = vmatmul.f32.gmra.mxu0 %v1055
    %v1096 = vpop.f32.mrf.mxu0
    %v1097 = vadd.f32 0.0, %v1096
    %1098 = vdwg.mxu0
    %v1099 = vmul.f32 %v1085, 0.17677669
    %v1100 = vmul.f32 %v1088, 0.17677669
    %v1101 = vmul.f32 %v1091, 0.17677669
    %v1102 = vmul.f32 %v1094, 0.17677669
    %v1103 = vmul.f32 %v1097, 0.17677669
    %v1104 = vadd.f32 %v1099, %v643
    %v1105 = vadd.f32 %v1100, %v644
    %v1106 = vadd.f32 %v1101, %v645
    %v1107 = vadd.f32 %v1102, %v646
    %v1108 = vadd.f32 %v1103, %v647
    %v1109 = vsel %vm720, %v1104, -inf
    %1110 = vmax.xlane.f32.xlu0 %v1109
    %v1111 = vpop.xlane.xlu0 %1110
    %v1112 = vsel %vm720, %v1105, -inf
    %1113 = vmax.xlane.f32.xlu0 %v1112
    %v1114 = vpop.xlane.xlu0 %1113
    %v1115 = vsel %vm720, %v1106, -inf
    %1116 = vmax.xlane.f32.xlu0 %v1115
    %v1117 = vpop.xlane.xlu0 %1116
    %v1118 = vsel %vm720, %v1107, -inf
    %1119 = vmax.xlane.f32.xlu0 %v1118
    %v1120 = vpop.xlane.xlu0 %1119
    %v1121 = vsel %vm720, %v1108, -inf
    %1122 = vmax.xlane.f32.xlu0 %v1121
    %v1123 = vpop.xlane.xlu0 %1122
    %v1124 = vsub.f32 %v1104, %v1111
    %v1125 = vsub.f32 %v1105, %v1114
    %v1126 = vsub.f32 %v1106, %v1117
    %v1127 = vsub.f32 %v1107, %v1120
    %v1128 = vsub.f32 %v1108, %v1123
    %v1129 = vmul.f32 %v1124, 1.442695
    %v1130 = vpow.pop %v1129
    %v1131 = vmul.f32 %v1125, 1.442695
    %v1132 = vpow.pop %v1131
    %v1133 = vmul.f32 %v1126, 1.442695
    %v1134 = vpow.pop %v1133
    %v1135 = vmul.f32 %v1127, 1.442695
    %v1136 = vpow.pop %v1135
    %v1137 = vmul.f32 %v1128, 1.442695
    %v1138 = vpow.pop %v1137
    %v1139 = vsel %vm720, %v1130, 0.0
    %1140 = vadd.xlane.f32.xlu0 %v1139
    %v1141 = vpop.xlane.xlu0 %1140
    %v1142 = vsel %vm720, %v1132, 0.0
    %1143 = vadd.xlane.f32.xlu0 %v1142
    %v1144 = vpop.xlane.xlu0 %1143
    %v1145 = vsel %vm720, %v1134, 0.0
    %1146 = vadd.xlane.f32.xlu0 %v1145
    %v1147 = vpop.xlane.xlu0 %1146
    %v1148 = vsel %vm720, %v1136, 0.0
    %1149 = vadd.xlane.f32.xlu0 %v1148
    %v1150 = vpop.xlane.xlu0 %1149
    %v1151 = vsel %vm720, %v1138, 0.0
    %1152 = vadd.xlane.f32.xlu0 %v1151
    %v1153 = vpop.xlane.xlu0 %1152
    %v1154 = vrcp.pop %v1141
    %v1155 = vrcp.pop %v1144
    %v1156 = vrcp.pop %v1147
    %v1157 = vrcp.pop %v1150
    %v1158 = vrcp.pop %v1153
    %v1159 = vmul.f32 %v1130, %v1154
    %v1160 = vmul.f32 %v1132, %v1155
    %v1161 = vmul.f32 %v1134, %v1156
    %v1162 = vmul.f32 %v1136, %v1157
    %v1163 = vmul.f32 %v1138, %v1158
    %1164 = vrot.lane.b32.xlu0 %v544, 64
    %v1165 = vpop.permute.xlu0 %1164
    %1166 = vrot.lane.b32.xlu0 %v547, 64
    %v1167 = vpop.permute.xlu0 %1166
    %1168 = vrot.lane.b32.xlu0 %v550, 64
    %v1169 = vpop.permute.xlu0 %1168
    %1170 = vrot.lane.b32.xlu0 %v553, 64
    %v1171 = vpop.permute.xlu0 %1170
    %1172 = vrot.lane.b32.xlu0 %v556, 64
    %v1173 = vpop.permute.xlu0 %1172
    %v1180 = vsel %vm720, %v1159, 0
    %v1183 = vsel %vm720, %v1160, 0
    %v1186 = vsel %vm720, %v1161, 0
    %v1189 = vsel %vm720, %v1162, 0
    %v1192 = vsel %vm720, %v1163, 0
    %1194 = vmatpush.msra.mxu0 0.0
    %1195 = vmatpush.msra.mxu0 0.0
    %1196 = vmatpush.msra.mxu0 0.0
    %1197 = vmatpush.msra.mxu0 0.0
    %1198 = vmatpush.msra.mxu0 0.0
    %1199 = vmatpush.msra.mxu0 0.0
    %1200 = vmatpush.msra.mxu0 0.0
    %1201 = vmatpush.msra.mxu0 0.0
    %1202 = vmatpush.msra.mxu0 0.0
    %1203 = vmatpush.msra.mxu0 0.0
    %1204 = vmatpush.msra.mxu0 0.0
    %1205 = vmatpush.msra.mxu0 %v1173
    %1206 = vmatpush.msra.mxu0 %v1171
    %1207 = vmatpush.msra.mxu0 %v1169
    %1208 = vmatpush.msra.mxu0 %v1167
    %1209 = vmatpush.msra.mxu0 %v1165
    %1210 = vmatmul.f32.gmra.mxu0 %v1180
    %v1211 = vpop.f32.mrf.mxu0
    %v1212 = vadd.f32 0.0, %v1211
    %1213 = vmatmul.f32.gmra.mxu0 %v1183
    %v1214 = vpop.f32.mrf.mxu0
    %v1215 = vadd.f32 0.0, %v1214
    %1216 = vmatmul.f32.gmra.mxu0 %v1186
    %v1217 = vpop.f32.mrf.mxu0
    %v1218 = vadd.f32 0.0, %v1217
    %1219 = vmatmul.f32.gmra.mxu0 %v1189
    %v1220 = vpop.f32.mrf.mxu0
    %v1221 = vadd.f32 0.0, %v1220
    %1222 = vmatmul.f32.gmra.mxu0 %v1192
    %v1223 = vpop.f32.mrf.mxu0
    %v1224 = vadd.f32 0.0, %v1223
    %1225 = vdwg.mxu0
    %1226 = vrot.lane.b32.xlu0 %v480, 32
    %v1227 = vpop.permute.xlu0 %1226
    %1228 = vrot.lane.b32.xlu0 %v483, 32
    %v1229 = vpop.permute.xlu0 %1228
    %1230 = vrot.lane.b32.xlu0 %v486, 32
    %v1231 = vpop.permute.xlu0 %1230
    %1232 = vrot.lane.b32.xlu0 %v489, 32
    %v1233 = vpop.permute.xlu0 %1232
    %1234 = vrot.lane.b32.xlu0 %v492, 32
    %v1235 = vpop.permute.xlu0 %1234
    %1236 = vrot.lane.b32.xlu0 %v512, 32
    %v1237 = vpop.permute.xlu0 %1236
    %1238 = vrot.lane.b32.xlu0 %v515, 32
    %v1239 = vpop.permute.xlu0 %1238
    %1240 = vrot.lane.b32.xlu0 %v518, 32
    %v1241 = vpop.permute.xlu0 %1240
    %1242 = vrot.lane.b32.xlu0 %v521, 32
    %v1243 = vpop.permute.xlu0 %1242
    %1244 = vrot.lane.b32.xlu0 %v524, 32
    %v1245 = vpop.permute.xlu0 %1244
    %v1246 = vsel %vm249, %v1227, 0
    %v1248 = vsel %vm249, %v1229, 0
    %v1250 = vsel %vm249, %v1231, 0
    %v1252 = vsel %vm249, %v1233, 0
    %v1254 = vsel %vm249, %v1235, 0
    %v1256 = vsel %vm249, %v1237, 0
    %v1258 = vsel %vm249, %v1239, 0
    %v1260 = vsel %vm249, %v1241, 0
    %v1262 = vsel %vm249, %v1243, 0
    %v1264 = vsel %vm249, %v1245, 0
    %1266 = vmatpush.xpose.msra.mxu0 0.0
    %1267 = vmatpush.xpose.msra.mxu0 0.0
    %1268 = vmatpush.xpose.msra.mxu0 0.0
    %1269 = vmatpush.xpose.msra.mxu0 0.0
    %1270 = vmatpush.xpose.msra.mxu0 0.0
    %1271 = vmatpush.xpose.msra.mxu0 0.0
    %1272 = vmatpush.xpose.msra.mxu0 0.0
    %1273 = vmatpush.xpose.msra.mxu0 0.0
    %1274 = vmatpush.xpose.msra.mxu0 0.0
    %1275 = vmatpush.xpose.msra.mxu0 0.0
    %1276 = vmatpush.xpose.msra.mxu0 0.0
    %1277 = vmatpush.xpose.msra.mxu0 %v1264
    %1278 = vmatpush.xpose.msra.mxu0 %v1262
    %1279 = vmatpush.xpose.msra.mxu0 %v1260
    %1280 = vmatpush.xpose.msra.mxu0 %v1258
    %1281 = vmatpush.xpose.msra.mxu0 %v1256
    %1282 = vmatmul.f32.gmra.mxu0 %v1246
    %v1283 = vpop.f32.mrf.mxu0
    %v1284 = vadd.f32 0.0, %v1283
    %1285 = vmatmul.f32.gmra.mxu0 %v1248
    %v1286 = vpop.f32.mrf.mxu0
    %v1287 = vadd.f32 0.0, %v1286
    %1288 = vmatmul.f32.gmra.mxu0 %v1250
    %v1289 = vpop.f32.mrf.mxu0
    %v1290 = vadd.f32 0.0, %v1289
    %1291 = vmatmul.f32.gmra.mxu0 %v1252
    %v1292 = vpop.f32.mrf.mxu0
    %v1293 = vadd.f32 0.0, %v1292
    %1294 = vmatmul.f32.gmra.mxu0 %v1254
    %v1295 = vpop.f32.mrf.mxu0
    %v1296 = vadd.f32 0.0, %v1295
    %1297 = vdwg.mxu0
    %v1298 = vmul.f32 %v1284, 0.17677669
    %v1299 = vmul.f32 %v1287, 0.17677669
    %v1300 = vmul.f32 %v1290, 0.17677669
    %v1301 = vmul.f32 %v1293, 0.17677669
    %v1302 = vmul.f32 %v1296, 0.17677669
    %v1303 = vadd.f32 %v1298, %v643
    %v1304 = vadd.f32 %v1299, %v644
    %v1305 = vadd.f32 %v1300, %v645
    %v1306 = vadd.f32 %v1301, %v646
    %v1307 = vadd.f32 %v1302, %v647
    %v1308 = vsel %vm720, %v1303, -inf
    %1309 = vmax.xlane.f32.xlu0 %v1308
    %v1310 = vpop.xlane.xlu0 %1309
    %v1311 = vsel %vm720, %v1304, -inf
    %1312 = vmax.xlane.f32.xlu0 %v1311
    %v1313 = vpop.xlane.xlu0 %1312
    %v1314 = vsel %vm720, %v1305, -inf
    %1315 = vmax.xlane.f32.xlu0 %v1314
    %v1316 = vpop.xlane.xlu0 %1315
    %v1317 = vsel %vm720, %v1306, -inf
    %1318 = vmax.xlane.f32.xlu0 %v1317
    %v1319 = vpop.xlane.xlu0 %1318
    %v1320 = vsel %vm720, %v1307, -inf
    %1321 = vmax.xlane.f32.xlu0 %v1320
    %v1322 = vpop.xlane.xlu0 %1321
    %v1323 = vsub.f32 %v1303, %v1310
    %v1324 = vsub.f32 %v1304, %v1313
    %v1325 = vsub.f32 %v1305, %v1316
    %v1326 = vsub.f32 %v1306, %v1319
    %v1327 = vsub.f32 %v1307, %v1322
    %v1328 = vmul.f32 %v1323, 1.442695
    %v1329 = vpow.pop %v1328
    %v1330 = vmul.f32 %v1324, 1.442695
    %v1331 = vpow.pop %v1330
    %v1332 = vmul.f32 %v1325, 1.442695
    %v1333 = vpow.pop %v1332
    %v1334 = vmul.f32 %v1326, 1.442695
    %v1335 = vpow.pop %v1334
    %v1336 = vmul.f32 %v1327, 1.442695
    %v1337 = vpow.pop %v1336
    %v1338 = vsel %vm720, %v1329, 0.0
    %1339 = vadd.xlane.f32.xlu0 %v1338
    %v1340 = vpop.xlane.xlu0 %1339
    %v1341 = vsel %vm720, %v1331, 0.0
    %1342 = vadd.xlane.f32.xlu0 %v1341
    %v1343 = vpop.xlane.xlu0 %1342
    %v1344 = vsel %vm720, %v1333, 0.0
    %1345 = vadd.xlane.f32.xlu0 %v1344
    %v1346 = vpop.xlane.xlu0 %1345
    %v1347 = vsel %vm720, %v1335, 0.0
    %1348 = vadd.xlane.f32.xlu0 %v1347
    %v1349 = vpop.xlane.xlu0 %1348
    %v1350 = vsel %vm720, %v1337, 0.0
    %1351 = vadd.xlane.f32.xlu0 %v1350
    %v1352 = vpop.xlane.xlu0 %1351
    %v1353 = vrcp.pop %v1340
    %v1354 = vrcp.pop %v1343
    %v1355 = vrcp.pop %v1346
    %v1356 = vrcp.pop %v1349
    %v1357 = vrcp.pop %v1352
    %v1358 = vmul.f32 %v1329, %v1353
    %v1359 = vmul.f32 %v1331, %v1354
    %v1360 = vmul.f32 %v1333, %v1355
    %v1361 = vmul.f32 %v1335, %v1356
    %v1362 = vmul.f32 %v1337, %v1357
    %1363 = vrot.lane.b32.xlu0 %v544, 32
    %v1364 = vpop.permute.xlu0 %1363
    %1365 = vrot.lane.b32.xlu0 %v547, 32
    %v1366 = vpop.permute.xlu0 %1365
    %1367 = vrot.lane.b32.xlu0 %v550, 32
    %v1368 = vpop.permute.xlu0 %1367
    %1369 = vrot.lane.b32.xlu0 %v553, 32
    %v1370 = vpop.permute.xlu0 %1369
    %1371 = vrot.lane.b32.xlu0 %v556, 32
    %v1372 = vpop.permute.xlu0 %1371
    %v1379 = vsel %vm720, %v1358, 0
    %v1382 = vsel %vm720, %v1359, 0
    %v1385 = vsel %vm720, %v1360, 0
    %v1388 = vsel %vm720, %v1361, 0
    %v1391 = vsel %vm720, %v1362, 0
    %1393 = vmatpush.msra.mxu0 0.0
    %1394 = vmatpush.msra.mxu0 0.0
    %1395 = vmatpush.msra.mxu0 0.0
    %1396 = vmatpush.msra.mxu0 0.0
    %1397 = vmatpush.msra.mxu0 0.0
    %1398 = vmatpush.msra.mxu0 0.0
    %1399 = vmatpush.msra.mxu0 0.0
    %1400 = vmatpush.msra.mxu0 0.0
    %1401 = vmatpush.msra.mxu0 0.0
    %1402 = vmatpush.msra.mxu0 0.0
    %1403 = vmatpush.msra.mxu0 0.0
    %1404 = vmatpush.msra.mxu0 %v1372
    %1405 = vmatpush.msra.mxu0 %v1370
    %1406 = vmatpush.msra.mxu0 %v1368
    %1407 = vmatpush.msra.mxu0 %v1366
    %1408 = vmatpush.msra.mxu0 %v1364
    %1409 = vmatmul.f32.gmra.mxu0 %v1379
    %v1410 = vpop.f32.mrf.mxu0
    %v1411 = vadd.f32 0.0, %v1410
    %1412 = vmatmul.f32.gmra.mxu0 %v1382
    %v1413 = vpop.f32.mrf.mxu0
    %v1414 = vadd.f32 0.0, %v1413
    %1415 = vmatmul.f32.gmra.mxu0 %v1385
    %v1416 = vpop.f32.mrf.mxu0
    %v1417 = vadd.f32 0.0, %v1416
    %1418 = vmatmul.f32.gmra.mxu0 %v1388
    %v1419 = vpop.f32.mrf.mxu0
    %v1420 = vadd.f32 0.0, %v1419
    %1421 = vmatmul.f32.gmra.mxu0 %v1391
    %v1422 = vpop.f32.mrf.mxu0
    %v1423 = vadd.f32 0.0, %v1422
    %1424 = vdwg.mxu0
    %1430 = vrot.lane.b32.xlu0 %v1013, 32
    %v1431 = vpop.permute.xlu0 %1430
    %1432 = vrot.lane.b32.xlu0 %v1016, 32
    %v1433 = vpop.permute.xlu0 %1432
    %1434 = vrot.lane.b32.xlu0 %v1019, 32
    %v1435 = vpop.permute.xlu0 %1434
    %1436 = vrot.lane.b32.xlu0 %v1022, 32
    %v1437 = vpop.permute.xlu0 %1436
    %1438 = vrot.lane.b32.xlu0 %v1025, 32
    %v1439 = vpop.permute.xlu0 %1438
    %1450 = vrot.lane.b32.xlu0 %v1212, 64
    %v1451 = vpop.permute.xlu0 %1450
    %1452 = vrot.lane.b32.xlu0 %v1215, 64
    %v1453 = vpop.permute.xlu0 %1452
    %1454 = vrot.lane.b32.xlu0 %v1218, 64
    %v1455 = vpop.permute.xlu0 %1454
    %1456 = vrot.lane.b32.xlu0 %v1221, 64
    %v1457 = vpop.permute.xlu0 %1456
    %1458 = vrot.lane.b32.xlu0 %v1224, 64
    %v1459 = vpop.permute.xlu0 %1458
    %1470 = vrot.lane.b32.xlu0 %v1411, 96
    %v1471 = vpop.permute.xlu0 %1470
    %1472 = vrot.lane.b32.xlu0 %v1414, 96
    %v1473 = vpop.permute.xlu0 %1472
    %1474 = vrot.lane.b32.xlu0 %v1417, 96
    %v1475 = vpop.permute.xlu0 %1474
    %1476 = vrot.lane.b32.xlu0 %v1420, 96
    %v1477 = vpop.permute.xlu0 %1476
    %1478 = vrot.lane.b32.xlu0 %v1423, 96
    %v1479 = vpop.permute.xlu0 %1478
    %v1485 = vsel %vm249, %v809, %v1431
    %v1486 = vsel %vm249, %v812, %v1433
    %v1487 = vsel %vm249, %v815, %v1435
    %v1488 = vsel %vm249, %v818, %v1437
    %v1489 = vsel %vm249, %v821, %v1439
    %vm1490 = vcmask 523264
    %v1491 = vsel %vm1490, %v1485, %v1451
    %v1492 = vsel %vm1490, %v1486, %v1453
    %v1493 = vsel %vm1490, %v1487, %v1455
    %v1494 = vsel %vm1490, %v1488, %v1457
    %v1495 = vsel %vm1490, %v1489, %v1459
    %vm1496 = vcmask 785408
    %v1497 = vsel %vm1496, %v1491, %v1471
    %v1498 = vsel %vm1496, %v1492, %v1473
    %v1499 = vsel %vm1496, %v1493, %v1475
    %v1500 = vsel %vm1496, %v1494, %v1477
    %v1501 = vsel %vm1496, %v1495, %v1479
    %v1502 = vld [vmem:[#allocation10] sm:$0xff]
    %v1503 = vld [vmem:[#allocation10 + $0x8] sm:$0xff]
    %v1504 = vld [vmem:[#allocation10 + $0x10] sm:$0xff]
    %v1505 = vld [vmem:[#allocation10 + $0x18] sm:$0xff]
    %v1506 = vld [vmem:[#allocation10 + $0x20] sm:$0xff]
    %v1507 = vld [vmem:[#allocation10 + $0x28] sm:$0xff]
    %v1508 = vld [vmem:[#allocation10 + $0x30] sm:$0xff]
    %v1509 = vld [vmem:[#allocation10 + $0x38] sm:$0xff]
    %v1510 = vld [vmem:[#allocation10 + $0x40] sm:$0xff]
    %v1511 = vld [vmem:[#allocation10 + $0x48] sm:$0xff]
    %v1512 = vld [vmem:[#allocation10 + $0x50] sm:$0xff]
    %v1513 = vld [vmem:[#allocation10 + $0x58] sm:$0xff]
    %v1514 = vld [vmem:[#allocation10 + $0x60] sm:$0xff]
    %v1515 = vld [vmem:[#allocation10 + $0x68] sm:$0xff]
    %v1516 = vld [vmem:[#allocation10 + $0x70] sm:$0xff]
    %v1517 = vld [vmem:[#allocation10 + $0x78] sm:$0xff]
    %v1518 = vld [vmem:[%s6] sm:$0x1]
    %v1520 = vperm.slane %v1518, 0
    %1522 = vmatpush.msra.mxu0 %v1517
    %1523 = vmatpush.msra.mxu0 %v1516
    %1524 = vmatpush.msra.mxu0 %v1515
    %1525 = vmatpush.msra.mxu0 %v1514
    %1526 = vmatpush.msra.mxu0 %v1513
    %1527 = vmatpush.msra.mxu0 %v1512
    %1528 = vmatpush.msra.mxu0 %v1511
    %1529 = vmatpush.msra.mxu0 %v1510
    %1530 = vmatpush.msra.mxu0 %v1509
    %1531 = vmatpush.msra.mxu0 %v1508
    %1532 = vmatpush.msra.mxu0 %v1507
    %1533 = vmatpush.msra.mxu0 %v1506
    %1534 = vmatpush.msra.mxu0 %v1505
    %1535 = vmatpush.msra.mxu0 %v1504
    %1536 = vmatpush.msra.mxu0 %v1503
    %1537 = vmatpush.msra.mxu0 %v1502
    %1538 = vmatmul.f32.gmra.mxu0 %v1497
    %v1539 = vpop.f32.mrf.mxu0
    %v1540 = vadd.f32 %v1520, %v1539
    %1541 = vmatmul.f32.gmra.mxu0 %v1498
    %v1542 = vpop.f32.mrf.mxu0
    %v1543 = vadd.f32 %v1520, %v1542
    %1544 = vmatmul.f32.gmra.mxu0 %v1499
    %v1545 = vpop.f32.mrf.mxu0
    %v1546 = vadd.f32 %v1520, %v1545
    %1547 = vmatmul.f32.gmra.mxu0 %v1500
    %v1548 = vpop.f32.mrf.mxu0
    %v1549 = vadd.f32 %v1520, %v1548
    %1550 = vmatmul.f32.gmra.mxu0 %v1501
    %v1551 = vpop.f32.mrf.mxu0
    %v1552 = vadd.f32 %v1520, %v1551
    %1553 = vdwg.mxu0
    %v1554 = vadd.f32 %v273, %v1540
    %v1555 = vadd.f32 %v306, %v1543
    %v1556 = vadd.f32 %v339, %v1546
    %v1557 = vadd.f32 %v372, %v1549
    %v1558 = vadd.f32 %v405, %v1552
    %v1559 = vld [vmem:[%s7] sm:$0x1]
    %v1560 = vld [vmem:[%s8] sm:$0x1]
    %1561 = vadd.xlane.f32.xlu0 %v1554
    %v1562 = vpop.xlane.xlu0 %1561
    %1563 = vadd.xlane.f32.xlu0 %v1555
    %v1564 = vpop.xlane.xlu0 %1563
    %1565 = vadd.xlane.f32.xlu0 %v1556
    %v1566 = vpop.xlane.xlu0 %1565
    %1567 = vadd.xlane.f32.xlu0 %v1557
    %v1568 = vpop.xlane.xlu0 %1567
    %1569 = vadd.xlane.f32.xlu0 %v1558
    %v1570 = vpop.xlane.xlu0 %1569
    %v1571 = vrcp.pop 128.0
    %v1572 = vmul.f32 128.0, %v1571
    %v1573 = vsub.f32 1.0, %v1572
    %v1574 = vmul.f32 %v1571, %v1573
    %v1575 = vadd.f32 %v1571, %v1574
    %vm1576 = vweird.f32 %v1571
    %v1577 = vsel %vm1576, %v1571, %v1575
    %v1578 = vmul.f32 %v1562, %v1577
    %v1579 = vmul.f32 %v1564, %v1577
    %v1580 = vmul.f32 %v1566, %v1577
    %v1581 = vmul.f32 %v1568, %v1577
    %v1582 = vmul.f32 %v1570, %v1577
    %v1583 = vsub.f32 %v1554, %v1578
    %v1584 = vsub.f32 %v1555, %v1579
    %v1585 = vsub.f32 %v1556, %v1580
    %v1586 = vsub.f32 %v1557, %v1581
    %v1587 = vsub.f32 %v1558, %v1582
    %v1588 = vmul.f32 %v1583, %v1583
    %v1589 = vmul.f32 %v1584, %v1584
    %v1590 = vmul.f32 %v1585, %v1585
    %v1591 = vmul.f32 %v1586, %v1586
    %v1592 = vmul.f32 %v1587, %v1587
    %1593 = vadd.xlane.f32.xlu0 %v1588
    %v1594 = vpop.xlane.xlu0 %1593
    %1595 = vadd.xlane.f32.xlu0 %v1589
    %v1596 = vpop.xlane.xlu0 %1595
    %1597 = vadd.xlane.f32.xlu0 %v1590
    %v1598 = vpop.xlane.xlu0 %1597
    %1599 = vadd.xlane.f32.xlu0 %v1591
    %v1600 = vpop.xlane.xlu0 %1599
    %1601 = vadd.xlane.f32.xlu0 %v1592
    %v1602 = vpop.xlane.xlu0 %1601
    %v1603 = vmul.f32 %v1594, %v1577
    %v1604 = vmul.f32 %v1596, %v1577
    %v1605 = vmul.f32 %v1598, %v1577
    %v1606 = vmul.f32 %v1600, %v1577
    %v1607 = vmul.f32 %v1602, %v1577
    %v1608 = vadd.f32 %v1603, 1e-05
    %v1609 = vadd.f32 %v1604, 1e-05
    %v1610 = vadd.f32 %v1605, 1e-05
    %v1611 = vadd.f32 %v1606, 1e-05
    %v1612 = vadd.f32 %v1607, 1e-05
    %v1613 = vrsqrt.pop %v1608
    %v1614 = vmul.f32 %v1613, %v1608
    %v1615 = vmul.f32 %v1614, %v1613
    %v1616 = vmul.f32 0.5, %v1615
    %v1617 = vsub.f32 1.5, %v1616
    %v1618 = vmul.f32 %v1613, %v1617
    %vm1619 = vweird.f32 %v1608
    %vm1620 = vweird.f32 %v1613
    %vm1621 = vmor %vm1619, %vm1620
    %v1622 = vsel %vm1621, %v1613, %v1618
    %v1623 = vrsqrt.pop %v1609
    %v1624 = vmul.f32 %v1623, %v1609
    %v1625 = vmul.f32 %v1624, %v1623
    %v1626 = vmul.f32 0.5, %v1625
    %v1627 = vsub.f32 1.5, %v1626
    %v1628 = vmul.f32 %v1623, %v1627
    %vm1629 = vweird.f32 %v1609
    %vm1630 = vweird.f32 %v1623
    %vm1631 = vmor %vm1629, %vm1630
    %v1632 = vsel %vm1631, %v1623, %v1628
    %v1633 = vrsqrt.pop %v1610
    %v1634 = vmul.f32 %v1633, %v1610
    %v1635 = vmul.f32 %v1634, %v1633
    %v1636 = vmul.f32 0.5, %v1635
    %v1637 = vsub.f32 1.5, %v1636
    %v1638 = vmul.f32 %v1633, %v1637
    %vm1639 = vweird.f32 %v1610
    %vm1640 = vweird.f32 %v1633
    %vm1641 = vmor %vm1639, %vm1640
    %v1642 = vsel %vm1641, %v1633, %v1638
    %v1643 = vrsqrt.pop %v1611
    %v1644 = vmul.f32 %v1643, %v1611
    %v1645 = vmul.f32 %v1644, %v1643
    %v1646 = vmul.f32 0.5, %v1645
    %v1647 = vsub.f32 1.5, %v1646
    %v1648 = vmul.f32 %v1643, %v1647
    %vm1649 = vweird.f32 %v1611
    %vm1650 = vweird.f32 %v1643
    %vm1651 = vmor %vm1649, %vm1650
    %v1652 = vsel %vm1651, %v1643, %v1648
    %v1653 = vrsqrt.pop %v1612
    %v1654 = vmul.f32 %v1653, %v1612
    %v1655 = vmul.f32 %v1654, %v1653
    %v1656 = vmul.f32 0.5, %v1655
    %v1657 = vsub.f32 1.5, %v1656
    %v1658 = vmul.f32 %v1653, %v1657
    %vm1659 = vweird.f32 %v1612
    %vm1660 = vweird.f32 %v1653
    %vm1661 = vmor %vm1659, %vm1660
    %v1662 = vsel %vm1661, %v1653, %v1658
    %v1663 = vmul.f32 %v1583, %v1622
    %v1664 = vmul.f32 %v1584, %v1632
    %v1665 = vmul.f32 %v1585, %v1642
    %v1666 = vmul.f32 %v1586, %v1652
    %v1667 = vmul.f32 %v1587, %v1662
    %v1669 = vperm.slane %v1559, 0
    %v1671 = vmul.f32 %v1663, %v1669
    %v1672 = vmul.f32 %v1664, %v1669
    %v1673 = vmul.f32 %v1665, %v1669
    %v1674 = vmul.f32 %v1666, %v1669
    %v1675 = vmul.f32 %v1667, %v1669
    %v1677 = vperm.slane %v1560, 0
    %v1679 = vadd.f32 %v1671, %v1677
    %v1680 = vadd.f32 %v1672, %v1677
    %v1681 = vadd.f32 %v1673, %v1677
    %v1682 = vadd.f32 %v1674, %v1677
    %v1683 = vadd.f32 %v1675, %v1677
    %v1684 = vpack.c.bf16 %v1680, %v1679
    %v1685 = vpack.c.bf16 %v1682, %v1681
    %v1686 = vpack.c.bf16 %v1683, %v1683
    %v1687 = vld [vmem:[#allocation11] sm:$0xff]
    %v1688 = vld [vmem:[#allocation11 + $0x8] sm:$0xff]
    %v1689 = vld [vmem:[#allocation11 + $0x10] sm:$0xff]
    %v1690 = vld [vmem:[#allocation11 + $0x18] sm:$0xff]
    %v1691 = vld [vmem:[#allocation11 + $0x20] sm:$0xff]
    %v1692 = vld [vmem:[#allocation11 + $0x28] sm:$0xff]
    %v1693 = vld [vmem:[#allocation11 + $0x30] sm:$0xff]
    %v1694 = vld [vmem:[#allocation11 + $0x38] sm:$0xff]
    %v1695 = vld [vmem:[#allocation11 + $0x40] sm:$0xff]
    %v1696 = vld [vmem:[#allocation11 + $0x48] sm:$0xff]
    %v1697 = vld [vmem:[#allocation11 + $0x50] sm:$0xff]
    %v1698 = vld [vmem:[#allocation11 + $0x58] sm:$0xff]
    %v1699 = vld [vmem:[#allocation11 + $0x60] sm:$0xff]
    %v1700 = vld [vmem:[#allocation11 + $0x68] sm:$0xff]
    %v1701 = vld [vmem:[#allocation11 + $0x70] sm:$0xff]
    %v1702 = vld [vmem:[#allocation11 + $0x78] sm:$0xff]
    %v1703 = vld [vmem:[#allocation11 + $0x80] sm:$0xff]
    %v1704 = vld [vmem:[#allocation11 + $0x88] sm:$0xff]
    %v1705 = vld [vmem:[#allocation11 + $0x90] sm:$0xff]
    %v1706 = vld [vmem:[#allocation11 + $0x98] sm:$0xff]
    %v1707 = vld [vmem:[#allocation11 + $0xa0] sm:$0xff]
    %v1708 = vld [vmem:[#allocation11 + $0xa8] sm:$0xff]
    %v1709 = vld [vmem:[#allocation11 + $0xb0] sm:$0xff]
    %v1710 = vld [vmem:[#allocation11 + $0xb8] sm:$0xff]
    %v1711 = vld [vmem:[#allocation11 + $0xc0] sm:$0xff]
    %v1712 = vld [vmem:[#allocation11 + $0xc8] sm:$0xff]
    %v1713 = vld [vmem:[#allocation11 + $0xd0] sm:$0xff]
    %v1714 = vld [vmem:[#allocation11 + $0xd8] sm:$0xff]
    %v1715 = vld [vmem:[#allocation11 + $0xe0] sm:$0xff]
    %v1716 = vld [vmem:[#allocation11 + $0xe8] sm:$0xff]
    %v1717 = vld [vmem:[#allocation11 + $0xf0] sm:$0xff]
    %v1718 = vld [vmem:[#allocation11 + $0xf8] sm:$0xff]
    %v1719 = vld [vmem:[#allocation11 + $0x100] sm:$0xff]
    %v1720 = vld [vmem:[#allocation11 + $0x108] sm:$0xff]
    %v1721 = vld [vmem:[#allocation11 + $0x110] sm:$0xff]
    %v1722 = vld [vmem:[#allocation11 + $0x118] sm:$0xff]
    %v1723 = vld [vmem:[#allocation11 + $0x120] sm:$0xff]
    %v1724 = vld [vmem:[#allocation11 + $0x128] sm:$0xff]
    %v1725 = vld [vmem:[#allocation11 + $0x130] sm:$0xff]
    %v1726 = vld [vmem:[#allocation11 + $0x138] sm:$0xff]
    %v1727 = vld [vmem:[#allocation11 + $0x140] sm:$0xff]
    %v1728 = vld [vmem:[#allocation11 + $0x148] sm:$0xff]
    %v1729 = vld [vmem:[#allocation11 + $0x150] sm:$0xff]
    %v1730 = vld [vmem:[#allocation11 + $0x158] sm:$0xff]
    %v1731 = vld [vmem:[#allocation11 + $0x160] sm:$0xff]
    %v1732 = vld [vmem:[#allocation11 + $0x168] sm:$0xff]
    %v1733 = vld [vmem:[#allocation11 + $0x170] sm:$0xff]
    %v1734 = vld [vmem:[#allocation11 + $0x178] sm:$0xff]
    %v1735 = vld [vmem:[#allocation11 + $0x180] sm:$0xff]
    %v1736 = vld [vmem:[#allocation11 + $0x188] sm:$0xff]
    %v1737 = vld [vmem:[#allocation11 + $0x190] sm:$0xff]
    %v1738 = vld [vmem:[#allocation11 + $0x198] sm:$0xff]
    %v1739 = vld [vmem:[#allocation11 + $0x1a0] sm:$0xff]
    %v1740 = vld [vmem:[#allocation11 + $0x1a8] sm:$0xff]
    %v1741 = vld [vmem:[#allocation11 + $0x1b0] sm:$0xff]
    %v1742 = vld [vmem:[#allocation11 + $0x1b8] sm:$0xff]
    %v1743 = vld [vmem:[#allocation11 + $0x1c0] sm:$0xff]
    %v1744 = vld [vmem:[#allocation11 + $0x1c8] sm:$0xff]
    %v1745 = vld [vmem:[#allocation11 + $0x1d0] sm:$0xff]
    %v1746 = vld [vmem:[#allocation11 + $0x1d8] sm:$0xff]
    %v1747 = vld [vmem:[#allocation11 + $0x1e0] sm:$0xff]
    %v1748 = vld [vmem:[#allocation11 + $0x1e8] sm:$0xff]
    %v1749 = vld [vmem:[#allocation11 + $0x1f0] sm:$0xff]
    %v1750 = vld [vmem:[#allocation11 + $0x1f8] sm:$0xff]
    %v1751 = vld [vmem:[#allocation11 + $0x200] sm:$0xff]
    %v1752 = vld [vmem:[#allocation11 + $0x208] sm:$0xff]
    %v1753 = vld [vmem:[#allocation11 + $0x210] sm:$0xff]
    %v1754 = vld [vmem:[#allocation11 + $0x218] sm:$0xff]
    %v1755 = vld [vmem:[#allocation11 + $0x220] sm:$0xff]
    %v1756 = vld [vmem:[#allocation11 + $0x228] sm:$0xff]
    %v1757 = vld [vmem:[#allocation11 + $0x230] sm:$0xff]
    %v1758 = vld [vmem:[#allocation11 + $0x238] sm:$0xff]
    %v1759 = vld [vmem:[#allocation11 + $0x240] sm:$0xff]
    %v1760 = vld [vmem:[#allocation11 + $0x248] sm:$0xff]
    %v1761 = vld [vmem:[#allocation11 + $0x250] sm:$0xff]
    %v1762 = vld [vmem:[#allocation11 + $0x258] sm:$0xff]
    %v1763 = vld [vmem:[#allocation11 + $0x260] sm:$0xff]
    %v1764 = vld [vmem:[#allocation11 + $0x268] sm:$0xff]
    %v1765 = vld [vmem:[#allocation11 + $0x270] sm:$0xff]
    %v1766 = vld [vmem:[#allocation11 + $0x278] sm:$0xff]
    %v1767 = vld [vmem:[#allocation11 + $0x280] sm:$0xff]
    %v1768 = vld [vmem:[#allocation11 + $0x288] sm:$0xff]
    %v1769 = vld [vmem:[#allocation11 + $0x290] sm:$0xff]
    %v1770 = vld [vmem:[#allocation11 + $0x298] sm:$0xff]
    %v1771 = vld [vmem:[#allocation11 + $0x2a0] sm:$0xff]
    %v1772 = vld [vmem:[#allocation11 + $0x2a8] sm:$0xff]
    %v1773 = vld [vmem:[#allocation11 + $0x2b0] sm:$0xff]
    %v1774 = vld [vmem:[#allocation11 + $0x2b8] sm:$0xff]
    %v1775 = vld [vmem:[#allocation11 + $0x2c0] sm:$0xff]
    %v1776 = vld [vmem:[#allocation11 + $0x2c8] sm:$0xff]
    %v1777 = vld [vmem:[#allocation11 + $0x2d0] sm:$0xff]
    %v1778 = vld [vmem:[#allocation11 + $0x2d8] sm:$0xff]
    %v1779 = vld [vmem:[#allocation11 + $0x2e0] sm:$0xff]
    %v1780 = vld [vmem:[#allocation11 + $0x2e8] sm:$0xff]
    %v1781 = vld [vmem:[#allocation11 + $0x2f0] sm:$0xff]
    %v1782 = vld [vmem:[#allocation11 + $0x2f8] sm:$0xff]
    %v1783 = vld [vmem:[#allocation11 + $0x300] sm:$0xff]
    %v1784 = vld [vmem:[#allocation11 + $0x308] sm:$0xff]
    %v1785 = vld [vmem:[#allocation11 + $0x310] sm:$0xff]
    %v1786 = vld [vmem:[#allocation11 + $0x318] sm:$0xff]
    %v1787 = vld [vmem:[#allocation11 + $0x320] sm:$0xff]
    %v1788 = vld [vmem:[#allocation11 + $0x328] sm:$0xff]
    %v1789 = vld [vmem:[#allocation11 + $0x330] sm:$0xff]
    %v1790 = vld [vmem:[#allocation11 + $0x338] sm:$0xff]
    %v1791 = vld [vmem:[#allocation11 + $0x340] sm:$0xff]
    %v1792 = vld [vmem:[#allocation11 + $0x348] sm:$0xff]
    %v1793 = vld [vmem:[#allocation11 + $0x350] sm:$0xff]
    %v1794 = vld [vmem:[#allocation11 + $0x358] sm:$0xff]
    %v1795 = vld [vmem:[#allocation11 + $0x360] sm:$0xff]
    %v1796 = vld [vmem:[#allocation11 + $0x368] sm:$0xff]
    %v1797 = vld [vmem:[#allocation11 + $0x370] sm:$0xff]
    %v1798 = vld [vmem:[#allocation11 + $0x378] sm:$0xff]
    %v1799 = vld [vmem:[#allocation11 + $0x380] sm:$0xff]
    %v1800 = vld [vmem:[#allocation11 + $0x388] sm:$0xff]
    %v1801 = vld [vmem:[#allocation11 + $0x390] sm:$0xff]
    %v1802 = vld [vmem:[#allocation11 + $0x398] sm:$0xff]
    %v1803 = vld [vmem:[#allocation11 + $0x3a0] sm:$0xff]
    %v1804 = vld [vmem:[#allocation11 + $0x3a8] sm:$0xff]
    %v1805 = vld [vmem:[#allocation11 + $0x3b0] sm:$0xff]
    %v1806 = vld [vmem:[#allocation11 + $0x3b8] sm:$0xff]
    %v1807 = vld [vmem:[#allocation11 + $0x3c0] sm:$0xff]
    %v1808 = vld [vmem:[#allocation11 + $0x3c8] sm:$0xff]
    %v1809 = vld [vmem:[#allocation11 + $0x3d0] sm:$0xff]
    %v1810 = vld [vmem:[#allocation11 + $0x3d8] sm:$0xff]
    %v1811 = vld [vmem:[#allocation11 + $0x3e0] sm:$0xff]
    %v1812 = vld [vmem:[#allocation11 + $0x3e8] sm:$0xff]
    %v1813 = vld [vmem:[#allocation11 + $0x3f0] sm:$0xff]
    %v1814 = vld [vmem:[#allocation11 + $0x3f8] sm:$0xff]
    %v1815 = vld [vmem:[#allocation13] sm:$0xff]
    %v1816 = vld [vmem:[#allocation13 + $0x8] sm:$0xff]
    %v1819 = vperm.slane %v1815, 0
    %v1820 = vperm.slane %v1815, 1
    %v1821 = vperm.slane %v1815, 2
    %v1822 = vperm.slane %v1815, 3
    %v1823 = vperm.slane %v1815, 4
    %v1824 = vperm.slane %v1815, 5
    %v1825 = vperm.slane %v1815, 6
    %v1826 = vperm.slane %v1815, 7
    %v1827 = vperm.slane %v1816, 0
    %v1828 = vperm.slane %v1816, 1
    %v1829 = vperm.slane %v1816, 2
    %v1830 = vperm.slane %v1816, 3
    %v1831 = vperm.slane %v1816, 4
    %v1832 = vperm.slane %v1816, 5
    %v1833 = vperm.slane %v1816, 6
    %v1834 = vperm.slane %v1816, 7
    %v1979 = vunpack.c.l.b16 %v1687
    %v1980 = vunpack.c.h.b16 %v1687
    %v1981 = vunpack.c.l.b16 %v1688
    %v1982 = vunpack.c.h.b16 %v1688
    %v1983 = vunpack.c.l.b16 %v1689
    %v1984 = vunpack.c.h.b16 %v1689
    %v1985 = vunpack.c.l.b16 %v1690
    %v1986 = vunpack.c.h.b16 %v1690
    %v1987 = vunpack.c.l.b16 %v1691
    %v1988 = vunpack.c.h.b16 %v1691
    %v1989 = vunpack.c.l.b16 %v1692
    %v1990 = vunpack.c.h.b16 %v1692
    %v1991 = vunpack.c.l.b16 %v1693
    %v1992 = vunpack.c.h.b16 %v1693
    %v1993 = vunpack.c.l.b16 %v1694
    %v1994 = vunpack.c.h.b16 %v1694
    %v1995 = vunpack.c.l.b16 %v1695
    %v1996 = vunpack.c.h.b16 %v1695
    %v1997 = vunpack.c.l.b16 %v1696
    %v1998 = vunpack.c.h.b16 %v1696
    %v1999 = vunpack.c.l.b16 %v1697
    %v2000 = vunpack.c.h.b16 %v1697
    %v2001 = vunpack.c.l.b16 %v1698
    %v2002 = vunpack.c.h.b16 %v1698
    %v2003 = vunpack.c.l.b16 %v1699
    %v2004 = vunpack.c.h.b16 %v1699
    %v2005 = vunpack.c.l.b16 %v1700
    %v2006 = vunpack.c.h.b16 %v1700
    %v2007 = vunpack.c.l.b16 %v1701
    %v2008 = vunpack.c.h.b16 %v1701
    %v2009 = vunpack.c.l.b16 %v1702
    %v2010 = vunpack.c.h.b16 %v1702
    %v2011 = vunpack.c.l.b16 %v1703
    %v2012 = vunpack.c.h.b16 %v1703
    %v2013 = vunpack.c.l.b16 %v1704
    %v2014 = vunpack.c.h.b16 %v1704
    %v2015 = vunpack.c.l.b16 %v1705
    %v2016 = vunpack.c.h.b16 %v1705
    %v2017 = vunpack.c.l.b16 %v1706
    %v2018 = vunpack.c.h.b16 %v1706
    %v2019 = vunpack.c.l.b16 %v1707
    %v2020 = vunpack.c.h.b16 %v1707
    %v2021 = vunpack.c.l.b16 %v1708
    %v2022 = vunpack.c.h.b16 %v1708
    %v2023 = vunpack.c.l.b16 %v1709
    %v2024 = vunpack.c.h.b16 %v1709
    %v2025 = vunpack.c.l.b16 %v1710
    %v2026 = vunpack.c.h.b16 %v1710
    %v2027 = vunpack.c.l.b16 %v1711
    %v2028 = vunpack.c.h.b16 %v1711
    %v2029 = vunpack.c.l.b16 %v1712
    %v2030 = vunpack.c.h.b16 %v1712
    %v2031 = vunpack.c.l.b16 %v1713
    %v2032 = vunpack.c.h.b16 %v1713
    %v2033 = vunpack.c.l.b16 %v1714
    %v2034 = vunpack.c.h.b16 %v1714
    %v2035 = vunpack.c.l.b16 %v1715
    %v2036 = vunpack.c.h.b16 %v1715
    %v2037 = vunpack.c.l.b16 %v1716
    %v2038 = vunpack.c.h.b16 %v1716
    %v2039 = vunpack.c.l.b16 %v1717
    %v2040 = vunpack.c.h.b16 %v1717
    %v2041 = vunpack.c.l.b16 %v1718
    %v2042 = vunpack.c.h.b16 %v1718
    %v2043 = vunpack.c.l.b16 %v1719
    %v2044 = vunpack.c.h.b16 %v1719
    %v2045 = vunpack.c.l.b16 %v1720
    %v2046 = vunpack.c.h.b16 %v1720
    %v2047 = vunpack.c.l.b16 %v1721
    %v2048 = vunpack.c.h.b16 %v1721
    %v2049 = vunpack.c.l.b16 %v1722
    %v2050 = vunpack.c.h.b16 %v1722
    %v2051 = vunpack.c.l.b16 %v1723
    %v2052 = vunpack.c.h.b16 %v1723
    %v2053 = vunpack.c.l.b16 %v1724
    %v2054 = vunpack.c.h.b16 %v1724
    %v2055 = vunpack.c.l.b16 %v1725
    %v2056 = vunpack.c.h.b16 %v1725
    %v2057 = vunpack.c.l.b16 %v1726
    %v2058 = vunpack.c.h.b16 %v1726
    %v2059 = vunpack.c.l.b16 %v1727
    %v2060 = vunpack.c.h.b16 %v1727
    %v2061 = vunpack.c.l.b16 %v1728
    %v2062 = vunpack.c.h.b16 %v1728
    %v2063 = vunpack.c.l.b16 %v1729
    %v2064 = vunpack.c.h.b16 %v1729
    %v2065 = vunpack.c.l.b16 %v1730
    %v2066 = vunpack.c.h.b16 %v1730
    %v2067 = vunpack.c.l.b16 %v1731
    %v2068 = vunpack.c.h.b16 %v1731
    %v2069 = vunpack.c.l.b16 %v1732
    %v2070 = vunpack.c.h.b16 %v1732
    %v2071 = vunpack.c.l.b16 %v1733
    %v2072 = vunpack.c.h.b16 %v1733
    %v2073 = vunpack.c.l.b16 %v1734
    %v2074 = vunpack.c.h.b16 %v1734
    %v2075 = vunpack.c.l.b16 %v1735
    %v2076 = vunpack.c.h.b16 %v1735
    %v2077 = vunpack.c.l.b16 %v1736
    %v2078 = vunpack.c.h.b16 %v1736
    %v2079 = vunpack.c.l.b16 %v1737
    %v2080 = vunpack.c.h.b16 %v1737
    %v2081 = vunpack.c.l.b16 %v1738
    %v2082 = vunpack.c.h.b16 %v1738
    %v2083 = vunpack.c.l.b16 %v1739
    %v2084 = vunpack.c.h.b16 %v1739
    %v2085 = vunpack.c.l.b16 %v1740
    %v2086 = vunpack.c.h.b16 %v1740
    %v2087 = vunpack.c.l.b16 %v1741
    %v2088 = vunpack.c.h.b16 %v1741
    %v2089 = vunpack.c.l.b16 %v1742
    %v2090 = vunpack.c.h.b16 %v1742
    %v2091 = vunpack.c.l.b16 %v1743
    %v2092 = vunpack.c.h.b16 %v1743
    %v2093 = vunpack.c.l.b16 %v1744
    %v2094 = vunpack.c.h.b16 %v1744
    %v2095 = vunpack.c.l.b16 %v1745
    %v2096 = vunpack.c.h.b16 %v1745
    %v2097 = vunpack.c.l.b16 %v1746
    %v2098 = vunpack.c.h.b16 %v1746
    %v2099 = vunpack.c.l.b16 %v1747
    %v2100 = vunpack.c.h.b16 %v1747
    %v2101 = vunpack.c.l.b16 %v1748
    %v2102 = vunpack.c.h.b16 %v1748
    %v2103 = vunpack.c.l.b16 %v1749
    %v2104 = vunpack.c.h.b16 %v1749
    %v2105 = vunpack.c.l.b16 %v1750
    %v2106 = vunpack.c.h.b16 %v1750
    %v2107 = vunpack.c.l.b16 %v1751
    %v2108 = vunpack.c.h.b16 %v1751
    %v2109 = vunpack.c.l.b16 %v1752
    %v2110 = vunpack.c.h.b16 %v1752
    %v2111 = vunpack.c.l.b16 %v1753
    %v2112 = vunpack.c.h.b16 %v1753
    %v2113 = vunpack.c.l.b16 %v1754
    %v2114 = vunpack.c.h.b16 %v1754
    %v2115 = vunpack.c.l.b16 %v1755
    %v2116 = vunpack.c.h.b16 %v1755
    %v2117 = vunpack.c.l.b16 %v1756
    %v2118 = vunpack.c.h.b16 %v1756
    %v2119 = vunpack.c.l.b16 %v1757
    %v2120 = vunpack.c.h.b16 %v1757
    %v2121 = vunpack.c.l.b16 %v1758
    %v2122 = vunpack.c.h.b16 %v1758
    %v2123 = vunpack.c.l.b16 %v1759
    %v2124 = vunpack.c.h.b16 %v1759
    %v2125 = vunpack.c.l.b16 %v1760
    %v2126 = vunpack.c.h.b16 %v1760
    %v2127 = vunpack.c.l.b16 %v1761
    %v2128 = vunpack.c.h.b16 %v1761
    %v2129 = vunpack.c.l.b16 %v1762
    %v2130 = vunpack.c.h.b16 %v1762
    %v2131 = vunpack.c.l.b16 %v1763
    %v2132 = vunpack.c.h.b16 %v1763
    %v2133 = vunpack.c.l.b16 %v1764
    %v2134 = vunpack.c.h.b16 %v1764
    %v2135 = vunpack.c.l.b16 %v1765
    %v2136 = vunpack.c.h.b16 %v1765
    %v2137 = vunpack.c.l.b16 %v1766
    %v2138 = vunpack.c.h.b16 %v1766
    %v2139 = vunpack.c.l.b16 %v1767
    %v2140 = vunpack.c.h.b16 %v1767
    %v2141 = vunpack.c.l.b16 %v1768
    %v2142 = vunpack.c.h.b16 %v1768
    %v2143 = vunpack.c.l.b16 %v1769
    %v2144 = vunpack.c.h.b16 %v1769
    %v2145 = vunpack.c.l.b16 %v1770
    %v2146 = vunpack.c.h.b16 %v1770
    %v2147 = vunpack.c.l.b16 %v1771
    %v2148 = vunpack.c.h.b16 %v1771
    %v2149 = vunpack.c.l.b16 %v1772
    %v2150 = vunpack.c.h.b16 %v1772
    %v2151 = vunpack.c.l.b16 %v1773
    %v2152 = vunpack.c.h.b16 %v1773
    %v2153 = vunpack.c.l.b16 %v1774
    %v2154 = vunpack.c.h.b16 %v1774
    %v2155 = vunpack.c.l.b16 %v1775
    %v2156 = vunpack.c.h.b16 %v1775
    %v2157 = vunpack.c.l.b16 %v1776
    %v2158 = vunpack.c.h.b16 %v1776
    %v2159 = vunpack.c.l.b16 %v1777
    %v2160 = vunpack.c.h.b16 %v1777
    %v2161 = vunpack.c.l.b16 %v1778
    %v2162 = vunpack.c.h.b16 %v1778
    %v2163 = vunpack.c.l.b16 %v1779
    %v2164 = vunpack.c.h.b16 %v1779
    %v2165 = vunpack.c.l.b16 %v1780
    %v2166 = vunpack.c.h.b16 %v1780
    %v2167 = vunpack.c.l.b16 %v1781
    %v2168 = vunpack.c.h.b16 %v1781
    %v2169 = vunpack.c.l.b16 %v1782
    %v2170 = vunpack.c.h.b16 %v1782
    %v2171 = vunpack.c.l.b16 %v1783
    %v2172 = vunpack.c.h.b16 %v1783
    %v2173 = vunpack.c.l.b16 %v1784
    %v2174 = vunpack.c.h.b16 %v1784
    %v2175 = vunpack.c.l.b16 %v1785
    %v2176 = vunpack.c.h.b16 %v1785
    %v2177 = vunpack.c.l.b16 %v1786
    %v2178 = vunpack.c.h.b16 %v1786
    %v2179 = vunpack.c.l.b16 %v1787
    %v2180 = vunpack.c.h.b16 %v1787
    %v2181 = vunpack.c.l.b16 %v1788
    %v2182 = vunpack.c.h.b16 %v1788
    %v2183 = vunpack.c.l.b16 %v1789
    %v2184 = vunpack.c.h.b16 %v1789
    %v2185 = vunpack.c.l.b16 %v1790
    %v2186 = vunpack.c.h.b16 %v1790
    %v2187 = vunpack.c.l.b16 %v1791
    %v2188 = vunpack.c.h.b16 %v1791
    %v2189 = vunpack.c.l.b16 %v1792
    %v2190 = vunpack.c.h.b16 %v1792
    %v2191 = vunpack.c.l.b16 %v1793
    %v2192 = vunpack.c.h.b16 %v1793
    %v2193 = vunpack.c.l.b16 %v1794
    %v2194 = vunpack.c.h.b16 %v1794
    %v2195 = vunpack.c.l.b16 %v1795
    %v2196 = vunpack.c.h.b16 %v1795
    %v2197 = vunpack.c.l.b16 %v1796
    %v2198 = vunpack.c.h.b16 %v1796
    %v2199 = vunpack.c.l.b16 %v1797
    %v2200 = vunpack.c.h.b16 %v1797
    %v2201 = vunpack.c.l.b16 %v1798
    %v2202 = vunpack.c.h.b16 %v1798
    %v2203 = vunpack.c.l.b16 %v1799
    %v2204 = vunpack.c.h.b16 %v1799
    %v2205 = vunpack.c.l.b16 %v1800
    %v2206 = vunpack.c.h.b16 %v1800
    %v2207 = vunpack.c.l.b16 %v1801
    %v2208 = vunpack.c.h.b16 %v1801
    %v2209 = vunpack.c.l.b16 %v1802
    %v2210 = vunpack.c.h.b16 %v1802
    %v2211 = vunpack.c.l.b16 %v1803
    %v2212 = vunpack.c.h.b16 %v1803
    %v2213 = vunpack.c.l.b16 %v1804
    %v2214 = vunpack.c.h.b16 %v1804
    %v2215 = vunpack.c.l.b16 %v1805
    %v2216 = vunpack.c.h.b16 %v1805
    %v2217 = vunpack.c.l.b16 %v1806
    %v2218 = vunpack.c.h.b16 %v1806
    %v2219 = vunpack.c.l.b16 %v1807
    %v2220 = vunpack.c.h.b16 %v1807
    %v2221 = vunpack.c.l.b16 %v1808
    %v2222 = vunpack.c.h.b16 %v1808
    %v2223 = vunpack.c.l.b16 %v1809
    %v2224 = vunpack.c.h.b16 %v1809
    %v2225 = vunpack.c.l.b16 %v1810
    %v2226 = vunpack.c.h.b16 %v1810
    %v2227 = vunpack.c.l.b16 %v1811
    %v2228 = vunpack.c.h.b16 %v1811
    %v2229 = vunpack.c.l.b16 %v1812
    %v2230 = vunpack.c.h.b16 %v1812
    %v2231 = vunpack.c.l.b16 %v1813
    %v2232 = vunpack.c.h.b16 %v1813
    %v2233 = vunpack.c.l.b16 %v1814
    %v2234 = vunpack.c.h.b16 %v1814
    %v2235 = vpack.c.b16 %v1995, %v1979
    %v2236 = vpack.c.b16 %v1996, %v1980
    %v2237 = vpack.c.b16 %v1997, %v1981
    %v2238 = vpack.c.b16 %v1998, %v1982
    %v2239 = vpack.c.b16 %v1999, %v1983
    %v2240 = vpack.c.b16 %v2000, %v1984
    %v2241 = vpack.c.b16 %v2001, %v1985
    %v2242 = vpack.c.b16 %v2002, %v1986
    %v2243 = vpack.c.b16 %v2003, %v1987
    %v2244 = vpack.c.b16 %v2004, %v1988
    %v2245 = vpack.c.b16 %v2005, %v1989
    %v2246 = vpack.c.b16 %v2006, %v1990
    %v2247 = vpack.c.b16 %v2007, %v1991
    %v2248 = vpack.c.b16 %v2008, %v1992
    %v2249 = vpack.c.b16 %v2009, %v1993
    %v2250 = vpack.c.b16 %v2010, %v1994
    %v2251 = vpack.c.b16 %v2027, %v2011
    %v2252 = vpack.c.b16 %v2028, %v2012
    %v2253 = vpack.c.b16 %v2029, %v2013
    %v2254 = vpack.c.b16 %v2030, %v2014
    %v2255 = vpack.c.b16 %v2031, %v2015
    %v2256 = vpack.c.b16 %v2032, %v2016
    %v2257 = vpack.c.b16 %v2033, %v2017
    %v2258 = vpack.c.b16 %v2034, %v2018
    %v2259 = vpack.c.b16 %v2035, %v2019
    %v2260 = vpack.c.b16 %v2036, %v2020
    %v2261 = vpack.c.b16 %v2037, %v2021
    %v2262 = vpack.c.b16 %v2038, %v2022
    %v2263 = vpack.c.b16 %v2039, %v2023
    %v2264 = vpack.c.b16 %v2040, %v2024
    %v2265 = vpack.c.b16 %v2041, %v2025
    %v2266 = vpack.c.b16 %v2042, %v2026
    %v2267 = vpack.c.b16 %v2059, %v2043
    %v2268 = vpack.c.b16 %v2060, %v2044
    %v2269 = vpack.c.b16 %v2061, %v2045
    %v2270 = vpack.c.b16 %v2062, %v2046
    %v2271 = vpack.c.b16 %v2063, %v2047
    %v2272 = vpack.c.b16 %v2064, %v2048
    %v2273 = vpack.c.b16 %v2065, %v2049
    %v2274 = vpack.c.b16 %v2066, %v2050
    %v2275 = vpack.c.b16 %v2067, %v2051
    %v2276 = vpack.c.b16 %v2068, %v2052
    %v2277 = vpack.c.b16 %v2069, %v2053
    %v2278 = vpack.c.b16 %v2070, %v2054
    %v2279 = vpack.c.b16 %v2071, %v2055
    %v2280 = vpack.c.b16 %v2072, %v2056
    %v2281 = vpack.c.b16 %v2073, %v2057
    %v2282 = vpack.c.b16 %v2074, %v2058
    %v2283 = vpack.c.b16 %v2091, %v2075
    %v2284 = vpack.c.b16 %v2092, %v2076
    %v2285 = vpack.c.b16 %v2093, %v2077
    %v2286 = vpack.c.b16 %v2094, %v2078
    %v2287 = vpack.c.b16 %v2095, %v2079
    %v2288 = vpack.c.b16 %v2096, %v2080
    %v2289 = vpack.c.b16 %v2097, %v2081
    %v2290 = vpack.c.b16 %v2098, %v2082
    %v2291 = vpack.c.b16 %v2099, %v2083
    %v2292 = vpack.c.b16 %v2100, %v2084
    %v2293 = vpack.c.b16 %v2101, %v2085
    %v2294 = vpack.c.b16 %v2102, %v2086
    %v2295 = vpack.c.b16 %v2103, %v2087
    %v2296 = vpack.c.b16 %v2104, %v2088
    %v2297 = vpack.c.b16 %v2105, %v2089
    %v2298 = vpack.c.b16 %v2106, %v2090
    %v2299 = vpack.c.b16 %v2123, %v2107
    %v2300 = vpack.c.b16 %v2124, %v2108
    %v2301 = vpack.c.b16 %v2125, %v2109
    %v2302 = vpack.c.b16 %v2126, %v2110
    %v2303 = vpack.c.b16 %v2127, %v2111
    %v2304 = vpack.c.b16 %v2128, %v2112
    %v2305 = vpack.c.b16 %v2129, %v2113
    %v2306 = vpack.c.b16 %v2130, %v2114
    %v2307 = vpack.c.b16 %v2131, %v2115
    %v2308 = vpack.c.b16 %v2132, %v2116
    %v2309 = vpack.c.b16 %v2133, %v2117
    %v2310 = vpack.c.b16 %v2134, %v2118
    %v2311 = vpack.c.b16 %v2135, %v2119
    %v2312 = vpack.c.b16 %v2136, %v2120
    %v2313 = vpack.c.b16 %v2137, %v2121
    %v2314 = vpack.c.b16 %v2138, %v2122
    %v2315 = vpack.c.b16 %v2155, %v2139
    %v2316 = vpack.c.b16 %v2156, %v2140
    %v2317 = vpack.c.b16 %v2157, %v2141
    %v2318 = vpack.c.b16 %v2158, %v2142
    %v2319 = vpack.c.b16 %v2159, %v2143
    %v2320 = vpack.c.b16 %v2160, %v2144
    %v2321 = vpack.c.b16 %v2161, %v2145
    %v2322 = vpack.c.b16 %v2162, %v2146
    %v2323 = vpack.c.b16 %v2163, %v2147
    %v2324 = vpack.c.b16 %v2164, %v2148
    %v2325 = vpack.c.b16 %v2165, %v2149
    %v2326 = vpack.c.b16 %v2166, %v2150
    %v2327 = vpack.c.b16 %v2167, %v2151
    %v2328 = vpack.c.b16 %v2168, %v2152
    %v2329 = vpack.c.b16 %v2169, %v2153
    %v2330 = vpack.c.b16 %v2170, %v2154
    %v2331 = vpack.c.b16 %v2187, %v2171
    %v2332 = vpack.c.b16 %v2188, %v2172
    %v2333 = vpack.c.b16 %v2189, %v2173
    %v2334 = vpack.c.b16 %v2190, %v2174
    %v2335 = vpack.c.b16 %v2191, %v2175
    %v2336 = vpack.c.b16 %v2192, %v2176
    %v2337 = vpack.c.b16 %v2193, %v2177
    %v2338 = vpack.c.b16 %v2194, %v2178
    %v2339 = vpack.c.b16 %v2195, %v2179
    %v2340 = vpack.c.b16 %v2196, %v2180
    %v2341 = vpack.c.b16 %v2197, %v2181
    %v2342 = vpack.c.b16 %v2198, %v2182
    %v2343 = vpack.c.b16 %v2199, %v2183
    %v2344 = vpack.c.b16 %v2200, %v2184
    %v2345 = vpack.c.b16 %v2201, %v2185
    %v2346 = vpack.c.b16 %v2202, %v2186
    %v2347 = vpack.c.b16 %v2219, %v2203
    %v2348 = vpack.c.b16 %v2220, %v2204
    %v2349 = vpack.c.b16 %v2221, %v2205
    %v2350 = vpack.c.b16 %v2222, %v2206
    %v2351 = vpack.c.b16 %v2223, %v2207
    %v2352 = vpack.c.b16 %v2224, %v2208
    %v2353 = vpack.c.b16 %v2225, %v2209
    %v2354 = vpack.c.b16 %v2226, %v2210
    %v2355 = vpack.c.b16 %v2227, %v2211
    %v2356 = vpack.c.b16 %v2228, %v2212
    %v2357 = vpack.c.b16 %v2229, %v2213
    %v2358 = vpack.c.b16 %v2230, %v2214
    %v2359 = vpack.c.b16 %v2231, %v2215
    %v2360 = vpack.c.b16 %v2232, %v2216
    %v2361 = vpack.c.b16 %v2233, %v2217
    %v2362 = vpack.c.b16 %v2234, %v2218
    %2491 = vmatpush.bf16.msra.mxu0 %v2347
    %2492 = vmatpush.bf16.msra.mxu0 %v2331
    %2493 = vmatpush.bf16.msra.mxu0 %v2315
    %2494 = vmatpush.bf16.msra.mxu0 %v2299
    %2495 = vmatpush.bf16.msra.mxu0 %v2283
    %2496 = vmatpush.bf16.msra.mxu0 %v2267
    %2497 = vmatpush.bf16.msra.mxu0 %v2251
    %2498 = vmatpush.bf16.msra.mxu0 %v2235
    %2499 = vmatmul.bf16.gmra.mxu0 %v1684
    %v2500 = vpop.f32.mrf.mxu0
    %v2501 = vadd.f32 %v1819, %v2500
    %v2502 = vpop.f32.mrf.mxu0
    %v2503 = vadd.f32 %v1819, %v2502
    %2504 = vmatmul.bf16.gmra.mxu0 %v1685
    %v2505 = vpop.f32.mrf.mxu0
    %v2506 = vadd.f32 %v1819, %v2505
    %v2507 = vpop.f32.mrf.mxu0
    %v2508 = vadd.f32 %v1819, %v2507
    %2509 = vmatmul.bf16.gmra.mxu0 %v1686
    %v2510 = vpop.f32.mrf.mxu0
    %v2511 = vadd.f32 %v1819, %v2510
    %v2512 = vpop.f32.mrf.mxu0
    %2513 = vdwg.mxu0
    %2514 = vmatpush.bf16.msra.mxu0 %v2348
    %2515 = vmatpush.bf16.msra.mxu0 %v2332
    %2516 = vmatpush.bf16.msra.mxu0 %v2316
    %2517 = vmatpush.bf16.msra.mxu0 %v2300
    %2518 = vmatpush.bf16.msra.mxu0 %v2284
    %2519 = vmatpush.bf16.msra.mxu0 %v2268
    %2520 = vmatpush.bf16.msra.mxu0 %v2252
    %2521 = vmatpush.bf16.msra.mxu0 %v2236
    %2522 = vmatmul.bf16.gmra.mxu0 %v1684
    %v2523 = vpop.f32.mrf.mxu0
    %v2524 = vadd.f32 %v1820, %v2523
    %v2525 = vpop.f32.mrf.mxu0
    %v2526 = vadd.f32 %v1820, %v2525
    %2527 = vmatmul.bf16.gmra.mxu0 %v1685
    %v2528 = vpop.f32.mrf.mxu0
    %v2529 = vadd.f32 %v1820, %v2528
    %v2530 = vpop.f32.mrf.mxu0
    %v2531 = vadd.f32 %v1820, %v2530
    %2532 = vmatmul.bf16.gmra.mxu0 %v1686
    %v2533 = vpop.f32.mrf.mxu0
    %v2534 = vadd.f32 %v1820, %v2533
    %v2535 = vpop.f32.mrf.mxu0
    %2536 = vdwg.mxu0
    %2537 = vmatpush.bf16.msra.mxu0 %v2349
    %2538 = vmatpush.bf16.msra.mxu0 %v2333
    %2539 = vmatpush.bf16.msra.mxu0 %v2317
    %2540 = vmatpush.bf16.msra.mxu0 %v2301
    %2541 = vmatpush.bf16.msra.mxu0 %v2285
    %2542 = vmatpush.bf16.msra.mxu0 %v2269
    %2543 = vmatpush.bf16.msra.mxu0 %v2253
    %2544 = vmatpush.bf16.msra.mxu0 %v2237
    %2545 = vmatmul.bf16.gmra.mxu0 %v1684
    %v2546 = vpop.f32.mrf.mxu0
    %v2547 = vadd.f32 %v1821, %v2546
    %v2548 = vpop.f32.mrf.mxu0
    %v2549 = vadd.f32 %v1821, %v2548
    %2550 = vmatmul.bf16.gmra.mxu0 %v1685
    %v2551 = vpop.f32.mrf.mxu0
    %v2552 = vadd.f32 %v1821, %v2551
    %v2553 = vpop.f32.mrf.mxu0
    %v2554 = vadd.f32 %v1821, %v2553
    %2555 = vmatmul.bf16.gmra.mxu0 %v1686
    %v2556 = vpop.f32.mrf.mxu0
    %v2557 = vadd.f32 %v1821, %v2556
    %v2558 = vpop.f32.mrf.mxu0
    %2559 = vdwg.mxu0
    %2560 = vmatpush.bf16.msra.mxu0 %v2350
    %2561 = vmatpush.bf16.msra.mxu0 %v2334
    %2562 = vmatpush.bf16.msra.mxu0 %v2318
    %2563 = vmatpush.bf16.msra.mxu0 %v2302
    %2564 = vmatpush.bf16.msra.mxu0 %v2286
    %2565 = vmatpush.bf16.msra.mxu0 %v2270
    %2566 = vmatpush.bf16.msra.mxu0 %v2254
    %2567 = vmatpush.bf16.msra.mxu0 %v2238
    %2568 = vmatmul.bf16.gmra.mxu0 %v1684
    %v2569 = vpop.f32.mrf.mxu0
    %v2570 = vadd.f32 %v1822, %v2569
    %v2571 = vpop.f32.mrf.mxu0
    %v2572 = vadd.f32 %v1822, %v2571
    %2573 = vmatmul.bf16.gmra.mxu0 %v1685
    %v2574 = vpop.f32.mrf.mxu0
    %v2575 = vadd.f32 %v1822, %v2574
    %v2576 = vpop.f32.mrf.mxu0
    %v2577 = vadd.f32 %v1822, %v2576
    %2578 = vmatmul.bf16.gmra.mxu0 %v1686
    %v2579 = vpop.f32.mrf.mxu0
    %v2580 = vadd.f32 %v1822, %v2579
    %v2581 = vpop.f32.mrf.mxu0
    %2582 = vdwg.mxu0
    %2583 = vmatpush.bf16.msra.mxu0 %v2351
    %2584 = vmatpush.bf16.msra.mxu0 %v2335
    %2585 = vmatpush.bf16.msra.mxu0 %v2319
    %2586 = vmatpush.bf16.msra.mxu0 %v2303
    %2587 = vmatpush.bf16.msra.mxu0 %v2287
    %2588 = vmatpush.bf16.msra.mxu0 %v2271
    %2589 = vmatpush.bf16.msra.mxu0 %v2255
    %2590 = vmatpush.bf16.msra.mxu0 %v2239
    %2591 = vmatmul.bf16.gmra.mxu0 %v1684
    %v2592 = vpop.f32.mrf.mxu0
    %v2593 = vadd.f32 %v1823, %v2592
    %v2594 = vpop.f32.mrf.mxu0
    %v2595 = vadd.f32 %v1823, %v2594
    %2596 = vmatmul.bf16.gmra.mxu0 %v1685
    %v2597 = vpop.f32.mrf.mxu0
    %v2598 = vadd.f32 %v1823, %v2597
    %v2599 = vpop.f32.mrf.mxu0
    %v2600 = vadd.f32 %v1823, %v2599
    %2601 = vmatmul.bf16.gmra.mxu0 %v1686
    %v2602 = vpop.f32.mrf.mxu0
    %v2603 = vadd.f32 %v1823, %v2602
    %v2604 = vpop.f32.mrf.mxu0
    %2605 = vdwg.mxu0
    %2606 = vmatpush.bf16.msra.mxu0 %v2352
    %2607 = vmatpush.bf16.msra.mxu0 %v2336
    %2608 = vmatpush.bf16.msra.mxu0 %v2320
    %2609 = vmatpush.bf16.msra.mxu0 %v2304
    %2610 = vmatpush.bf16.msra.mxu0 %v2288
    %2611 = vmatpush.bf16.msra.mxu0 %v2272
    %2612 = vmatpush.bf16.msra.mxu0 %v2256
    %2613 = vmatpush.bf16.msra.mxu0 %v2240
    %2614 = vmatmul.bf16.gmra.mxu0 %v1684
    %v2615 = vpop.f32.mrf.mxu0
    %v2616 = vadd.f32 %v1824, %v2615
    %v2617 = vpop.f32.mrf.mxu0
    %v2618 = vadd.f32 %v1824, %v2617
    %2619 = vmatmul.bf16.gmra.mxu0 %v1685
    %v2620 = vpop.f32.mrf.mxu0
    %v2621 = vadd.f32 %v1824, %v2620
    %v2622 = vpop.f32.mrf.mxu0
    %v2623 = vadd.f32 %v1824, %v2622
    %2624 = vmatmul.bf16.gmra.mxu0 %v1686
    %v2625 = vpop.f32.mrf.mxu0
    %v2626 = vadd.f32 %v1824, %v2625
    %v2627 = vpop.f32.mrf.mxu0
    %2628 = vdwg.mxu0
    %2629 = vmatpush.bf16.msra.mxu0 %v2353
    %2630 = vmatpush.bf16.msra.mxu0 %v2337
    %2631 = vmatpush.bf16.msra.mxu0 %v2321
    %2632 = vmatpush.bf16.msra.mxu0 %v2305
    %2633 = vmatpush.bf16.msra.mxu0 %v2289
    %2634 = vmatpush.bf16.msra.mxu0 %v2273
    %2635 = vmatpush.bf16.msra.mxu0 %v2257
    %2636 = vmatpush.bf16.msra.mxu0 %v2241
    %2637 = vmatmul.bf16.gmra.mxu0 %v1684
    %v2638 = vpop.f32.mrf.mxu0
    %v2639 = vadd.f32 %v1825, %v2638
    %v2640 = vpop.f32.mrf.mxu0
    %v2641 = vadd.f32 %v1825, %v2640
    %2642 = vmatmul.bf16.gmra.mxu0 %v1685
    %v2643 = vpop.f32.mrf.mxu0
    %v2644 = vadd.f32 %v1825, %v2643
    %v2645 = vpop.f32.mrf.mxu0
    %v2646 = vadd.f32 %v1825, %v2645
    %2647 = vmatmul.bf16.gmra.mxu0 %v1686
    %v2648 = vpop.f32.mrf.mxu0
    %v2649 = vadd.f32 %v1825, %v2648
    %v2650 = vpop.f32.mrf.mxu0
    %2651 = vdwg.mxu0
    %2652 = vmatpush.bf16.msra.mxu0 %v2354
    %2653 = vmatpush.bf16.msra.mxu0 %v2338
    %2654 = vmatpush.bf16.msra.mxu0 %v2322
    %2655 = vmatpush.bf16.msra.mxu0 %v2306
    %2656 = vmatpush.bf16.msra.mxu0 %v2290
    %2657 = vmatpush.bf16.msra.mxu0 %v2274
    %2658 = vmatpush.bf16.msra.mxu0 %v2258
    %2659 = vmatpush.bf16.msra.mxu0 %v2242
    %2660 = vmatmul.bf16.gmra.mxu0 %v1684
    %v2661 = vpop.f32.mrf.mxu0
    %v2662 = vadd.f32 %v1826, %v2661
    %v2663 = vpop.f32.mrf.mxu0
    %v2664 = vadd.f32 %v1826, %v2663
    %2665 = vmatmul.bf16.gmra.mxu0 %v1685
    %v2666 = vpop.f32.mrf.mxu0
    %v2667 = vadd.f32 %v1826, %v2666
    %v2668 = vpop.f32.mrf.mxu0
    %v2669 = vadd.f32 %v1826, %v2668
    %2670 = vmatmul.bf16.gmra.mxu0 %v1686
    %v2671 = vpop.f32.mrf.mxu0
    %v2672 = vadd.f32 %v1826, %v2671
    %v2673 = vpop.f32.mrf.mxu0
    %2674 = vdwg.mxu0
    %2675 = vmatpush.bf16.msra.mxu0 %v2355
    %2676 = vmatpush.bf16.msra.mxu0 %v2339
    %2677 = vmatpush.bf16.msra.mxu0 %v2323
    %2678 = vmatpush.bf16.msra.mxu0 %v2307
    %2679 = vmatpush.bf16.msra.mxu0 %v2291
    %2680 = vmatpush.bf16.msra.mxu0 %v2275
    %2681 = vmatpush.bf16.msra.mxu0 %v2259
    %2682 = vmatpush.bf16.msra.mxu0 %v2243
    %2683 = vmatmul.bf16.gmra.mxu0 %v1684
    %v2684 = vpop.f32.mrf.mxu0
    %v2685 = vadd.f32 %v1827, %v2684
    %v2686 = vpop.f32.mrf.mxu0
    %v2687 = vadd.f32 %v1827, %v2686
    %2688 = vmatmul.bf16.gmra.mxu0 %v1685
    %v2689 = vpop.f32.mrf.mxu0
    %v2690 = vadd.f32 %v1827, %v2689
    %v2691 = vpop.f32.mrf.mxu0
    %v2692 = vadd.f32 %v1827, %v2691
    %2693 = vmatmul.bf16.gmra.mxu0 %v1686
    %v2694 = vpop.f32.mrf.mxu0
    %v2695 = vadd.f32 %v1827, %v2694
    %v2696 = vpop.f32.mrf.mxu0
    %2697 = vdwg.mxu0
    %2698 = vmatpush.bf16.msra.mxu0 %v2356
    %2699 = vmatpush.bf16.msra.mxu0 %v2340
    %2700 = vmatpush.bf16.msra.mxu0 %v2324
    %2701 = vmatpush.bf16.msra.mxu0 %v2308
    %2702 = vmatpush.bf16.msra.mxu0 %v2292
    %2703 = vmatpush.bf16.msra.mxu0 %v2276
    %2704 = vmatpush.bf16.msra.mxu0 %v2260
    %2705 = vmatpush.bf16.msra.mxu0 %v2244
    %2706 = vmatmul.bf16.gmra.mxu0 %v1684
    %v2707 = vpop.f32.mrf.mxu0
    %v2708 = vadd.f32 %v1828, %v2707
    %v2709 = vpop.f32.mrf.mxu0
    %v2710 = vadd.f32 %v1828, %v2709
    %2711 = vmatmul.bf16.gmra.mxu0 %v1685
    %v2712 = vpop.f32.mrf.mxu0
    %v2713 = vadd.f32 %v1828, %v2712
    %v2714 = vpop.f32.mrf.mxu0
    %v2715 = vadd.f32 %v1828, %v2714
    %2716 = vmatmul.bf16.gmra.mxu0 %v1686
    %v2717 = vpop.f32.mrf.mxu0
    %v2718 = vadd.f32 %v1828, %v2717
    %v2719 = vpop.f32.mrf.mxu0
    %2720 = vdwg.mxu0
    %2721 = vmatpush.bf16.msra.mxu0 %v2357
    %2722 = vmatpush.bf16.msra.mxu0 %v2341
    %2723 = vmatpush.bf16.msra.mxu0 %v2325
    %2724 = vmatpush.bf16.msra.mxu0 %v2309
    %2725 = vmatpush.bf16.msra.mxu0 %v2293
    %2726 = vmatpush.bf16.msra.mxu0 %v2277
    %2727 = vmatpush.bf16.msra.mxu0 %v2261
    %2728 = vmatpush.bf16.msra.mxu0 %v2245
    %2729 = vmatmul.bf16.gmra.mxu0 %v1684
    %v2730 = vpop.f32.mrf.mxu0
    %v2731 = vadd.f32 %v1829, %v2730
    %v2732 = vpop.f32.mrf.mxu0
    %v2733 = vadd.f32 %v1829, %v2732
    %2734 = vmatmul.bf16.gmra.mxu0 %v1685
    %v2735 = vpop.f32.mrf.mxu0
    %v2736 = vadd.f32 %v1829, %v2735
    %v2737 = vpop.f32.mrf.mxu0
    %v2738 = vadd.f32 %v1829, %v2737
    %2739 = vmatmul.bf16.gmra.mxu0 %v1686
    %v2740 = vpop.f32.mrf.mxu0
    %v2741 = vadd.f32 %v1829, %v2740
    %v2742 = vpop.f32.mrf.mxu0
    %2743 = vdwg.mxu0
    %2744 = vmatpush.bf16.msra.mxu0 %v2358
    %2745 = vmatpush.bf16.msra.mxu0 %v2342
    %2746 = vmatpush.bf16.msra.mxu0 %v2326
    %2747 = vmatpush.bf16.msra.mxu0 %v2310
    %2748 = vmatpush.bf16.msra.mxu0 %v2294
    %2749 = vmatpush.bf16.msra.mxu0 %v2278
    %2750 = vmatpush.bf16.msra.mxu0 %v2262
    %2751 = vmatpush.bf16.msra.mxu0 %v2246
    %2752 = vmatmul.bf16.gmra.mxu0 %v1684
    %v2753 = vpop.f32.mrf.mxu0
    %v2754 = vadd.f32 %v1830, %v2753
    %v2755 = vpop.f32.mrf.mxu0
    %v2756 = vadd.f32 %v1830, %v2755
    %2757 = vmatmul.bf16.gmra.mxu0 %v1685
    %v2758 = vpop.f32.mrf.mxu0
    %v2759 = vadd.f32 %v1830, %v2758
    %v2760 = vpop.f32.mrf.mxu0
    %v2761 = vadd.f32 %v1830, %v2760
    %2762 = vmatmul.bf16.gmra.mxu0 %v1686
    %v2763 = vpop.f32.mrf.mxu0
    %v2764 = vadd.f32 %v1830, %v2763
    %v2765 = vpop.f32.mrf.mxu0
    %2766 = vdwg.mxu0
    %2767 = vmatpush.bf16.msra.mxu0 %v2359
    %2768 = vmatpush.bf16.msra.mxu0 %v2343
    %2769 = vmatpush.bf16.msra.mxu0 %v2327
    %2770 = vmatpush.bf16.msra.mxu0 %v2311
    %2771 = vmatpush.bf16.msra.mxu0 %v2295
    %2772 = vmatpush.bf16.msra.mxu0 %v2279
    %2773 = vmatpush.bf16.msra.mxu0 %v2263
    %2774 = vmatpush.bf16.msra.mxu0 %v2247
    %2775 = vmatmul.bf16.gmra.mxu0 %v1684
    %v2776 = vpop.f32.mrf.mxu0
    %v2777 = vadd.f32 %v1831, %v2776
    %v2778 = vpop.f32.mrf.mxu0
    %v2779 = vadd.f32 %v1831, %v2778
    %2780 = vmatmul.bf16.gmra.mxu0 %v1685
    %v2781 = vpop.f32.mrf.mxu0
    %v2782 = vadd.f32 %v1831, %v2781
    %v2783 = vpop.f32.mrf.mxu0
    %v2784 = vadd.f32 %v1831, %v2783
    %2785 = vmatmul.bf16.gmra.mxu0 %v1686
    %v2786 = vpop.f32.mrf.mxu0
    %v2787 = vadd.f32 %v1831, %v2786
    %v2788 = vpop.f32.mrf.mxu0
    %2789 = vdwg.mxu0
    %2790 = vmatpush.bf16.msra.mxu0 %v2360
    %2791 = vmatpush.bf16.msra.mxu0 %v2344
    %2792 = vmatpush.bf16.msra.mxu0 %v2328
    %2793 = vmatpush.bf16.msra.mxu0 %v2312
    %2794 = vmatpush.bf16.msra.mxu0 %v2296
    %2795 = vmatpush.bf16.msra.mxu0 %v2280
    %2796 = vmatpush.bf16.msra.mxu0 %v2264
    %2797 = vmatpush.bf16.msra.mxu0 %v2248
    %2798 = vmatmul.bf16.gmra.mxu0 %v1684
    %v2799 = vpop.f32.mrf.mxu0
    %v2800 = vadd.f32 %v1832, %v2799
    %v2801 = vpop.f32.mrf.mxu0
    %v2802 = vadd.f32 %v1832, %v2801
    %2803 = vmatmul.bf16.gmra.mxu0 %v1685
    %v2804 = vpop.f32.mrf.mxu0
    %v2805 = vadd.f32 %v1832, %v2804
    %v2806 = vpop.f32.mrf.mxu0
    %v2807 = vadd.f32 %v1832, %v2806
    %2808 = vmatmul.bf16.gmra.mxu0 %v1686
    %v2809 = vpop.f32.mrf.mxu0
    %v2810 = vadd.f32 %v1832, %v2809
    %v2811 = vpop.f32.mrf.mxu0
    %2812 = vdwg.mxu0
    %2813 = vmatpush.bf16.msra.mxu0 %v2361
    %2814 = vmatpush.bf16.msra.mxu0 %v2345
    %2815 = vmatpush.bf16.msra.mxu0 %v2329
    %2816 = vmatpush.bf16.msra.mxu0 %v2313
    %2817 = vmatpush.bf16.msra.mxu0 %v2297
    %2818 = vmatpush.bf16.msra.mxu0 %v2281
    %2819 = vmatpush.bf16.msra.mxu0 %v2265
    %2820 = vmatpush.bf16.msra.mxu0 %v2249
    %2821 = vmatmul.bf16.gmra.mxu0 %v1684
    %v2822 = vpop.f32.mrf.mxu0
    %v2823 = vadd.f32 %v1833, %v2822
    %v2824 = vpop.f32.mrf.mxu0
    %v2825 = vadd.f32 %v1833, %v2824
    %2826 = vmatmul.bf16.gmra.mxu0 %v1685
    %v2827 = vpop.f32.mrf.mxu0
    %v2828 = vadd.f32 %v1833, %v2827
    %v2829 = vpop.f32.mrf.mxu0
    %v2830 = vadd.f32 %v1833, %v2829
    %2831 = vmatmul.bf16.gmra.mxu0 %v1686
    %v2832 = vpop.f32.mrf.mxu0
    %v2833 = vadd.f32 %v1833, %v2832
    %v2834 = vpop.f32.mrf.mxu0
    %2835 = vdwg.mxu0
    %2836 = vmatpush.bf16.msra.mxu0 %v2362
    %2837 = vmatpush.bf16.msra.mxu0 %v2346
    %2838 = vmatpush.bf16.msra.mxu0 %v2330
    %2839 = vmatpush.bf16.msra.mxu0 %v2314
    %2840 = vmatpush.bf16.msra.mxu0 %v2298
    %2841 = vmatpush.bf16.msra.mxu0 %v2282
    %2842 = vmatpush.bf16.msra.mxu0 %v2266
    %2843 = vmatpush.bf16.msra.mxu0 %v2250
    %2844 = vmatmul.bf16.gmra.mxu0 %v1684
    %v2845 = vpop.f32.mrf.mxu0
    %v2846 = vadd.f32 %v1834, %v2845
    %v2847 = vpop.f32.mrf.mxu0
    %v2848 = vadd.f32 %v1834, %v2847
    %2849 = vmatmul.bf16.gmra.mxu0 %v1685
    %v2850 = vpop.f32.mrf.mxu0
    %v2851 = vadd.f32 %v1834, %v2850
    %v2852 = vpop.f32.mrf.mxu0
    %v2853 = vadd.f32 %v1834, %v2852
    %2854 = vmatmul.bf16.gmra.mxu0 %v1686
    %v2855 = vpop.f32.mrf.mxu0
    %v2856 = vadd.f32 %v1834, %v2855
    %v2857 = vpop.f32.mrf.mxu0
    %2858 = vdwg.mxu0
    %v2859 = vmax.f32 %v2501, 0.0
    %v2860 = vmax.f32 %v2524, 0.0
    %v2861 = vmax.f32 %v2547, 0.0
    %v2862 = vmax.f32 %v2570, 0.0
    %v2863 = vmax.f32 %v2593, 0.0
    %v2864 = vmax.f32 %v2616, 0.0
    %v2865 = vmax.f32 %v2639, 0.0
    %v2866 = vmax.f32 %v2662, 0.0
    %v2867 = vmax.f32 %v2685, 0.0
    %v2868 = vmax.f32 %v2708, 0.0
    %v2869 = vmax.f32 %v2731, 0.0
    %v2870 = vmax.f32 %v2754, 0.0
    %v2871 = vmax.f32 %v2777, 0.0
    %v2872 = vmax.f32 %v2800, 0.0
    %v2873 = vmax.f32 %v2823, 0.0
    %v2874 = vmax.f32 %v2846, 0.0
    %v2875 = vmax.f32 %v2503, 0.0
    %v2876 = vmax.f32 %v2526, 0.0
    %v2877 = vmax.f32 %v2549, 0.0
    %v2878 = vmax.f32 %v2572, 0.0
    %v2879 = vmax.f32 %v2595, 0.0
    %v2880 = vmax.f32 %v2618, 0.0
    %v2881 = vmax.f32 %v2641, 0.0
    %v2882 = vmax.f32 %v2664, 0.0
    %v2883 = vmax.f32 %v2687, 0.0
    %v2884 = vmax.f32 %v2710, 0.0
    %v2885 = vmax.f32 %v2733, 0.0
    %v2886 = vmax.f32 %v2756, 0.0
    %v2887 = vmax.f32 %v2779, 0.0
    %v2888 = vmax.f32 %v2802, 0.0
    %v2889 = vmax.f32 %v2825, 0.0
    %v2890 = vmax.f32 %v2848, 0.0
    %v2891 = vmax.f32 %v2506, 0.0
    %v2892 = vmax.f32 %v2529, 0.0
    %v2893 = vmax.f32 %v2552, 0.0
    %v2894 = vmax.f32 %v2575, 0.0
    %v2895 = vmax.f32 %v2598, 0.0
    %v2896 = vmax.f32 %v2621, 0.0
    %v2897 = vmax.f32 %v2644, 0.0
    %v2898 = vmax.f32 %v2667, 0.0
    %v2899 = vmax.f32 %v2690, 0.0
    %v2900 = vmax.f32 %v2713, 0.0
    %v2901 = vmax.f32 %v2736, 0.0
    %v2902 = vmax.f32 %v2759, 0.0
    %v2903 = vmax.f32 %v2782, 0.0
    %v2904 = vmax.f32 %v2805, 0.0
    %v2905 = vmax.f32 %v2828, 0.0
    %v2906 = vmax.f32 %v2851, 0.0
    %v2907 = vmax.f32 %v2508, 0.0
    %v2908 = vmax.f32 %v2531, 0.0
    %v2909 = vmax.f32 %v2554, 0.0
    %v2910 = vmax.f32 %v2577, 0.0
    %v2911 = vmax.f32 %v2600, 0.0
    %v2912 = vmax.f32 %v2623, 0.0
    %v2913 = vmax.f32 %v2646, 0.0
    %v2914 = vmax.f32 %v2669, 0.0
    %v2915 = vmax.f32 %v2692, 0.0
    %v2916 = vmax.f32 %v2715, 0.0
    %v2917 = vmax.f32 %v2738, 0.0
    %v2918 = vmax.f32 %v2761, 0.0
    %v2919 = vmax.f32 %v2784, 0.0
    %v2920 = vmax.f32 %v2807, 0.0
    %v2921 = vmax.f32 %v2830, 0.0
    %v2922 = vmax.f32 %v2853, 0.0
    %v2923 = vmax.f32 %v2511, 0.0
    %v2924 = vmax.f32 %v2534, 0.0
    %v2925 = vmax.f32 %v2557, 0.0
    %v2926 = vmax.f32 %v2580, 0.0
    %v2927 = vmax.f32 %v2603, 0.0
    %v2928 = vmax.f32 %v2626, 0.0
    %v2929 = vmax.f32 %v2649, 0.0
    %v2930 = vmax.f32 %v2672, 0.0
    %v2931 = vmax.f32 %v2695, 0.0
    %v2932 = vmax.f32 %v2718, 0.0
    %v2933 = vmax.f32 %v2741, 0.0
    %v2934 = vmax.f32 %v2764, 0.0
    %v2935 = vmax.f32 %v2787, 0.0
    %v2936 = vmax.f32 %v2810, 0.0
    %v2937 = vmax.f32 %v2833, 0.0
    %v2938 = vmax.f32 %v2856, 0.0
    %v2939 = vpack.c.bf16 %v2875, %v2859
    %v2940 = vpack.c.bf16 %v2876, %v2860
    %v2941 = vpack.c.bf16 %v2877, %v2861
    %v2942 = vpack.c.bf16 %v2878, %v2862
    %v2943 = vpack.c.bf16 %v2879, %v2863
    %v2944 = vpack.c.bf16 %v2880, %v2864
    %v2945 = vpack.c.bf16 %v2881, %v2865
    %v2946 = vpack.c.bf16 %v2882, %v2866
    %v2947 = vpack.c.bf16 %v2883, %v2867
    %v2948 = vpack.c.bf16 %v2884, %v2868
    %v2949 = vpack.c.bf16 %v2885, %v2869
    %v2950 = vpack.c.bf16 %v2886, %v2870
    %v2951 = vpack.c.bf16 %v2887, %v2871
    %v2952 = vpack.c.bf16 %v2888, %v2872
    %v2953 = vpack.c.bf16 %v2889, %v2873
    %v2954 = vpack.c.bf16 %v2890, %v2874
    %v2955 = vpack.c.bf16 %v2907, %v2891
    %v2956 = vpack.c.bf16 %v2908, %v2892
    %v2957 = vpack.c.bf16 %v2909, %v2893
    %v2958 = vpack.c.bf16 %v2910, %v2894
    %v2959 = vpack.c.bf16 %v2911, %v2895
    %v2960 = vpack.c.bf16 %v2912, %v2896
    %v2961 = vpack.c.bf16 %v2913, %v2897
    %v2962 = vpack.c.bf16 %v2914, %v2898
    %v2963 = vpack.c.bf16 %v2915, %v2899
    %v2964 = vpack.c.bf16 %v2916, %v2900
    %v2965 = vpack.c.bf16 %v2917, %v2901
    %v2966 = vpack.c.bf16 %v2918, %v2902
    %v2967 = vpack.c.bf16 %v2919, %v2903
    %v2968 = vpack.c.bf16 %v2920, %v2904
    %v2969 = vpack.c.bf16 %v2921, %v2905
    %v2970 = vpack.c.bf16 %v2922, %v2906
    %v2971 = vpack.c.bf16 %v2923, %v2923
    %v2972 = vpack.c.bf16 %v2924, %v2924
    %v2973 = vpack.c.bf16 %v2925, %v2925
    %v2974 = vpack.c.bf16 %v2926, %v2926
    %v2975 = vpack.c.bf16 %v2927, %v2927
    %v2976 = vpack.c.bf16 %v2928, %v2928
    %v2977 = vpack.c.bf16 %v2929, %v2929
    %v2978 = vpack.c.bf16 %v2930, %v2930
    %v2979 = vpack.c.bf16 %v2931, %v2931
    %v2980 = vpack.c.bf16 %v2932, %v2932
    %v2981 = vpack.c.bf16 %v2933, %v2933
    %v2982 = vpack.c.bf16 %v2934, %v2934
    %v2983 = vpack.c.bf16 %v2935, %v2935
    %v2984 = vpack.c.bf16 %v2936, %v2936
    %v2985 = vpack.c.bf16 %v2937, %v2937
    %v2986 = vpack.c.bf16 %v2938, %v2938
    %v2987 = vld [vmem:[#allocation14] sm:$0xf]
    %v2988 = vld [vmem:[#allocation14 + $0x4] sm:$0xf]
    %v2989 = vld [vmem:[#allocation14 + $0x8] sm:$0xf]
    %v2990 = vld [vmem:[#allocation14 + $0xc] sm:$0xf]
    %v2991 = vld [vmem:[#allocation14 + $0x10] sm:$0xf]
    %v2992 = vld [vmem:[#allocation14 + $0x14] sm:$0xf]
    %v2993 = vld [vmem:[#allocation14 + $0x18] sm:$0xf]
    %v2994 = vld [vmem:[#allocation14 + $0x1c] sm:$0xf]
    %v2995 = vld [vmem:[#allocation14 + $0x20] sm:$0xf]
    %v2996 = vld [vmem:[#allocation14 + $0x24] sm:$0xf]
    %v2997 = vld [vmem:[#allocation14 + $0x28] sm:$0xf]
    %v2998 = vld [vmem:[#allocation14 + $0x2c] sm:$0xf]
    %v2999 = vld [vmem:[#allocation14 + $0x30] sm:$0xf]
    %v3000 = vld [vmem:[#allocation14 + $0x34] sm:$0xf]
    %v3001 = vld [vmem:[#allocation14 + $0x38] sm:$0xf]
    %v3002 = vld [vmem:[#allocation14 + $0x3c] sm:$0xf]
    %v3003 = vld [vmem:[#allocation14 + $0x40] sm:$0xf]
    %v3004 = vld [vmem:[#allocation14 + $0x44] sm:$0xf]
    %v3005 = vld [vmem:[#allocation14 + $0x48] sm:$0xf]
    %v3006 = vld [vmem:[#allocation14 + $0x4c] sm:$0xf]
    %v3007 = vld [vmem:[#allocation14 + $0x50] sm:$0xf]
    %v3008 = vld [vmem:[#allocation14 + $0x54] sm:$0xf]
    %v3009 = vld [vmem:[#allocation14 + $0x58] sm:$0xf]
    %v3010 = vld [vmem:[#allocation14 + $0x5c] sm:$0xf]
    %v3011 = vld [vmem:[#allocation14 + $0x60] sm:$0xf]
    %v3012 = vld [vmem:[#allocation14 + $0x64] sm:$0xf]
    %v3013 = vld [vmem:[#allocation14 + $0x68] sm:$0xf]
    %v3014 = vld [vmem:[#allocation14 + $0x6c] sm:$0xf]
    %v3015 = vld [vmem:[#allocation14 + $0x70] sm:$0xf]
    %v3016 = vld [vmem:[#allocation14 + $0x74] sm:$0xf]
    %v3017 = vld [vmem:[#allocation14 + $0x78] sm:$0xf]
    %v3018 = vld [vmem:[#allocation14 + $0x7c] sm:$0xf]
    %v3019 = vld [vmem:[#allocation14 + $0x80] sm:$0xf]
    %v3020 = vld [vmem:[#allocation14 + $0x84] sm:$0xf]
    %v3021 = vld [vmem:[#allocation14 + $0x88] sm:$0xf]
    %v3022 = vld [vmem:[#allocation14 + $0x8c] sm:$0xf]
    %v3023 = vld [vmem:[#allocation14 + $0x90] sm:$0xf]
    %v3024 = vld [vmem:[#allocation14 + $0x94] sm:$0xf]
    %v3025 = vld [vmem:[#allocation14 + $0x98] sm:$0xf]
    %v3026 = vld [vmem:[#allocation14 + $0x9c] sm:$0xf]
    %v3027 = vld [vmem:[#allocation14 + $0xa0] sm:$0xf]
    %v3028 = vld [vmem:[#allocation14 + $0xa4] sm:$0xf]
    %v3029 = vld [vmem:[#allocation14 + $0xa8] sm:$0xf]
    %v3030 = vld [vmem:[#allocation14 + $0xac] sm:$0xf]
    %v3031 = vld [vmem:[#allocation14 + $0xb0] sm:$0xf]
    %v3032 = vld [vmem:[#allocation14 + $0xb4] sm:$0xf]
    %v3033 = vld [vmem:[#allocation14 + $0xb8] sm:$0xf]
    %v3034 = vld [vmem:[#allocation14 + $0xbc] sm:$0xf]
    %v3035 = vld [vmem:[#allocation14 + $0xc0] sm:$0xf]
    %v3036 = vld [vmem:[#allocation14 + $0xc4] sm:$0xf]
    %v3037 = vld [vmem:[#allocation14 + $0xc8] sm:$0xf]
    %v3038 = vld [vmem:[#allocation14 + $0xcc] sm:$0xf]
    %v3039 = vld [vmem:[#allocation14 + $0xd0] sm:$0xf]
    %v3040 = vld [vmem:[#allocation14 + $0xd4] sm:$0xf]
    %v3041 = vld [vmem:[#allocation14 + $0xd8] sm:$0xf]
    %v3042 = vld [vmem:[#allocation14 + $0xdc] sm:$0xf]
    %v3043 = vld [vmem:[#allocation14 + $0xe0] sm:$0xf]
    %v3044 = vld [vmem:[#allocation14 + $0xe4] sm:$0xf]
    %v3045 = vld [vmem:[#allocation14 + $0xe8] sm:$0xf]
    %v3046 = vld [vmem:[#allocation14 + $0xec] sm:$0xf]
    %v3047 = vld [vmem:[#allocation14 + $0xf0] sm:$0xf]
    %v3048 = vld [vmem:[#allocation14 + $0xf4] sm:$0xf]
    %v3049 = vld [vmem:[#allocation14 + $0xf8] sm:$0xf]
    %v3050 = vld [vmem:[#allocation14 + $0xfc] sm:$0xf]
    %v3051 = vld [vmem:[#allocation14 + $0x100] sm:$0xf]
    %v3052 = vld [vmem:[#allocation14 + $0x104] sm:$0xf]
    %v3053 = vld [vmem:[#allocation14 + $0x108] sm:$0xf]
    %v3054 = vld [vmem:[#allocation14 + $0x10c] sm:$0xf]
    %v3055 = vld [vmem:[#allocation14 + $0x110] sm:$0xf]
    %v3056 = vld [vmem:[#allocation14 + $0x114] sm:$0xf]
    %v3057 = vld [vmem:[#allocation14 + $0x118] sm:$0xf]
    %v3058 = vld [vmem:[#allocation14 + $0x11c] sm:$0xf]
    %v3059 = vld [vmem:[#allocation14 + $0x120] sm:$0xf]
    %v3060 = vld [vmem:[#allocation14 + $0x124] sm:$0xf]
    %v3061 = vld [vmem:[#allocation14 + $0x128] sm:$0xf]
    %v3062 = vld [vmem:[#allocation14 + $0x12c] sm:$0xf]
    %v3063 = vld [vmem:[#allocation14 + $0x130] sm:$0xf]
    %v3064 = vld [vmem:[#allocation14 + $0x134] sm:$0xf]
    %v3065 = vld [vmem:[#allocation14 + $0x138] sm:$0xf]
    %v3066 = vld [vmem:[#allocation14 + $0x13c] sm:$0xf]
    %v3067 = vld [vmem:[#allocation14 + $0x140] sm:$0xf]
    %v3068 = vld [vmem:[#allocation14 + $0x144] sm:$0xf]
    %v3069 = vld [vmem:[#allocation14 + $0x148] sm:$0xf]
    %v3070 = vld [vmem:[#allocation14 + $0x14c] sm:$0xf]
    %v3071 = vld [vmem:[#allocation14 + $0x150] sm:$0xf]
    %v3072 = vld [vmem:[#allocation14 + $0x154] sm:$0xf]
    %v3073 = vld [vmem:[#allocation14 + $0x158] sm:$0xf]
    %v3074 = vld [vmem:[#allocation14 + $0x15c] sm:$0xf]
    %v3075 = vld [vmem:[#allocation14 + $0x160] sm:$0xf]
    %v3076 = vld [vmem:[#allocation14 + $0x164] sm:$0xf]
    %v3077 = vld [vmem:[#allocation14 + $0x168] sm:$0xf]
    %v3078 = vld [vmem:[#allocation14 + $0x16c] sm:$0xf]
    %v3079 = vld [vmem:[#allocation14 + $0x170] sm:$0xf]
    %v3080 = vld [vmem:[#allocation14 + $0x174] sm:$0xf]
    %v3081 = vld [vmem:[#allocation14 + $0x178] sm:$0xf]
    %v3082 = vld [vmem:[#allocation14 + $0x17c] sm:$0xf]
    %v3083 = vld [vmem:[#allocation14 + $0x180] sm:$0xf]
    %v3084 = vld [vmem:[#allocation14 + $0x184] sm:$0xf]
    %v3085 = vld [vmem:[#allocation14 + $0x188] sm:$0xf]
    %v3086 = vld [vmem:[#allocation14 + $0x18c] sm:$0xf]
    %v3087 = vld [vmem:[#allocation14 + $0x190] sm:$0xf]
    %v3088 = vld [vmem:[#allocation14 + $0x194] sm:$0xf]
    %v3089 = vld [vmem:[#allocation14 + $0x198] sm:$0xf]
    %v3090 = vld [vmem:[#allocation14 + $0x19c] sm:$0xf]
    %v3091 = vld [vmem:[#allocation14 + $0x1a0] sm:$0xf]
    %v3092 = vld [vmem:[#allocation14 + $0x1a4] sm:$0xf]
    %v3093 = vld [vmem:[#allocation14 + $0x1a8] sm:$0xf]
    %v3094 = vld [vmem:[#allocation14 + $0x1ac] sm:$0xf]
    %v3095 = vld [vmem:[#allocation14 + $0x1b0] sm:$0xf]
    %v3096 = vld [vmem:[#allocation14 + $0x1b4] sm:$0xf]
    %v3097 = vld [vmem:[#allocation14 + $0x1b8] sm:$0xf]
    %v3098 = vld [vmem:[#allocation14 + $0x1bc] sm:$0xf]
    %v3099 = vld [vmem:[#allocation14 + $0x1c0] sm:$0xf]
    %v3100 = vld [vmem:[#allocation14 + $0x1c4] sm:$0xf]
    %v3101 = vld [vmem:[#allocation14 + $0x1c8] sm:$0xf]
    %v3102 = vld [vmem:[#allocation14 + $0x1cc] sm:$0xf]
    %v3103 = vld [vmem:[#allocation14 + $0x1d0] sm:$0xf]
    %v3104 = vld [vmem:[#allocation14 + $0x1d4] sm:$0xf]
    %v3105 = vld [vmem:[#allocation14 + $0x1d8] sm:$0xf]
    %v3106 = vld [vmem:[#allocation14 + $0x1dc] sm:$0xf]
    %v3107 = vld [vmem:[#allocation14 + $0x1e0] sm:$0xf]
    %v3108 = vld [vmem:[#allocation14 + $0x1e4] sm:$0xf]
    %v3109 = vld [vmem:[#allocation14 + $0x1e8] sm:$0xf]
    %v3110 = vld [vmem:[#allocation14 + $0x1ec] sm:$0xf]
    %v3111 = vld [vmem:[#allocation14 + $0x1f0] sm:$0xf]
    %v3112 = vld [vmem:[#allocation14 + $0x1f4] sm:$0xf]
    %v3113 = vld [vmem:[#allocation14 + $0x1f8] sm:$0xf]
    %v3114 = vld [vmem:[#allocation14 + $0x1fc] sm:$0xf]
    %v3115 = vld [vmem:[#allocation14 + $0x200] sm:$0xf]
    %v3116 = vld [vmem:[#allocation14 + $0x204] sm:$0xf]
    %v3117 = vld [vmem:[#allocation14 + $0x208] sm:$0xf]
    %v3118 = vld [vmem:[#allocation14 + $0x20c] sm:$0xf]
    %v3119 = vld [vmem:[#allocation14 + $0x210] sm:$0xf]
    %v3120 = vld [vmem:[#allocation14 + $0x214] sm:$0xf]
    %v3121 = vld [vmem:[#allocation14 + $0x218] sm:$0xf]
    %v3122 = vld [vmem:[#allocation14 + $0x21c] sm:$0xf]
    %v3123 = vld [vmem:[#allocation14 + $0x220] sm:$0xf]
    %v3124 = vld [vmem:[#allocation14 + $0x224] sm:$0xf]
    %v3125 = vld [vmem:[#allocation14 + $0x228] sm:$0xf]
    %v3126 = vld [vmem:[#allocation14 + $0x22c] sm:$0xf]
    %v3127 = vld [vmem:[#allocation14 + $0x230] sm:$0xf]
    %v3128 = vld [vmem:[#allocation14 + $0x234] sm:$0xf]
    %v3129 = vld [vmem:[#allocation14 + $0x238] sm:$0xf]
    %v3130 = vld [vmem:[#allocation14 + $0x23c] sm:$0xf]
    %v3131 = vld [vmem:[#allocation14 + $0x240] sm:$0xf]
    %v3132 = vld [vmem:[#allocation14 + $0x244] sm:$0xf]
    %v3133 = vld [vmem:[#allocation14 + $0x248] sm:$0xf]
    %v3134 = vld [vmem:[#allocation14 + $0x24c] sm:$0xf]
    %v3135 = vld [vmem:[#allocation14 + $0x250] sm:$0xf]
    %v3136 = vld [vmem:[#allocation14 + $0x254] sm:$0xf]
    %v3137 = vld [vmem:[#allocation14 + $0x258] sm:$0xf]
    %v3138 = vld [vmem:[#allocation14 + $0x25c] sm:$0xf]
    %v3139 = vld [vmem:[#allocation14 + $0x260] sm:$0xf]
    %v3140 = vld [vmem:[#allocation14 + $0x264] sm:$0xf]
    %v3141 = vld [vmem:[#allocation14 + $0x268] sm:$0xf]
    %v3142 = vld [vmem:[#allocation14 + $0x26c] sm:$0xf]
    %v3143 = vld [vmem:[#allocation14 + $0x270] sm:$0xf]
    %v3144 = vld [vmem:[#allocation14 + $0x274] sm:$0xf]
    %v3145 = vld [vmem:[#allocation14 + $0x278] sm:$0xf]
    %v3146 = vld [vmem:[#allocation14 + $0x27c] sm:$0xf]
    %v3147 = vld [vmem:[#allocation14 + $0x280] sm:$0xf]
    %v3148 = vld [vmem:[#allocation14 + $0x284] sm:$0xf]
    %v3149 = vld [vmem:[#allocation14 + $0x288] sm:$0xf]
    %v3150 = vld [vmem:[#allocation14 + $0x28c] sm:$0xf]
    %v3151 = vld [vmem:[#allocation14 + $0x290] sm:$0xf]
    %v3152 = vld [vmem:[#allocation14 + $0x294] sm:$0xf]
    %v3153 = vld [vmem:[#allocation14 + $0x298] sm:$0xf]
    %v3154 = vld [vmem:[#allocation14 + $0x29c] sm:$0xf]
    %v3155 = vld [vmem:[#allocation14 + $0x2a0] sm:$0xf]
    %v3156 = vld [vmem:[#allocation14 + $0x2a4] sm:$0xf]
    %v3157 = vld [vmem:[#allocation14 + $0x2a8] sm:$0xf]
    %v3158 = vld [vmem:[#allocation14 + $0x2ac] sm:$0xf]
    %v3159 = vld [vmem:[#allocation14 + $0x2b0] sm:$0xf]
    %v3160 = vld [vmem:[#allocation14 + $0x2b4] sm:$0xf]
    %v3161 = vld [vmem:[#allocation14 + $0x2b8] sm:$0xf]
    %v3162 = vld [vmem:[#allocation14 + $0x2bc] sm:$0xf]
    %v3163 = vld [vmem:[#allocation14 + $0x2c0] sm:$0xf]
    %v3164 = vld [vmem:[#allocation14 + $0x2c4] sm:$0xf]
    %v3165 = vld [vmem:[#allocation14 + $0x2c8] sm:$0xf]
    %v3166 = vld [vmem:[#allocation14 + $0x2cc] sm:$0xf]
    %v3167 = vld [vmem:[#allocation14 + $0x2d0] sm:$0xf]
    %v3168 = vld [vmem:[#allocation14 + $0x2d4] sm:$0xf]
    %v3169 = vld [vmem:[#allocation14 + $0x2d8] sm:$0xf]
    %v3170 = vld [vmem:[#allocation14 + $0x2dc] sm:$0xf]
    %v3171 = vld [vmem:[#allocation14 + $0x2e0] sm:$0xf]
    %v3172 = vld [vmem:[#allocation14 + $0x2e4] sm:$0xf]
    %v3173 = vld [vmem:[#allocation14 + $0x2e8] sm:$0xf]
    %v3174 = vld [vmem:[#allocation14 + $0x2ec] sm:$0xf]
    %v3175 = vld [vmem:[#allocation14 + $0x2f0] sm:$0xf]
    %v3176 = vld [vmem:[#allocation14 + $0x2f4] sm:$0xf]
    %v3177 = vld [vmem:[#allocation14 + $0x2f8] sm:$0xf]
    %v3178 = vld [vmem:[#allocation14 + $0x2fc] sm:$0xf]
    %v3179 = vld [vmem:[#allocation14 + $0x300] sm:$0xf]
    %v3180 = vld [vmem:[#allocation14 + $0x304] sm:$0xf]
    %v3181 = vld [vmem:[#allocation14 + $0x308] sm:$0xf]
    %v3182 = vld [vmem:[#allocation14 + $0x30c] sm:$0xf]
    %v3183 = vld [vmem:[#allocation14 + $0x310] sm:$0xf]
    %v3184 = vld [vmem:[#allocation14 + $0x314] sm:$0xf]
    %v3185 = vld [vmem:[#allocation14 + $0x318] sm:$0xf]
    %v3186 = vld [vmem:[#allocation14 + $0x31c] sm:$0xf]
    %v3187 = vld [vmem:[#allocation14 + $0x320] sm:$0xf]
    %v3188 = vld [vmem:[#allocation14 + $0x324] sm:$0xf]
    %v3189 = vld [vmem:[#allocation14 + $0x328] sm:$0xf]
    %v3190 = vld [vmem:[#allocation14 + $0x32c] sm:$0xf]
    %v3191 = vld [vmem:[#allocation14 + $0x330] sm:$0xf]
    %v3192 = vld [vmem:[#allocation14 + $0x334] sm:$0xf]
    %v3193 = vld [vmem:[#allocation14 + $0x338] sm:$0xf]
    %v3194 = vld [vmem:[#allocation14 + $0x33c] sm:$0xf]
    %v3195 = vld [vmem:[#allocation14 + $0x340] sm:$0xf]
    %v3196 = vld [vmem:[#allocation14 + $0x344] sm:$0xf]
    %v3197 = vld [vmem:[#allocation14 + $0x348] sm:$0xf]
    %v3198 = vld [vmem:[#allocation14 + $0x34c] sm:$0xf]
    %v3199 = vld [vmem:[#allocation14 + $0x350] sm:$0xf]
    %v3200 = vld [vmem:[#allocation14 + $0x354] sm:$0xf]
    %v3201 = vld [vmem:[#allocation14 + $0x358] sm:$0xf]
    %v3202 = vld [vmem:[#allocation14 + $0x35c] sm:$0xf]
    %v3203 = vld [vmem:[#allocation14 + $0x360] sm:$0xf]
    %v3204 = vld [vmem:[#allocation14 + $0x364] sm:$0xf]
    %v3205 = vld [vmem:[#allocation14 + $0x368] sm:$0xf]
    %v3206 = vld [vmem:[#allocation14 + $0x36c] sm:$0xf]
    %v3207 = vld [vmem:[#allocation14 + $0x370] sm:$0xf]
    %v3208 = vld [vmem:[#allocation14 + $0x374] sm:$0xf]
    %v3209 = vld [vmem:[#allocation14 + $0x378] sm:$0xf]
    %v3210 = vld [vmem:[#allocation14 + $0x37c] sm:$0xf]
    %v3211 = vld [vmem:[#allocation14 + $0x380] sm:$0xf]
    %v3212 = vld [vmem:[#allocation14 + $0x384] sm:$0xf]
    %v3213 = vld [vmem:[#allocation14 + $0x388] sm:$0xf]
    %v3214 = vld [vmem:[#allocation14 + $0x38c] sm:$0xf]
    %v3215 = vld [vmem:[#allocation14 + $0x390] sm:$0xf]
    %v3216 = vld [vmem:[#allocation14 + $0x394] sm:$0xf]
    %v3217 = vld [vmem:[#allocation14 + $0x398] sm:$0xf]
    %v3218 = vld [vmem:[#allocation14 + $0x39c] sm:$0xf]
    %v3219 = vld [vmem:[#allocation14 + $0x3a0] sm:$0xf]
    %v3220 = vld [vmem:[#allocation14 + $0x3a4] sm:$0xf]
    %v3221 = vld [vmem:[#allocation14 + $0x3a8] sm:$0xf]
    %v3222 = vld [vmem:[#allocation14 + $0x3ac] sm:$0xf]
    %v3223 = vld [vmem:[#allocation14 + $0x3b0] sm:$0xf]
    %v3224 = vld [vmem:[#allocation14 + $0x3b4] sm:$0xf]
    %v3225 = vld [vmem:[#allocation14 + $0x3b8] sm:$0xf]
    %v3226 = vld [vmem:[#allocation14 + $0x3bc] sm:$0xf]
    %v3227 = vld [vmem:[#allocation14 + $0x3c0] sm:$0xf]
    %v3228 = vld [vmem:[#allocation14 + $0x3c4] sm:$0xf]
    %v3229 = vld [vmem:[#allocation14 + $0x3c8] sm:$0xf]
    %v3230 = vld [vmem:[#allocation14 + $0x3cc] sm:$0xf]
    %v3231 = vld [vmem:[#allocation14 + $0x3d0] sm:$0xf]
    %v3232 = vld [vmem:[#allocation14 + $0x3d4] sm:$0xf]
    %v3233 = vld [vmem:[#allocation14 + $0x3d8] sm:$0xf]
    %v3234 = vld [vmem:[#allocation14 + $0x3dc] sm:$0xf]
    %v3235 = vld [vmem:[#allocation14 + $0x3e0] sm:$0xf]
    %v3236 = vld [vmem:[#allocation14 + $0x3e4] sm:$0xf]
    %v3237 = vld [vmem:[#allocation14 + $0x3e8] sm:$0xf]
    %v3238 = vld [vmem:[#allocation14 + $0x3ec] sm:$0xf]
    %v3239 = vld [vmem:[#allocation14 + $0x3f0] sm:$0xf]
    %v3240 = vld [vmem:[#allocation14 + $0x3f4] sm:$0xf]
    %v3241 = vld [vmem:[#allocation14 + $0x3f8] sm:$0xf]
    %v3242 = vld [vmem:[#allocation14 + $0x3fc] sm:$0xf]
    %v3243 = vld [vmem:[%s12] sm:$0x1]
    %v3245 = vperm.slane %v3243, 0
    %v3503 = vunpack.c.l.b16 %v2987
    %v3504 = vunpack.c.l.b16 %v2988
    %v3505 = vunpack.c.l.b16 %v2989
    %v3506 = vunpack.c.l.b16 %v2990
    %v3507 = vunpack.c.l.b16 %v2991
    %v3508 = vunpack.c.l.b16 %v2992
    %v3509 = vunpack.c.l.b16 %v2993
    %v3510 = vunpack.c.l.b16 %v2994
    %v3511 = vunpack.c.l.b16 %v2995
    %v3512 = vunpack.c.l.b16 %v2996
    %v3513 = vunpack.c.l.b16 %v2997
    %v3514 = vunpack.c.l.b16 %v2998
    %v3515 = vunpack.c.l.b16 %v2999
    %v3516 = vunpack.c.l.b16 %v3000
    %v3517 = vunpack.c.l.b16 %v3001
    %v3518 = vunpack.c.l.b16 %v3002
    %v3519 = vunpack.c.l.b16 %v3003
    %v3520 = vunpack.c.l.b16 %v3004
    %v3521 = vunpack.c.l.b16 %v3005
    %v3522 = vunpack.c.l.b16 %v3006
    %v3523 = vunpack.c.l.b16 %v3007
    %v3524 = vunpack.c.l.b16 %v3008
    %v3525 = vunpack.c.l.b16 %v3009
    %v3526 = vunpack.c.l.b16 %v3010
    %v3527 = vunpack.c.l.b16 %v3011
    %v3528 = vunpack.c.l.b16 %v3012
    %v3529 = vunpack.c.l.b16 %v3013
    %v3530 = vunpack.c.l.b16 %v3014
    %v3531 = vunpack.c.l.b16 %v3015
    %v3532 = vunpack.c.l.b16 %v3016
    %v3533 = vunpack.c.l.b16 %v3017
    %v3534 = vunpack.c.l.b16 %v3018
    %v3535 = vunpack.c.l.b16 %v3019
    %v3536 = vunpack.c.l.b16 %v3020
    %v3537 = vunpack.c.l.b16 %v3021
    %v3538 = vunpack.c.l.b16 %v3022
    %v3539 = vunpack.c.l.b16 %v3023
    %v3540 = vunpack.c.l.b16 %v3024
    %v3541 = vunpack.c.l.b16 %v3025
    %v3542 = vunpack.c.l.b16 %v3026
    %v3543 = vunpack.c.l.b16 %v3027
    %v3544 = vunpack.c.l.b16 %v3028
    %v3545 = vunpack.c.l.b16 %v3029
    %v3546 = vunpack.c.l.b16 %v3030
    %v3547 = vunpack.c.l.b16 %v3031
    %v3548 = vunpack.c.l.b16 %v3032
    %v3549 = vunpack.c.l.b16 %v3033
    %v3550 = vunpack.c.l.b16 %v3034
    %v3551 = vunpack.c.l.b16 %v3035
    %v3552 = vunpack.c.l.b16 %v3036
    %v3553 = vunpack.c.l.b16 %v3037
    %v3554 = vunpack.c.l.b16 %v3038
    %v3555 = vunpack.c.l.b16 %v3039
    %v3556 = vunpack.c.l.b16 %v3040
    %v3557 = vunpack.c.l.b16 %v3041
    %v3558 = vunpack.c.l.b16 %v3042
    %v3559 = vunpack.c.l.b16 %v3043
    %v3560 = vunpack.c.l.b16 %v3044
    %v3561 = vunpack.c.l.b16 %v3045
    %v3562 = vunpack.c.l.b16 %v3046
    %v3563 = vunpack.c.l.b16 %v3047
    %v3564 = vunpack.c.l.b16 %v3048
    %v3565 = vunpack.c.l.b16 %v3049
    %v3566 = vunpack.c.l.b16 %v3050
    %v3567 = vunpack.c.l.b16 %v3051
    %v3568 = vunpack.c.l.b16 %v3052
    %v3569 = vunpack.c.l.b16 %v3053
    %v3570 = vunpack.c.l.b16 %v3054
    %v3571 = vunpack.c.l.b16 %v3055
    %v3572 = vunpack.c.l.b16 %v3056
    %v3573 = vunpack.c.l.b16 %v3057
    %v3574 = vunpack.c.l.b16 %v3058
    %v3575 = vunpack.c.l.b16 %v3059
    %v3576 = vunpack.c.l.b16 %v3060
    %v3577 = vunpack.c.l.b16 %v3061
    %v3578 = vunpack.c.l.b16 %v3062
    %v3579 = vunpack.c.l.b16 %v3063
    %v3580 = vunpack.c.l.b16 %v3064
    %v3581 = vunpack.c.l.b16 %v3065
    %v3582 = vunpack.c.l.b16 %v3066
    %v3583 = vunpack.c.l.b16 %v3067
    %v3584 = vunpack.c.l.b16 %v3068
    %v3585 = vunpack.c.l.b16 %v3069
    %v3586 = vunpack.c.l.b16 %v3070
    %v3587 = vunpack.c.l.b16 %v3071
    %v3588 = vunpack.c.l.b16 %v3072
    %v3589 = vunpack.c.l.b16 %v3073
    %v3590 = vunpack.c.l.b16 %v3074
    %v3591 = vunpack.c.l.b16 %v3075
    %v3592 = vunpack.c.l.b16 %v3076
    %v3593 = vunpack.c.l.b16 %v3077
    %v3594 = vunpack.c.l.b16 %v3078
    %v3595 = vunpack.c.l.b16 %v3079
    %v3596 = vunpack.c.l.b16 %v3080
    %v3597 = vunpack.c.l.b16 %v3081
    %v3598 = vunpack.c.l.b16 %v3082
    %v3599 = vunpack.c.l.b16 %v3083
    %v3600 = vunpack.c.l.b16 %v3084
    %v3601 = vunpack.c.l.b16 %v3085
    %v3602 = vunpack.c.l.b16 %v3086
    %v3603 = vunpack.c.l.b16 %v3087
    %v3604 = vunpack.c.l.b16 %v3088
    %v3605 = vunpack.c.l.b16 %v3089
    %v3606 = vunpack.c.l.b16 %v3090
    %v3607 = vunpack.c.l.b16 %v3091
    %v3608 = vunpack.c.l.b16 %v3092
    %v3609 = vunpack.c.l.b16 %v3093
    %v3610 = vunpack.c.l.b16 %v3094
    %v3611 = vunpack.c.l.b16 %v3095
    %v3612 = vunpack.c.l.b16 %v3096
    %v3613 = vunpack.c.l.b16 %v3097
    %v3614 = vunpack.c.l.b16 %v3098
    %v3615 = vunpack.c.l.b16 %v3099
    %v3616 = vunpack.c.l.b16 %v3100
    %v3617 = vunpack.c.l.b16 %v3101
    %v3618 = vunpack.c.l.b16 %v3102
    %v3619 = vunpack.c.l.b16 %v3103
    %v3620 = vunpack.c.l.b16 %v3104
    %v3621 = vunpack.c.l.b16 %v3105
    %v3622 = vunpack.c.l.b16 %v3106
    %v3623 = vunpack.c.l.b16 %v3107
    %v3624 = vunpack.c.l.b16 %v3108
    %v3625 = vunpack.c.l.b16 %v3109
    %v3626 = vunpack.c.l.b16 %v3110
    %v3627 = vunpack.c.l.b16 %v3111
    %v3628 = vunpack.c.l.b16 %v3112
    %v3629 = vunpack.c.l.b16 %v3113
    %v3630 = vunpack.c.l.b16 %v3114
    %v3631 = vunpack.c.l.b16 %v3115
    %v3632 = vunpack.c.l.b16 %v3116
    %v3633 = vunpack.c.l.b16 %v3117
    %v3634 = vunpack.c.l.b16 %v3118
    %v3635 = vunpack.c.l.b16 %v3119
    %v3636 = vunpack.c.l.b16 %v3120
    %v3637 = vunpack.c.l.b16 %v3121
    %v3638 = vunpack.c.l.b16 %v3122
    %v3639 = vunpack.c.l.b16 %v3123
    %v3640 = vunpack.c.l.b16 %v3124
    %v3641 = vunpack.c.l.b16 %v3125
    %v3642 = vunpack.c.l.b16 %v3126
    %v3643 = vunpack.c.l.b16 %v3127
    %v3644 = vunpack.c.l.b16 %v3128
    %v3645 = vunpack.c.l.b16 %v3129
    %v3646 = vunpack.c.l.b16 %v3130
    %v3647 = vunpack.c.l.b16 %v3131
    %v3648 = vunpack.c.l.b16 %v3132
    %v3649 = vunpack.c.l.b16 %v3133
    %v3650 = vunpack.c.l.b16 %v3134
    %v3651 = vunpack.c.l.b16 %v3135
    %v3652 = vunpack.c.l.b16 %v3136
    %v3653 = vunpack.c.l.b16 %v3137
    %v3654 = vunpack.c.l.b16 %v3138
    %v3655 = vunpack.c.l.b16 %v3139
    %v3656 = vunpack.c.l.b16 %v3140
    %v3657 = vunpack.c.l.b16 %v3141
    %v3658 = vunpack.c.l.b16 %v3142
    %v3659 = vunpack.c.l.b16 %v3143
    %v3660 = vunpack.c.l.b16 %v3144
    %v3661 = vunpack.c.l.b16 %v3145
    %v3662 = vunpack.c.l.b16 %v3146
    %v3663 = vunpack.c.l.b16 %v3147
    %v3664 = vunpack.c.l.b16 %v3148
    %v3665 = vunpack.c.l.b16 %v3149
    %v3666 = vunpack.c.l.b16 %v3150
    %v3667 = vunpack.c.l.b16 %v3151
    %v3668 = vunpack.c.l.b16 %v3152
    %v3669 = vunpack.c.l.b16 %v3153
    %v3670 = vunpack.c.l.b16 %v3154
    %v3671 = vunpack.c.l.b16 %v3155
    %v3672 = vunpack.c.l.b16 %v3156
    %v3673 = vunpack.c.l.b16 %v3157
    %v3674 = vunpack.c.l.b16 %v3158
    %v3675 = vunpack.c.l.b16 %v3159
    %v3676 = vunpack.c.l.b16 %v3160
    %v3677 = vunpack.c.l.b16 %v3161
    %v3678 = vunpack.c.l.b16 %v3162
    %v3679 = vunpack.c.l.b16 %v3163
    %v3680 = vunpack.c.l.b16 %v3164
    %v3681 = vunpack.c.l.b16 %v3165
    %v3682 = vunpack.c.l.b16 %v3166
    %v3683 = vunpack.c.l.b16 %v3167
    %v3684 = vunpack.c.l.b16 %v3168
    %v3685 = vunpack.c.l.b16 %v3169
    %v3686 = vunpack.c.l.b16 %v3170
    %v3687 = vunpack.c.l.b16 %v3171
    %v3688 = vunpack.c.l.b16 %v3172
    %v3689 = vunpack.c.l.b16 %v3173
    %v3690 = vunpack.c.l.b16 %v3174
    %v3691 = vunpack.c.l.b16 %v3175
    %v3692 = vunpack.c.l.b16 %v3176
    %v3693 = vunpack.c.l.b16 %v3177
    %v3694 = vunpack.c.l.b16 %v3178
    %v3695 = vunpack.c.l.b16 %v3179
    %v3696 = vunpack.c.l.b16 %v3180
    %v3697 = vunpack.c.l.b16 %v3181
    %v3698 = vunpack.c.l.b16 %v3182
    %v3699 = vunpack.c.l.b16 %v3183
    %v3700 = vunpack.c.l.b16 %v3184
    %v3701 = vunpack.c.l.b16 %v3185
    %v3702 = vunpack.c.l.b16 %v3186
    %v3703 = vunpack.c.l.b16 %v3187
    %v3704 = vunpack.c.l.b16 %v3188
    %v3705 = vunpack.c.l.b16 %v3189
    %v3706 = vunpack.c.l.b16 %v3190
    %v3707 = vunpack.c.l.b16 %v3191
    %v3708 = vunpack.c.l.b16 %v3192
    %v3709 = vunpack.c.l.b16 %v3193
    %v3710 = vunpack.c.l.b16 %v3194
    %v3711 = vunpack.c.l.b16 %v3195
    %v3712 = vunpack.c.l.b16 %v3196
    %v3713 = vunpack.c.l.b16 %v3197
    %v3714 = vunpack.c.l.b16 %v3198
    %v3715 = vunpack.c.l.b16 %v3199
    %v3716 = vunpack.c.l.b16 %v3200
    %v3717 = vunpack.c.l.b16 %v3201
    %v3718 = vunpack.c.l.b16 %v3202
    %v3719 = vunpack.c.l.b16 %v3203
    %v3720 = vunpack.c.l.b16 %v3204
    %v3721 = vunpack.c.l.b16 %v3205
    %v3722 = vunpack.c.l.b16 %v3206
    %v3723 = vunpack.c.l.b16 %v3207
    %v3724 = vunpack.c.l.b16 %v3208
    %v3725 = vunpack.c.l.b16 %v3209
    %v3726 = vunpack.c.l.b16 %v3210
    %v3727 = vunpack.c.l.b16 %v3211
    %v3728 = vunpack.c.l.b16 %v3212
    %v3729 = vunpack.c.l.b16 %v3213
    %v3730 = vunpack.c.l.b16 %v3214
    %v3731 = vunpack.c.l.b16 %v3215
    %v3732 = vunpack.c.l.b16 %v3216
    %v3733 = vunpack.c.l.b16 %v3217
    %v3734 = vunpack.c.l.b16 %v3218
    %v3735 = vunpack.c.l.b16 %v3219
    %v3736 = vunpack.c.l.b16 %v3220
    %v3737 = vunpack.c.l.b16 %v3221
    %v3738 = vunpack.c.l.b16 %v3222
    %v3739 = vunpack.c.l.b16 %v3223
    %v3740 = vunpack.c.l.b16 %v3224
    %v3741 = vunpack.c.l.b16 %v3225
    %v3742 = vunpack.c.l.b16 %v3226
    %v3743 = vunpack.c.l.b16 %v3227
    %v3744 = vunpack.c.l.b16 %v3228
    %v3745 = vunpack.c.l.b16 %v3229
    %v3746 = vunpack.c.l.b16 %v3230
    %v3747 = vunpack.c.l.b16 %v3231
    %v3748 = vunpack.c.l.b16 %v3232
    %v3749 = vunpack.c.l.b16 %v3233
    %v3750 = vunpack.c.l.b16 %v3234
    %v3751 = vunpack.c.l.b16 %v3235
    %v3752 = vunpack.c.l.b16 %v3236
    %v3753 = vunpack.c.l.b16 %v3237
    %v3754 = vunpack.c.l.b16 %v3238
    %v3755 = vunpack.c.l.b16 %v3239
    %v3756 = vunpack.c.l.b16 %v3240
    %v3757 = vunpack.c.l.b16 %v3241
    %v3758 = vunpack.c.l.b16 %v3242
    %v3759 = vpack.c.b16 %v3504, %v3503
    %v3760 = vpack.c.b16 %v3506, %v3505
    %v3761 = vpack.c.b16 %v3508, %v3507
    %v3762 = vpack.c.b16 %v3510, %v3509
    %v3763 = vpack.c.b16 %v3512, %v3511
    %v3764 = vpack.c.b16 %v3514, %v3513
    %v3765 = vpack.c.b16 %v3516, %v3515
    %v3766 = vpack.c.b16 %v3518, %v3517
    %v3767 = vpack.c.b16 %v3520, %v3519
    %v3768 = vpack.c.b16 %v3522, %v3521
    %v3769 = vpack.c.b16 %v3524, %v3523
    %v3770 = vpack.c.b16 %v3526, %v3525
    %v3771 = vpack.c.b16 %v3528, %v3527
    %v3772 = vpack.c.b16 %v3530, %v3529
    %v3773 = vpack.c.b16 %v3532, %v3531
    %v3774 = vpack.c.b16 %v3534, %v3533
    %v3775 = vpack.c.b16 %v3536, %v3535
    %v3776 = vpack.c.b16 %v3538, %v3537
    %v3777 = vpack.c.b16 %v3540, %v3539
    %v3778 = vpack.c.b16 %v3542, %v3541
    %v3779 = vpack.c.b16 %v3544, %v3543
    %v3780 = vpack.c.b16 %v3546, %v3545
    %v3781 = vpack.c.b16 %v3548, %v3547
    %v3782 = vpack.c.b16 %v3550, %v3549
    %v3783 = vpack.c.b16 %v3552, %v3551
    %v3784 = vpack.c.b16 %v3554, %v3553
    %v3785 = vpack.c.b16 %v3556, %v3555
    %v3786 = vpack.c.b16 %v3558, %v3557
    %v3787 = vpack.c.b16 %v3560, %v3559
    %v3788 = vpack.c.b16 %v3562, %v3561
    %v3789 = vpack.c.b16 %v3564, %v3563
    %v3790 = vpack.c.b16 %v3566, %v3565
    %v3791 = vpack.c.b16 %v3568, %v3567
    %v3792 = vpack.c.b16 %v3570, %v3569
    %v3793 = vpack.c.b16 %v3572, %v3571
    %v3794 = vpack.c.b16 %v3574, %v3573
    %v3795 = vpack.c.b16 %v3576, %v3575
    %v3796 = vpack.c.b16 %v3578, %v3577
    %v3797 = vpack.c.b16 %v3580, %v3579
    %v3798 = vpack.c.b16 %v3582, %v3581
    %v3799 = vpack.c.b16 %v3584, %v3583
    %v3800 = vpack.c.b16 %v3586, %v3585
    %v3801 = vpack.c.b16 %v3588, %v3587
    %v3802 = vpack.c.b16 %v3590, %v3589
    %v3803 = vpack.c.b16 %v3592, %v3591
    %v3804 = vpack.c.b16 %v3594, %v3593
    %v3805 = vpack.c.b16 %v3596, %v3595
    %v3806 = vpack.c.b16 %v3598, %v3597
    %v3807 = vpack.c.b16 %v3600, %v3599
    %v3808 = vpack.c.b16 %v3602, %v3601
    %v3809 = vpack.c.b16 %v3604, %v3603
    %v3810 = vpack.c.b16 %v3606, %v3605
    %v3811 = vpack.c.b16 %v3608, %v3607
    %v3812 = vpack.c.b16 %v3610, %v3609
    %v3813 = vpack.c.b16 %v3612, %v3611
    %v3814 = vpack.c.b16 %v3614, %v3613
    %v3815 = vpack.c.b16 %v3616, %v3615
    %v3816 = vpack.c.b16 %v3618, %v3617
    %v3817 = vpack.c.b16 %v3620, %v3619
    %v3818 = vpack.c.b16 %v3622, %v3621
    %v3819 = vpack.c.b16 %v3624, %v3623
    %v3820 = vpack.c.b16 %v3626, %v3625
    %v3821 = vpack.c.b16 %v3628, %v3627
    %v3822 = vpack.c.b16 %v3630, %v3629
    %v3823 = vpack.c.b16 %v3632, %v3631
    %v3824 = vpack.c.b16 %v3634, %v3633
    %v3825 = vpack.c.b16 %v3636, %v3635
    %v3826 = vpack.c.b16 %v3638, %v3637
    %v3827 = vpack.c.b16 %v3640, %v3639
    %v3828 = vpack.c.b16 %v3642, %v3641
    %v3829 = vpack.c.b16 %v3644, %v3643
    %v3830 = vpack.c.b16 %v3646, %v3645
    %v3831 = vpack.c.b16 %v3648, %v3647
    %v3832 = vpack.c.b16 %v3650, %v3649
    %v3833 = vpack.c.b16 %v3652, %v3651
    %v3834 = vpack.c.b16 %v3654, %v3653
    %v3835 = vpack.c.b16 %v3656, %v3655
    %v3836 = vpack.c.b16 %v3658, %v3657
    %v3837 = vpack.c.b16 %v3660, %v3659
    %v3838 = vpack.c.b16 %v3662, %v3661
    %v3839 = vpack.c.b16 %v3664, %v3663
    %v3840 = vpack.c.b16 %v3666, %v3665
    %v3841 = vpack.c.b16 %v3668, %v3667
    %v3842 = vpack.c.b16 %v3670, %v3669
    %v3843 = vpack.c.b16 %v3672, %v3671
    %v3844 = vpack.c.b16 %v3674, %v3673
    %v3845 = vpack.c.b16 %v3676, %v3675
    %v3846 = vpack.c.b16 %v3678, %v3677
    %v3847 = vpack.c.b16 %v3680, %v3679
    %v3848 = vpack.c.b16 %v3682, %v3681
    %v3849 = vpack.c.b16 %v3684, %v3683
    %v3850 = vpack.c.b16 %v3686, %v3685
    %v3851 = vpack.c.b16 %v3688, %v3687
    %v3852 = vpack.c.b16 %v3690, %v3689
    %v3853 = vpack.c.b16 %v3692, %v3691
    %v3854 = vpack.c.b16 %v3694, %v3693
    %v3855 = vpack.c.b16 %v3696, %v3695
    %v3856 = vpack.c.b16 %v3698, %v3697
    %v3857 = vpack.c.b16 %v3700, %v3699
    %v3858 = vpack.c.b16 %v3702, %v3701
    %v3859 = vpack.c.b16 %v3704, %v3703
    %v3860 = vpack.c.b16 %v3706, %v3705
    %v3861 = vpack.c.b16 %v3708, %v3707
    %v3862 = vpack.c.b16 %v3710, %v3709
    %v3863 = vpack.c.b16 %v3712, %v3711
    %v3864 = vpack.c.b16 %v3714, %v3713
    %v3865 = vpack.c.b16 %v3716, %v3715
    %v3866 = vpack.c.b16 %v3718, %v3717
    %v3867 = vpack.c.b16 %v3720, %v3719
    %v3868 = vpack.c.b16 %v3722, %v3721
    %v3869 = vpack.c.b16 %v3724, %v3723
    %v3870 = vpack.c.b16 %v3726, %v3725
    %v3871 = vpack.c.b16 %v3728, %v3727
    %v3872 = vpack.c.b16 %v3730, %v3729
    %v3873 = vpack.c.b16 %v3732, %v3731
    %v3874 = vpack.c.b16 %v3734, %v3733
    %v3875 = vpack.c.b16 %v3736, %v3735
    %v3876 = vpack.c.b16 %v3738, %v3737
    %v3877 = vpack.c.b16 %v3740, %v3739
    %v3878 = vpack.c.b16 %v3742, %v3741
    %v3879 = vpack.c.b16 %v3744, %v3743
    %v3880 = vpack.c.b16 %v3746, %v3745
    %v3881 = vpack.c.b16 %v3748, %v3747
    %v3882 = vpack.c.b16 %v3750, %v3749
    %v3883 = vpack.c.b16 %v3752, %v3751
    %v3884 = vpack.c.b16 %v3754, %v3753
    %v3885 = vpack.c.b16 %v3756, %v3755
    %v3886 = vpack.c.b16 %v3758, %v3757
    %4015 = vmatpush.bf16.msra.mxu0 %v3766
    %4016 = vmatpush.bf16.msra.mxu0 %v3765
    %4017 = vmatpush.bf16.msra.mxu0 %v3764
    %4018 = vmatpush.bf16.msra.mxu0 %v3763
    %4019 = vmatpush.bf16.msra.mxu0 %v3762
    %4020 = vmatpush.bf16.msra.mxu0 %v3761
    %4021 = vmatpush.bf16.msra.mxu0 %v3760
    %4022 = vmatpush.bf16.msra.mxu0 %v3759
    %4023 = vmatmul.bf16.gmra.mxu0 %v2939
    %v4024 = vpop.f32.mrf.mxu0
    %v4025 = vadd.f32 %v3245, %v4024
    %v4026 = vpop.f32.mrf.mxu0
    %v4027 = vadd.f32 %v3245, %v4026
    %4028 = vmatmul.bf16.gmra.mxu0 %v2955
    %v4029 = vpop.f32.mrf.mxu0
    %v4030 = vadd.f32 %v3245, %v4029
    %v4031 = vpop.f32.mrf.mxu0
    %v4032 = vadd.f32 %v3245, %v4031
    %4033 = vmatmul.bf16.gmra.mxu0 %v2971
    %v4034 = vpop.f32.mrf.mxu0
    %v4035 = vadd.f32 %v3245, %v4034
    %v4036 = vpop.f32.mrf.mxu0
    %4037 = vdwg.mxu0
    %4038 = vmatpush.bf16.msra.mxu0 %v3774
    %4039 = vmatpush.bf16.msra.mxu0 %v3773
    %4040 = vmatpush.bf16.msra.mxu0 %v3772
    %4041 = vmatpush.bf16.msra.mxu0 %v3771
    %4042 = vmatpush.bf16.msra.mxu0 %v3770
    %4043 = vmatpush.bf16.msra.mxu0 %v3769
    %4044 = vmatpush.bf16.msra.mxu0 %v3768
    %4045 = vmatpush.bf16.msra.mxu0 %v3767
    %4046 = vmatmul.bf16.gmra.mxu0 %v2940
    %v4047 = vpop.f32.mrf.mxu0
    %v4048 = vadd.f32 %v4025, %v4047
    %v4049 = vpop.f32.mrf.mxu0
    %v4050 = vadd.f32 %v4027, %v4049
    %4051 = vmatmul.bf16.gmra.mxu0 %v2956
    %v4052 = vpop.f32.mrf.mxu0
    %v4053 = vadd.f32 %v4030, %v4052
    %v4054 = vpop.f32.mrf.mxu0
    %v4055 = vadd.f32 %v4032, %v4054
    %4056 = vmatmul.bf16.gmra.mxu0 %v2972
    %v4057 = vpop.f32.mrf.mxu0
    %v4058 = vadd.f32 %v4035, %v4057
    %v4059 = vpop.f32.mrf.mxu0
    %4060 = vdwg.mxu0
    %4061 = vmatpush.bf16.msra.mxu0 %v3782
    %4062 = vmatpush.bf16.msra.mxu0 %v3781
    %4063 = vmatpush.bf16.msra.mxu0 %v3780
    %4064 = vmatpush.bf16.msra.mxu0 %v3779
    %4065 = vmatpush.bf16.msra.mxu0 %v3778
    %4066 = vmatpush.bf16.msra.mxu0 %v3777
    %4067 = vmatpush.bf16.msra.mxu0 %v3776
    %4068 = vmatpush.bf16.msra.mxu0 %v3775
    %4069 = vmatmul.bf16.gmra.mxu0 %v2941
    %v4070 = vpop.f32.mrf.mxu0
    %v4071 = vadd.f32 %v4048, %v4070
    %v4072 = vpop.f32.mrf.mxu0
    %v4073 = vadd.f32 %v4050, %v4072
    %4074 = vmatmul.bf16.gmra.mxu0 %v2957
    %v4075 = vpop.f32.mrf.mxu0
    %v4076 = vadd.f32 %v4053, %v4075
    %v4077 = vpop.f32.mrf.mxu0
    %v4078 = vadd.f32 %v4055, %v4077
    %4079 = vmatmul.bf16.gmra.mxu0 %v2973
    %v4080 = vpop.f32.mrf.mxu0
    %v4081 = vadd.f32 %v4058, %v4080
    %v4082 = vpop.f32.mrf.mxu0
    %4083 = vdwg.mxu0
    %4084 = vmatpush.bf16.msra.mxu0 %v3790
    %4085 = vmatpush.bf16.msra.mxu0 %v3789
    %4086 = vmatpush.bf16.msra.mxu0 %v3788
    %4087 = vmatpush.bf16.msra.mxu0 %v3787
    %4088 = vmatpush.bf16.msra.mxu0 %v3786
    %4089 = vmatpush.bf16.msra.mxu0 %v3785
    %4090 = vmatpush.bf16.msra.mxu0 %v3784
    %4091 = vmatpush.bf16.msra.mxu0 %v3783
    %4092 = vmatmul.bf16.gmra.mxu0 %v2942
    %v4093 = vpop.f32.mrf.mxu0
    %v4094 = vadd.f32 %v4071, %v4093
    %v4095 = vpop.f32.mrf.mxu0
    %v4096 = vadd.f32 %v4073, %v4095
    %4097 = vmatmul.bf16.gmra.mxu0 %v2958
    %v4098 = vpop.f32.mrf.mxu0
    %v4099 = vadd.f32 %v4076, %v4098
    %v4100 = vpop.f32.mrf.mxu0
    %v4101 = vadd.f32 %v4078, %v4100
    %4102 = vmatmul.bf16.gmra.mxu0 %v2974
    %v4103 = vpop.f32.mrf.mxu0
    %v4104 = vadd.f32 %v4081, %v4103
    %v4105 = vpop.f32.mrf.mxu0
    %4106 = vdwg.mxu0
    %4107 = vmatpush.bf16.msra.mxu0 %v3798
    %4108 = vmatpush.bf16.msra.mxu0 %v3797
    %4109 = vmatpush.bf16.msra.mxu0 %v3796
    %4110 = vmatpush.bf16.msra.mxu0 %v3795
    %4111 = vmatpush.bf16.msra.mxu0 %v3794
    %4112 = vmatpush.bf16.msra.mxu0 %v3793
    %4113 = vmatpush.bf16.msra.mxu0 %v3792
    %4114 = vmatpush.bf16.msra.mxu0 %v3791
    %4115 = vmatmul.bf16.gmra.mxu0 %v2943
    %v4116 = vpop.f32.mrf.mxu0
    %v4117 = vadd.f32 %v4094, %v4116
    %v4118 = vpop.f32.mrf.mxu0
    %v4119 = vadd.f32 %v4096, %v4118
    %4120 = vmatmul.bf16.gmra.mxu0 %v2959
    %v4121 = vpop.f32.mrf.mxu0
    %v4122 = vadd.f32 %v4099, %v4121
    %v4123 = vpop.f32.mrf.mxu0
    %v4124 = vadd.f32 %v4101, %v4123
    %4125 = vmatmul.bf16.gmra.mxu0 %v2975
    %v4126 = vpop.f32.mrf.mxu0
    %v4127 = vadd.f32 %v4104, %v4126
    %v4128 = vpop.f32.mrf.mxu0
    %4129 = vdwg.mxu0
    %4130 = vmatpush.bf16.msra.mxu0 %v3806
    %4131 = vmatpush.bf16.msra.mxu0 %v3805
    %4132 = vmatpush.bf16.msra.mxu0 %v3804
    %4133 = vmatpush.bf16.msra.mxu0 %v3803
    %4134 = vmatpush.bf16.msra.mxu0 %v3802
    %4135 = vmatpush.bf16.msra.mxu0 %v3801
    %4136 = vmatpush.bf16.msra.mxu0 %v3800
    %4137 = vmatpush.bf16.msra.mxu0 %v3799
    %4138 = vmatmul.bf16.gmra.mxu0 %v2944
    %v4139 = vpop.f32.mrf.mxu0
    %v4140 = vadd.f32 %v4117, %v4139
    %v4141 = vpop.f32.mrf.mxu0
    %v4142 = vadd.f32 %v4119, %v4141
    %4143 = vmatmul.bf16.gmra.mxu0 %v2960
    %v4144 = vpop.f32.mrf.mxu0
    %v4145 = vadd.f32 %v4122, %v4144
    %v4146 = vpop.f32.mrf.mxu0
    %v4147 = vadd.f32 %v4124, %v4146
    %4148 = vmatmul.bf16.gmra.mxu0 %v2976
    %v4149 = vpop.f32.mrf.mxu0
    %v4150 = vadd.f32 %v4127, %v4149
    %v4151 = vpop.f32.mrf.mxu0
    %4152 = vdwg.mxu0
    %4153 = vmatpush.bf16.msra.mxu0 %v3814
    %4154 = vmatpush.bf16.msra.mxu0 %v3813
    %4155 = vmatpush.bf16.msra.mxu0 %v3812
    %4156 = vmatpush.bf16.msra.mxu0 %v3811
    %4157 = vmatpush.bf16.msra.mxu0 %v3810
    %4158 = vmatpush.bf16.msra.mxu0 %v3809
    %4159 = vmatpush.bf16.msra.mxu0 %v3808
    %4160 = vmatpush.bf16.msra.mxu0 %v3807
    %4161 = vmatmul.bf16.gmra.mxu0 %v2945
    %v4162 = vpop.f32.mrf.mxu0
    %v4163 = vadd.f32 %v4140, %v4162
    %v4164 = vpop.f32.mrf.mxu0
    %v4165 = vadd.f32 %v4142, %v4164
    %4166 = vmatmul.bf16.gmra.mxu0 %v2961
    %v4167 = vpop.f32.mrf.mxu0
    %v4168 = vadd.f32 %v4145, %v4167
    %v4169 = vpop.f32.mrf.mxu0
    %v4170 = vadd.f32 %v4147, %v4169
    %4171 = vmatmul.bf16.gmra.mxu0 %v2977
    %v4172 = vpop.f32.mrf.mxu0
    %v4173 = vadd.f32 %v4150, %v4172
    %v4174 = vpop.f32.mrf.mxu0
    %4175 = vdwg.mxu0
    %4176 = vmatpush.bf16.msra.mxu0 %v3822
    %4177 = vmatpush.bf16.msra.mxu0 %v3821
    %4178 = vmatpush.bf16.msra.mxu0 %v3820
    %4179 = vmatpush.bf16.msra.mxu0 %v3819
    %4180 = vmatpush.bf16.msra.mxu0 %v3818
    %4181 = vmatpush.bf16.msra.mxu0 %v3817
    %4182 = vmatpush.bf16.msra.mxu0 %v3816
    %4183 = vmatpush.bf16.msra.mxu0 %v3815
    %4184 = vmatmul.bf16.gmra.mxu0 %v2946
    %v4185 = vpop.f32.mrf.mxu0
    %v4186 = vadd.f32 %v4163, %v4185
    %v4187 = vpop.f32.mrf.mxu0
    %v4188 = vadd.f32 %v4165, %v4187
    %4189 = vmatmul.bf16.gmra.mxu0 %v2962
    %v4190 = vpop.f32.mrf.mxu0
    %v4191 = vadd.f32 %v4168, %v4190
    %v4192 = vpop.f32.mrf.mxu0
    %v4193 = vadd.f32 %v4170, %v4192
    %4194 = vmatmul.bf16.gmra.mxu0 %v2978
    %v4195 = vpop.f32.mrf.mxu0
    %v4196 = vadd.f32 %v4173, %v4195
    %v4197 = vpop.f32.mrf.mxu0
    %4198 = vdwg.mxu0
    %4199 = vmatpush.bf16.msra.mxu0 %v3830
    %4200 = vmatpush.bf16.msra.mxu0 %v3829
    %4201 = vmatpush.bf16.msra.mxu0 %v3828
    %4202 = vmatpush.bf16.msra.mxu0 %v3827
    %4203 = vmatpush.bf16.msra.mxu0 %v3826
    %4204 = vmatpush.bf16.msra.mxu0 %v3825
    %4205 = vmatpush.bf16.msra.mxu0 %v3824
    %4206 = vmatpush.bf16.msra.mxu0 %v3823
    %4207 = vmatmul.bf16.gmra.mxu0 %v2947
    %v4208 = vpop.f32.mrf.mxu0
    %v4209 = vadd.f32 %v4186, %v4208
    %v4210 = vpop.f32.mrf.mxu0
    %v4211 = vadd.f32 %v4188, %v4210
    %4212 = vmatmul.bf16.gmra.mxu0 %v2963
    %v4213 = vpop.f32.mrf.mxu0
    %v4214 = vadd.f32 %v4191, %v4213
    %v4215 = vpop.f32.mrf.mxu0
    %v4216 = vadd.f32 %v4193, %v4215
    %4217 = vmatmul.bf16.gmra.mxu0 %v2979
    %v4218 = vpop.f32.mrf.mxu0
    %v4219 = vadd.f32 %v4196, %v4218
    %v4220 = vpop.f32.mrf.mxu0
    %4221 = vdwg.mxu0
    %4222 = vmatpush.bf16.msra.mxu0 %v3838
    %4223 = vmatpush.bf16.msra.mxu0 %v3837
    %4224 = vmatpush.bf16.msra.mxu0 %v3836
    %4225 = vmatpush.bf16.msra.mxu0 %v3835
    %4226 = vmatpush.bf16.msra.mxu0 %v3834
    %4227 = vmatpush.bf16.msra.mxu0 %v3833
    %4228 = vmatpush.bf16.msra.mxu0 %v3832
    %4229 = vmatpush.bf16.msra.mxu0 %v3831
    %4230 = vmatmul.bf16.gmra.mxu0 %v2948
    %v4231 = vpop.f32.mrf.mxu0
    %v4232 = vadd.f32 %v4209, %v4231
    %v4233 = vpop.f32.mrf.mxu0
    %v4234 = vadd.f32 %v4211, %v4233
    %4235 = vmatmul.bf16.gmra.mxu0 %v2964
    %v4236 = vpop.f32.mrf.mxu0
    %v4237 = vadd.f32 %v4214, %v4236
    %v4238 = vpop.f32.mrf.mxu0
    %v4239 = vadd.f32 %v4216, %v4238
    %4240 = vmatmul.bf16.gmra.mxu0 %v2980
    %v4241 = vpop.f32.mrf.mxu0
    %v4242 = vadd.f32 %v4219, %v4241
    %v4243 = vpop.f32.mrf.mxu0
    %4244 = vdwg.mxu0
    %4245 = vmatpush.bf16.msra.mxu0 %v3846
    %4246 = vmatpush.bf16.msra.mxu0 %v3845
    %4247 = vmatpush.bf16.msra.mxu0 %v3844
    %4248 = vmatpush.bf16.msra.mxu0 %v3843
    %4249 = vmatpush.bf16.msra.mxu0 %v3842
    %4250 = vmatpush.bf16.msra.mxu0 %v3841
    %4251 = vmatpush.bf16.msra.mxu0 %v3840
    %4252 = vmatpush.bf16.msra.mxu0 %v3839
    %4253 = vmatmul.bf16.gmra.mxu0 %v2949
    %v4254 = vpop.f32.mrf.mxu0
    %v4255 = vadd.f32 %v4232, %v4254
    %v4256 = vpop.f32.mrf.mxu0
    %v4257 = vadd.f32 %v4234, %v4256
    %4258 = vmatmul.bf16.gmra.mxu0 %v2965
    %v4259 = vpop.f32.mrf.mxu0
    %v4260 = vadd.f32 %v4237, %v4259
    %v4261 = vpop.f32.mrf.mxu0
    %v4262 = vadd.f32 %v4239, %v4261
    %4263 = vmatmul.bf16.gmra.mxu0 %v2981
    %v4264 = vpop.f32.mrf.mxu0
    %v4265 = vadd.f32 %v4242, %v4264
    %v4266 = vpop.f32.mrf.mxu0
    %4267 = vdwg.mxu0
    %4268 = vmatpush.bf16.msra.mxu0 %v3854
    %4269 = vmatpush.bf16.msra.mxu0 %v3853
    %4270 = vmatpush.bf16.msra.mxu0 %v3852
    %4271 = vmatpush.bf16.msra.mxu0 %v3851
    %4272 = vmatpush.bf16.msra.mxu0 %v3850
    %4273 = vmatpush.bf16.msra.mxu0 %v3849
    %4274 = vmatpush.bf16.msra.mxu0 %v3848
    %4275 = vmatpush.bf16.msra.mxu0 %v3847
    %4276 = vmatmul.bf16.gmra.mxu0 %v2950
    %v4277 = vpop.f32.mrf.mxu0
    %v4278 = vadd.f32 %v4255, %v4277
    %v4279 = vpop.f32.mrf.mxu0
    %v4280 = vadd.f32 %v4257, %v4279
    %4281 = vmatmul.bf16.gmra.mxu0 %v2966
    %v4282 = vpop.f32.mrf.mxu0
    %v4283 = vadd.f32 %v4260, %v4282
    %v4284 = vpop.f32.mrf.mxu0
    %v4285 = vadd.f32 %v4262, %v4284
    %4286 = vmatmul.bf16.gmra.mxu0 %v2982
    %v4287 = vpop.f32.mrf.mxu0
    %v4288 = vadd.f32 %v4265, %v4287
    %v4289 = vpop.f32.mrf.mxu0
    %4290 = vdwg.mxu0
    %4291 = vmatpush.bf16.msra.mxu0 %v3862
    %4292 = vmatpush.bf16.msra.mxu0 %v3861
    %4293 = vmatpush.bf16.msra.mxu0 %v3860
    %4294 = vmatpush.bf16.msra.mxu0 %v3859
    %4295 = vmatpush.bf16.msra.mxu0 %v3858
    %4296 = vmatpush.bf16.msra.mxu0 %v3857
    %4297 = vmatpush.bf16.msra.mxu0 %v3856
    %4298 = vmatpush.bf16.msra.mxu0 %v3855
    %4299 = vmatmul.bf16.gmra.mxu0 %v2951
    %v4300 = vpop.f32.mrf.mxu0
    %v4301 = vadd.f32 %v4278, %v4300
    %v4302 = vpop.f32.mrf.mxu0
    %v4303 = vadd.f32 %v4280, %v4302
    %4304 = vmatmul.bf16.gmra.mxu0 %v2967
    %v4305 = vpop.f32.mrf.mxu0
    %v4306 = vadd.f32 %v4283, %v4305
    %v4307 = vpop.f32.mrf.mxu0
    %v4308 = vadd.f32 %v4285, %v4307
    %4309 = vmatmul.bf16.gmra.mxu0 %v2983
    %v4310 = vpop.f32.mrf.mxu0
    %v4311 = vadd.f32 %v4288, %v4310
    %v4312 = vpop.f32.mrf.mxu0
    %4313 = vdwg.mxu0
    %4314 = vmatpush.bf16.msra.mxu0 %v3870
    %4315 = vmatpush.bf16.msra.mxu0 %v3869
    %4316 = vmatpush.bf16.msra.mxu0 %v3868
    %4317 = vmatpush.bf16.msra.mxu0 %v3867
    %4318 = vmatpush.bf16.msra.mxu0 %v3866
    %4319 = vmatpush.bf16.msra.mxu0 %v3865
    %4320 = vmatpush.bf16.msra.mxu0 %v3864
    %4321 = vmatpush.bf16.msra.mxu0 %v3863
    %4322 = vmatmul.bf16.gmra.mxu0 %v2952
    %v4323 = vpop.f32.mrf.mxu0
    %v4324 = vadd.f32 %v4301, %v4323
    %v4325 = vpop.f32.mrf.mxu0
    %v4326 = vadd.f32 %v4303, %v4325
    %4327 = vmatmul.bf16.gmra.mxu0 %v2968
    %v4328 = vpop.f32.mrf.mxu0
    %v4329 = vadd.f32 %v4306, %v4328
    %v4330 = vpop.f32.mrf.mxu0
    %v4331 = vadd.f32 %v4308, %v4330
    %4332 = vmatmul.bf16.gmra.mxu0 %v2984
    %v4333 = vpop.f32.mrf.mxu0
    %v4334 = vadd.f32 %v4311, %v4333
    %v4335 = vpop.f32.mrf.mxu0
    %4336 = vdwg.mxu0
    %4337 = vmatpush.bf16.msra.mxu0 %v3878
    %4338 = vmatpush.bf16.msra.mxu0 %v3877
    %4339 = vmatpush.bf16.msra.mxu0 %v3876
    %4340 = vmatpush.bf16.msra.mxu0 %v3875
    %4341 = vmatpush.bf16.msra.mxu0 %v3874
    %4342 = vmatpush.bf16.msra.mxu0 %v3873
    %4343 = vmatpush.bf16.msra.mxu0 %v3872
    %4344 = vmatpush.bf16.msra.mxu0 %v3871
    %4345 = vmatmul.bf16.gmra.mxu0 %v2953
    %v4346 = vpop.f32.mrf.mxu0
    %v4347 = vadd.f32 %v4324, %v4346
    %v4348 = vpop.f32.mrf.mxu0
    %v4349 = vadd.f32 %v4326, %v4348
    %4350 = vmatmul.bf16.gmra.mxu0 %v2969
    %v4351 = vpop.f32.mrf.mxu0
    %v4352 = vadd.f32 %v4329, %v4351
    %v4353 = vpop.f32.mrf.mxu0
    %v4354 = vadd.f32 %v4331, %v4353
    %4355 = vmatmul.bf16.gmra.mxu0 %v2985
    %v4356 = vpop.f32.mrf.mxu0
    %v4357 = vadd.f32 %v4334, %v4356
    %v4358 = vpop.f32.mrf.mxu0
    %4359 = vdwg.mxu0
    %4360 = vmatpush.bf16.msra.mxu0 %v3886
    %4361 = vmatpush.bf16.msra.mxu0 %v3885
    %4362 = vmatpush.bf16.msra.mxu0 %v3884
    %4363 = vmatpush.bf16.msra.mxu0 %v3883
    %4364 = vmatpush.bf16.msra.mxu0 %v3882
    %4365 = vmatpush.bf16.msra.mxu0 %v3881
    %4366 = vmatpush.bf16.msra.mxu0 %v3880
    %4367 = vmatpush.bf16.msra.mxu0 %v3879
    %4368 = vmatmul.bf16.gmra.mxu0 %v2954
    %v4369 = vpop.f32.mrf.mxu0
    %v4370 = vadd.f32 %v4347, %v4369
    %v4371 = vpop.f32.mrf.mxu0
    %v4372 = vadd.f32 %v4349, %v4371
    %4373 = vmatmul.bf16.gmra.mxu0 %v2970
    %v4374 = vpop.f32.mrf.mxu0
    %v4375 = vadd.f32 %v4352, %v4374
    %v4376 = vpop.f32.mrf.mxu0
    %v4377 = vadd.f32 %v4354, %v4376
    %4378 = vmatmul.bf16.gmra.mxu0 %v2986
    %v4379 = vpop.f32.mrf.mxu0
    %v4380 = vadd.f32 %v4357, %v4379
    %v4381 = vpop.f32.mrf.mxu0
    %4382 = vdwg.mxu0
    %v4383 = vadd.f32 %v1679, %v4370
    %v4384 = vadd.f32 %v1680, %v4372
    %v4385 = vadd.f32 %v1681, %v4375
    %v4386 = vadd.f32 %v1682, %v4377
    %v4387 = vadd.f32 %v1683, %v4380
    %v4388 = vld [vmem:[#allocation16] sm:$0x1]
    %v4389 = vld [vmem:[#allocation17] sm:$0x1]
    %4390 = vadd.xlane.f32.xlu0 %v4383
    %v4391 = vpop.xlane.xlu0 %4390
    %4392 = vadd.xlane.f32.xlu0 %v4384
    %v4393 = vpop.xlane.xlu0 %4392
    %4394 = vadd.xlane.f32.xlu0 %v4385
    %v4395 = vpop.xlane.xlu0 %4394
    %4396 = vadd.xlane.f32.xlu0 %v4386
    %v4397 = vpop.xlane.xlu0 %4396
    %4398 = vadd.xlane.f32.xlu0 %v4387
    %v4399 = vpop.xlane.xlu0 %4398
    %v4400 = vmul.f32 %v4391, %v1577
    %v4401 = vmul.f32 %v4393, %v1577
    %v4402 = vmul.f32 %v4395, %v1577
    %v4403 = vmul.f32 %v4397, %v1577
    %v4404 = vmul.f32 %v4399, %v1577
    %v4405 = vsub.f32 %v4383, %v4400
    %v4406 = vsub.f32 %v4384, %v4401
    %v4407 = vsub.f32 %v4385, %v4402
    %v4408 = vsub.f32 %v4386, %v4403
    %v4409 = vsub.f32 %v4387, %v4404
    %v4410 = vmul.f32 %v4405, %v4405
    %v4411 = vmul.f32 %v4406, %v4406
    %v4412 = vmul.f32 %v4407, %v4407
    %v4413 = vmul.f32 %v4408, %v4408
    %v4414 = vmul.f32 %v4409, %v4409
    %4415 = vadd.xlane.f32.xlu0 %v4410
    %v4416 = vpop.xlane.xlu0 %4415
    %4417 = vadd.xlane.f32.xlu0 %v4411
    %v4418 = vpop.xlane.xlu0 %4417
    %4419 = vadd.xlane.f32.xlu0 %v4412
    %v4420 = vpop.xlane.xlu0 %4419
    %4421 = vadd.xlane.f32.xlu0 %v4413
    %v4422 = vpop.xlane.xlu0 %4421
    %4423 = vadd.xlane.f32.xlu0 %v4414
    %v4424 = vpop.xlane.xlu0 %4423
    %v4425 = vmul.f32 %v4416, %v1577
    %v4426 = vmul.f32 %v4418, %v1577
    %v4427 = vmul.f32 %v4420, %v1577
    %v4428 = vmul.f32 %v4422, %v1577
    %v4429 = vmul.f32 %v4424, %v1577
    %v4430 = vadd.f32 %v4425, 1e-05
    %v4431 = vadd.f32 %v4426, 1e-05
    %v4432 = vadd.f32 %v4427, 1e-05
    %v4433 = vadd.f32 %v4428, 1e-05
    %v4434 = vadd.f32 %v4429, 1e-05
    %v4435 = vrsqrt.pop %v4430
    %v4436 = vmul.f32 %v4435, %v4430
    %v4437 = vmul.f32 %v4436, %v4435
    %v4438 = vmul.f32 0.5, %v4437
    %v4439 = vsub.f32 1.5, %v4438
    %v4440 = vmul.f32 %v4435, %v4439
    %vm4441 = vweird.f32 %v4430
    %vm4442 = vweird.f32 %v4435
    %vm4443 = vmor %vm4441, %vm4442
    %v4444 = vsel %vm4443, %v4435, %v4440
    %v4445 = vrsqrt.pop %v4431
    %v4446 = vmul.f32 %v4445, %v4431
    %v4447 = vmul.f32 %v4446, %v4445
    %v4448 = vmul.f32 0.5, %v4447
    %v4449 = vsub.f32 1.5, %v4448
    %v4450 = vmul.f32 %v4445, %v4449
    %vm4451 = vweird.f32 %v4431
    %vm4452 = vweird.f32 %v4445
    %vm4453 = vmor %vm4451, %vm4452
    %v4454 = vsel %vm4453, %v4445, %v4450
    %v4455 = vrsqrt.pop %v4432
    %v4456 = vmul.f32 %v4455, %v4432
    %v4457 = vmul.f32 %v4456, %v4455
    %v4458 = vmul.f32 0.5, %v4457
    %v4459 = vsub.f32 1.5, %v4458
    %v4460 = vmul.f32 %v4455, %v4459
    %vm4461 = vweird.f32 %v4432
    %vm4462 = vweird.f32 %v4455
    %vm4463 = vmor %vm4461, %vm4462
    %v4464 = vsel %vm4463, %v4455, %v4460
    %v4465 = vrsqrt.pop %v4433
    %v4466 = vmul.f32 %v4465, %v4433
    %v4467 = vmul.f32 %v4466, %v4465
    %v4468 = vmul.f32 0.5, %v4467
    %v4469 = vsub.f32 1.5, %v4468
    %v4470 = vmul.f32 %v4465, %v4469
    %vm4471 = vweird.f32 %v4433
    %vm4472 = vweird.f32 %v4465
    %vm4473 = vmor %vm4471, %vm4472
    %v4474 = vsel %vm4473, %v4465, %v4470
    %v4475 = vrsqrt.pop %v4434
    %v4476 = vmul.f32 %v4475, %v4434
    %v4477 = vmul.f32 %v4476, %v4475
    %v4478 = vmul.f32 0.5, %v4477
    %v4479 = vsub.f32 1.5, %v4478
    %v4480 = vmul.f32 %v4475, %v4479
    %vm4481 = vweird.f32 %v4434
    %vm4482 = vweird.f32 %v4475
    %vm4483 = vmor %vm4481, %vm4482
    %v4484 = vsel %vm4483, %v4475, %v4480
    %v4485 = vmul.f32 %v4405, %v4444
    %v4486 = vmul.f32 %v4406, %v4454
    %v4487 = vmul.f32 %v4407, %v4464
    %v4488 = vmul.f32 %v4408, %v4474
    %v4489 = vmul.f32 %v4409, %v4484
    %v4491 = vperm.slane %v4388, 0
    %v4493 = vmul.f32 %v4485, %v4491
    %v4494 = vmul.f32 %v4486, %v4491
    %v4495 = vmul.f32 %v4487, %v4491
    %v4496 = vmul.f32 %v4488, %v4491
    %v4497 = vmul.f32 %v4489, %v4491
    %v4499 = vperm.slane %v4389, 0
    %v4501 = vadd.f32 %v4493, %v4499
    %v4502 = vadd.f32 %v4494, %v4499
    %v4503 = vadd.f32 %v4495, %v4499
    %v4504 = vadd.f32 %v4496, %v4499
    %v4505 = vadd.f32 %v4497, %v4499
    %v4506 = vld [vmem:[#allocation19] sm:$0xff]
    %v4507 = vld [vmem:[#allocation19 + $0x8] sm:$0xff]
    %v4508 = vld [vmem:[#allocation19 + $0x10] sm:$0xff]
    %v4509 = vld [vmem:[#allocation19 + $0x18] sm:$0xff]
    %v4510 = vld [vmem:[#allocation19 + $0x20] sm:$0xff]
    %v4511 = vld [vmem:[#allocation19 + $0x28] sm:$0xff]
    %v4512 = vld [vmem:[#allocation19 + $0x30] sm:$0xff]
    %v4513 = vld [vmem:[#allocation19 + $0x38] sm:$0xff]
    %v4514 = vld [vmem:[#allocation19 + $0x40] sm:$0xff]
    %v4515 = vld [vmem:[#allocation19 + $0x48] sm:$0xff]
    %v4516 = vld [vmem:[#allocation19 + $0x50] sm:$0xff]
    %v4517 = vld [vmem:[#allocation19 + $0x58] sm:$0xff]
    %v4518 = vld [vmem:[#allocation19 + $0x60] sm:$0xff]
    %v4519 = vld [vmem:[#allocation19 + $0x68] sm:$0xff]
    %v4520 = vld [vmem:[#allocation19 + $0x70] sm:$0xff]
    %v4521 = vld [vmem:[#allocation19 + $0x78] sm:$0xff]
    %v4522 = vld [vmem:[%s16] sm:$0x1]
    %v4523 = vperm.slane %v4522, 0
    %4524 = vmatpush.msra.mxu0 %v4521
    %4525 = vmatpush.msra.mxu0 %v4520
    %4526 = vmatpush.msra.mxu0 %v4519
    %4527 = vmatpush.msra.mxu0 %v4518
    %4528 = vmatpush.msra.mxu0 %v4517
    %4529 = vmatpush.msra.mxu0 %v4516
    %4530 = vmatpush.msra.mxu0 %v4515
    %4531 = vmatpush.msra.mxu0 %v4514
    %4532 = vmatpush.msra.mxu0 %v4513
    %4533 = vmatpush.msra.mxu0 %v4512
    %4534 = vmatpush.msra.mxu0 %v4511
    %4535 = vmatpush.msra.mxu0 %v4510
    %4536 = vmatpush.msra.mxu0 %v4509
    %4537 = vmatpush.msra.mxu0 %v4508
    %4538 = vmatpush.msra.mxu0 %v4507
    %4539 = vmatpush.msra.mxu0 %v4506
    %4540 = vmatmul.f32.gmra.mxu0 %v4501
    %v4541 = vpop.f32.mrf.mxu0
    %v4542 = vadd.f32 %v4523, %v4541
    %4543 = vdwg.mxu0
    %v4544 = vmax.f32 %v4542, 0.0
    %s4545 = scalar_lea.vmem [#allocation19], 128
    %v4546 = vld [vmem:[%s4545] sm:$0xff]
    %v4547 = vld [vmem:[%s4545 + $0x8] sm:$0xff]
    %v4548 = vld [vmem:[%s4545 + $0x10] sm:$0xff]
    %v4549 = vld [vmem:[%s4545 + $0x18] sm:$0xff]
    %v4550 = vld [vmem:[%s4545 + $0x20] sm:$0xff]
    %v4551 = vld [vmem:[%s4545 + $0x28] sm:$0xff]
    %v4552 = vld [vmem:[%s4545 + $0x30] sm:$0xff]
    %v4553 = vld [vmem:[%s4545 + $0x38] sm:$0xff]
    %v4554 = vld [vmem:[%s4545 + $0x40] sm:$0xff]
    %v4555 = vld [vmem:[%s4545 + $0x48] sm:$0xff]
    %v4556 = vld [vmem:[%s4545 + $0x50] sm:$0xff]
    %v4557 = vld [vmem:[%s4545 + $0x58] sm:$0xff]
    %v4558 = vld [vmem:[%s4545 + $0x60] sm:$0xff]
    %v4559 = vld [vmem:[%s4545 + $0x68] sm:$0xff]
    %v4560 = vld [vmem:[%s4545 + $0x70] sm:$0xff]
    %v4561 = vld [vmem:[%s4545 + $0x78] sm:$0xff]
    %v4562 = vld [vmem:[%s16 + $0x1] sm:$0x1]
    %v4563 = vperm.slane %v4562, 0
    %4564 = vmatpush.msra.mxu0 %v4561
    %4565 = vmatpush.msra.mxu0 %v4560
    %4566 = vmatpush.msra.mxu0 %v4559
    %4567 = vmatpush.msra.mxu0 %v4558
    %4568 = vmatpush.msra.mxu0 %v4557
    %4569 = vmatpush.msra.mxu0 %v4556
    %4570 = vmatpush.msra.mxu0 %v4555
    %4571 = vmatpush.msra.mxu0 %v4554
    %4572 = vmatpush.msra.mxu0 %v4553
    %4573 = vmatpush.msra.mxu0 %v4552
    %4574 = vmatpush.msra.mxu0 %v4551
    %4575 = vmatpush.msra.mxu0 %v4550
    %4576 = vmatpush.msra.mxu0 %v4549
    %4577 = vmatpush.msra.mxu0 %v4548
    %4578 = vmatpush.msra.mxu0 %v4547
    %4579 = vmatpush.msra.mxu0 %v4546
    %4580 = vmatmul.f32.gmra.mxu0 %v4502
    %v4581 = vpop.f32.mrf.mxu0
    %v4582 = vadd.f32 %v4563, %v4581
    %4583 = vdwg.mxu0
    %v4584 = vmax.f32 %v4582, 0.0
    %s4585 = scalar_lea.vmem [#allocation19], 256
    %v4586 = vld [vmem:[%s4585] sm:$0xff]
    %v4587 = vld [vmem:[%s4585 + $0x8] sm:$0xff]
    %v4588 = vld [vmem:[%s4585 + $0x10] sm:$0xff]
    %v4589 = vld [vmem:[%s4585 + $0x18] sm:$0xff]
    %v4590 = vld [vmem:[%s4585 + $0x20] sm:$0xff]
    %v4591 = vld [vmem:[%s4585 + $0x28] sm:$0xff]
    %v4592 = vld [vmem:[%s4585 + $0x30] sm:$0xff]
    %v4593 = vld [vmem:[%s4585 + $0x38] sm:$0xff]
    %v4594 = vld [vmem:[%s4585 + $0x40] sm:$0xff]
    %v4595 = vld [vmem:[%s4585 + $0x48] sm:$0xff]
    %v4596 = vld [vmem:[%s4585 + $0x50] sm:$0xff]
    %v4597 = vld [vmem:[%s4585 + $0x58] sm:$0xff]
    %v4598 = vld [vmem:[%s4585 + $0x60] sm:$0xff]
    %v4599 = vld [vmem:[%s4585 + $0x68] sm:$0xff]
    %v4600 = vld [vmem:[%s4585 + $0x70] sm:$0xff]
    %v4601 = vld [vmem:[%s4585 + $0x78] sm:$0xff]
    %v4602 = vld [vmem:[%s16 + $0x2] sm:$0x1]
    %v4603 = vperm.slane %v4602, 0
    %4604 = vmatpush.msra.mxu0 %v4601
    %4605 = vmatpush.msra.mxu0 %v4600
    %4606 = vmatpush.msra.mxu0 %v4599
    %4607 = vmatpush.msra.mxu0 %v4598
    %4608 = vmatpush.msra.mxu0 %v4597
    %4609 = vmatpush.msra.mxu0 %v4596
    %4610 = vmatpush.msra.mxu0 %v4595
    %4611 = vmatpush.msra.mxu0 %v4594
    %4612 = vmatpush.msra.mxu0 %v4593
    %4613 = vmatpush.msra.mxu0 %v4592
    %4614 = vmatpush.msra.mxu0 %v4591
    %4615 = vmatpush.msra.mxu0 %v4590
    %4616 = vmatpush.msra.mxu0 %v4589
    %4617 = vmatpush.msra.mxu0 %v4588
    %4618 = vmatpush.msra.mxu0 %v4587
    %4619 = vmatpush.msra.mxu0 %v4586
    %4620 = vmatmul.f32.gmra.mxu0 %v4503
    %v4621 = vpop.f32.mrf.mxu0
    %v4622 = vadd.f32 %v4603, %v4621
    %4623 = vdwg.mxu0
    %v4624 = vmax.f32 %v4622, 0.0
    %s4625 = scalar_lea.vmem [#allocation19], 384
    %v4626 = vld [vmem:[%s4625] sm:$0xff]
    %v4627 = vld [vmem:[%s4625 + $0x8] sm:$0xff]
    %v4628 = vld [vmem:[%s4625 + $0x10] sm:$0xff]
    %v4629 = vld [vmem:[%s4625 + $0x18] sm:$0xff]
    %v4630 = vld [vmem:[%s4625 + $0x20] sm:$0xff]
    %v4631 = vld [vmem:[%s4625 + $0x28] sm:$0xff]
    %v4632 = vld [vmem:[%s4625 + $0x30] sm:$0xff]
    %v4633 = vld [vmem:[%s4625 + $0x38] sm:$0xff]
    %v4634 = vld [vmem:[%s4625 + $0x40] sm:$0xff]
    %v4635 = vld [vmem:[%s4625 + $0x48] sm:$0xff]
    %v4636 = vld [vmem:[%s4625 + $0x50] sm:$0xff]
    %v4637 = vld [vmem:[%s4625 + $0x58] sm:$0xff]
    %v4638 = vld [vmem:[%s4625 + $0x60] sm:$0xff]
    %v4639 = vld [vmem:[%s4625 + $0x68] sm:$0xff]
    %v4640 = vld [vmem:[%s4625 + $0x70] sm:$0xff]
    %v4641 = vld [vmem:[%s4625 + $0x78] sm:$0xff]
    %v4642 = vld [vmem:[%s16 + $0x3] sm:$0x1]
    %v4643 = vperm.slane %v4642, 0
    %4644 = vmatpush.msra.mxu0 %v4641
    %4645 = vmatpush.msra.mxu0 %v4640
    %4646 = vmatpush.msra.mxu0 %v4639
    %4647 = vmatpush.msra.mxu0 %v4638
    %4648 = vmatpush.msra.mxu0 %v4637
    %4649 = vmatpush.msra.mxu0 %v4636
    %4650 = vmatpush.msra.mxu0 %v4635
    %4651 = vmatpush.msra.mxu0 %v4634
    %4652 = vmatpush.msra.mxu0 %v4633
    %4653 = vmatpush.msra.mxu0 %v4632
    %4654 = vmatpush.msra.mxu0 %v4631
    %4655 = vmatpush.msra.mxu0 %v4630
    %4656 = vmatpush.msra.mxu0 %v4629
    %4657 = vmatpush.msra.mxu0 %v4628
    %4658 = vmatpush.msra.mxu0 %v4627
    %4659 = vmatpush.msra.mxu0 %v4626
    %4660 = vmatmul.f32.gmra.mxu0 %v4504
    %v4661 = vpop.f32.mrf.mxu0
    %v4662 = vadd.f32 %v4643, %v4661
    %4663 = vdwg.mxu0
    %v4664 = vmax.f32 %v4662, 0.0
    %s4665 = scalar_lea.vmem [#allocation19], 512
    %v4666 = vld [vmem:[%s4665] sm:$0xff]
    %v4667 = vld [vmem:[%s4665 + $0x8] sm:$0xff]
    %v4668 = vld [vmem:[%s4665 + $0x10] sm:$0xff]
    %v4669 = vld [vmem:[%s4665 + $0x18] sm:$0xff]
    %v4670 = vld [vmem:[%s4665 + $0x20] sm:$0xff]
    %v4671 = vld [vmem:[%s4665 + $0x28] sm:$0xff]
    %v4672 = vld [vmem:[%s4665 + $0x30] sm:$0xff]
    %v4673 = vld [vmem:[%s4665 + $0x38] sm:$0xff]
    %v4674 = vld [vmem:[%s4665 + $0x40] sm:$0xff]
    %v4675 = vld [vmem:[%s4665 + $0x48] sm:$0xff]
    %v4676 = vld [vmem:[%s4665 + $0x50] sm:$0xff]
    %v4677 = vld [vmem:[%s4665 + $0x58] sm:$0xff]
    %v4678 = vld [vmem:[%s4665 + $0x60] sm:$0xff]
    %v4679 = vld [vmem:[%s4665 + $0x68] sm:$0xff]
    %v4680 = vld [vmem:[%s4665 + $0x70] sm:$0xff]
    %v4681 = vld [vmem:[%s4665 + $0x78] sm:$0xff]
    %v4682 = vld [vmem:[%s16 + $0x4] sm:$0x1]
    %v4683 = vperm.slane %v4682, 0
    %4684 = vmatpush.msra.mxu0 %v4681
    %4685 = vmatpush.msra.mxu0 %v4680
    %4686 = vmatpush.msra.mxu0 %v4679
    %4687 = vmatpush.msra.mxu0 %v4678
    %4688 = vmatpush.msra.mxu0 %v4677
    %4689 = vmatpush.msra.mxu0 %v4676
    %4690 = vmatpush.msra.mxu0 %v4675
    %4691 = vmatpush.msra.mxu0 %v4674
    %4692 = vmatpush.msra.mxu0 %v4673
    %4693 = vmatpush.msra.mxu0 %v4672
    %4694 = vmatpush.msra.mxu0 %v4671
    %4695 = vmatpush.msra.mxu0 %v4670
    %4696 = vmatpush.msra.mxu0 %v4669
    %4697 = vmatpush.msra.mxu0 %v4668
    %4698 = vmatpush.msra.mxu0 %v4667
    %4699 = vmatpush.msra.mxu0 %v4666
    %4700 = vmatmul.f32.gmra.mxu0 %v4505
    %v4701 = vpop.f32.mrf.mxu0
    %v4702 = vadd.f32 %v4683, %v4701
    %4703 = vdwg.mxu0
    %v4704 = vmax.f32 %v4702, 0.0
    %v4705 = vld [vmem:[#allocation20] sm:$0xff]
    %v4706 = vld [vmem:[#allocation20 + $0x8] sm:$0xff]
    %v4707 = vld [vmem:[#allocation20 + $0x10] sm:$0xff]
    %v4708 = vld [vmem:[#allocation20 + $0x18] sm:$0xff]
    %v4709 = vld [vmem:[#allocation20 + $0x20] sm:$0xff]
    %v4710 = vld [vmem:[#allocation20 + $0x28] sm:$0xff]
    %v4711 = vld [vmem:[#allocation20 + $0x30] sm:$0xff]
    %v4712 = vld [vmem:[#allocation20 + $0x38] sm:$0xff]
    %v4713 = vld [vmem:[#allocation20 + $0x40] sm:$0xff]
    %v4714 = vld [vmem:[#allocation20 + $0x48] sm:$0xff]
    %v4715 = vld [vmem:[#allocation20 + $0x50] sm:$0xff]
    %v4716 = vld [vmem:[#allocation20 + $0x58] sm:$0xff]
    %v4717 = vld [vmem:[#allocation20 + $0x60] sm:$0xff]
    %v4718 = vld [vmem:[#allocation20 + $0x68] sm:$0xff]
    %v4719 = vld [vmem:[#allocation20 + $0x70] sm:$0xff]
    %v4720 = vld [vmem:[#allocation20 + $0x78] sm:$0xff]
    %v4721 = vld [vmem:[%s18] sm:$0x1]
    %v4723 = vperm.slane %v4721, 0
    %4725 = vmatpush.msra.mxu0 %v4720
    %4726 = vmatpush.msra.mxu0 %v4719
    %4727 = vmatpush.msra.mxu0 %v4718
    %4728 = vmatpush.msra.mxu0 %v4717
    %4729 = vmatpush.msra.mxu0 %v4716
    %4730 = vmatpush.msra.mxu0 %v4715
    %4731 = vmatpush.msra.mxu0 %v4714
    %4732 = vmatpush.msra.mxu0 %v4713
    %4733 = vmatpush.msra.mxu0 %v4712
    %4734 = vmatpush.msra.mxu0 %v4711
    %4735 = vmatpush.msra.mxu0 %v4710
    %4736 = vmatpush.msra.mxu0 %v4709
    %4737 = vmatpush.msra.mxu0 %v4708
    %4738 = vmatpush.msra.mxu0 %v4707
    %4739 = vmatpush.msra.mxu0 %v4706
    %4740 = vmatpush.msra.mxu0 %v4705
    %4741 = vmatmul.f32.gmra.mxu0 %v4544
    %v4742 = vpop.f32.mrf.mxu0
    %v4743 = vadd.f32 %v4723, %v4742
    %4744 = vmatmul.f32.gmra.mxu0 %v4584
    %v4745 = vpop.f32.mrf.mxu0
    %v4746 = vadd.f32 %v4723, %v4745
    %4747 = vmatmul.f32.gmra.mxu0 %v4624
    %v4748 = vpop.f32.mrf.mxu0
    %v4749 = vadd.f32 %v4723, %v4748
    %4750 = vmatmul.f32.gmra.mxu0 %v4664
    %v4751 = vpop.f32.mrf.mxu0
    %v4752 = vadd.f32 %v4723, %v4751
    %4753 = vmatmul.f32.gmra.mxu0 %v4704
    %v4754 = vpop.f32.mrf.mxu0
    %v4755 = vadd.f32 %v4723, %v4754
    %4756 = vdwg.mxu0
    %v4757 = vxor.u32 %v4743, 2147483648
    %v4758 = vxor.u32 %v4746, 2147483648
    %v4759 = vxor.u32 %v4749, 2147483648
    %v4760 = vxor.u32 %v4752, 2147483648
    %v4761 = vxor.u32 %v4755, 2147483648
    %v4762 = vmul.f32 %v4757, 1.442695
    %v4763 = vpow.pop %v4762
    %v4764 = vmul.f32 %v4758, 1.442695
    %v4765 = vpow.pop %v4764
    %v4766 = vmul.f32 %v4759, 1.442695
    %v4767 = vpow.pop %v4766
    %v4768 = vmul.f32 %v4760, 1.442695
    %v4769 = vpow.pop %v4768
    %v4770 = vmul.f32 %v4761, 1.442695
    %v4771 = vpow.pop %v4770
    %v4772 = vadd.f32 %v4763, 1.0
    %v4773 = vadd.f32 %v4765, 1.0
    %v4774 = vadd.f32 %v4767, 1.0
    %v4775 = vadd.f32 %v4769, 1.0
    %v4776 = vadd.f32 %v4771, 1.0
    %v4777 = vrcp.pop %v4772
    %v4778 = vmul.f32 %v4772, %v4777
    %v4779 = vsub.f32 1.0, %v4778
    %v4780 = vmul.f32 %v4777, %v4779
    %v4781 = vadd.f32 %v4777, %v4780
    %vm4782 = vweird.f32 %v4772
    %vm4783 = vweird.f32 %v4777
    %vm4784 = vmor %vm4782, %vm4783
    %v4785 = vsel %vm4784, %v4777, %v4781
    %v4786 = vand.u32 2147483647, %v4772
    %vm4787 = vcmp.eq.f32.partialorder %v4786, 8.507059e+37
    %v4788 = vand.u32 %v4772, 2147483648
    %v4789 = vor.u32 1.1754944e-38, %v4788
    %v4790 = vsel %vm4787, %v4789, %v4785
    %v4791 = vmul.f32 1.0, %v4790
    %v4792 = vrcp.pop %v4773
    %v4793 = vmul.f32 %v4773, %v4792
    %v4794 = vsub.f32 1.0, %v4793
    %v4795 = vmul.f32 %v4792, %v4794
    %v4796 = vadd.f32 %v4792, %v4795
    %vm4797 = vweird.f32 %v4773
    %vm4798 = vweird.f32 %v4792
    %vm4799 = vmor %vm4797, %vm4798
    %v4800 = vsel %vm4799, %v4792, %v4796
    %v4801 = vand.u32 2147483647, %v4773
    %vm4802 = vcmp.eq.f32.partialorder %v4801, 8.507059e+37
    %v4803 = vand.u32 %v4773, 2147483648
    %v4804 = vor.u32 1.1754944e-38, %v4803
    %v4805 = vsel %vm4802, %v4804, %v4800
    %v4806 = vmul.f32 1.0, %v4805
    %v4807 = vrcp.pop %v4774
    %v4808 = vmul.f32 %v4774, %v4807
    %v4809 = vsub.f32 1.0, %v4808
    %v4810 = vmul.f32 %v4807, %v4809
    %v4811 = vadd.f32 %v4807, %v4810
    %vm4812 = vweird.f32 %v4774
    %vm4813 = vweird.f32 %v4807
    %vm4814 = vmor %vm4812, %vm4813
    %v4815 = vsel %vm4814, %v4807, %v4811
    %v4816 = vand.u32 2147483647, %v4774
    %vm4817 = vcmp.eq.f32.partialorder %v4816, 8.507059e+37
    %v4818 = vand.u32 %v4774, 2147483648
    %v4819 = vor.u32 1.1754944e-38, %v4818
    %v4820 = vsel %vm4817, %v4819, %v4815
    %v4821 = vmul.f32 1.0, %v4820
    %v4822 = vrcp.pop %v4775
    %v4823 = vmul.f32 %v4775, %v4822
    %v4824 = vsub.f32 1.0, %v4823
    %v4825 = vmul.f32 %v4822, %v4824
    %v4826 = vadd.f32 %v4822, %v4825
    %vm4827 = vweird.f32 %v4775
    %vm4828 = vweird.f32 %v4822
    %vm4829 = vmor %vm4827, %vm4828
    %v4830 = vsel %vm4829, %v4822, %v4826
    %v4831 = vand.u32 2147483647, %v4775
    %vm4832 = vcmp.eq.f32.partialorder %v4831, 8.507059e+37
    %v4833 = vand.u32 %v4775, 2147483648
    %v4834 = vor.u32 1.1754944e-38, %v4833
    %v4835 = vsel %vm4832, %v4834, %v4830
    %v4836 = vmul.f32 1.0, %v4835
    %v4837 = vrcp.pop %v4776
    %v4838 = vmul.f32 %v4776, %v4837
    %v4839 = vsub.f32 1.0, %v4838
    %v4840 = vmul.f32 %v4837, %v4839
    %v4841 = vadd.f32 %v4837, %v4840
    %vm4842 = vweird.f32 %v4776
    %vm4843 = vweird.f32 %v4837
    %vm4844 = vmor %vm4842, %vm4843
    %v4845 = vsel %vm4844, %v4837, %v4841
    %v4846 = vand.u32 2147483647, %v4776
    %vm4847 = vcmp.eq.f32.partialorder %v4846, 8.507059e+37
    %v4848 = vand.u32 %v4776, 2147483648
    %v4849 = vor.u32 1.1754944e-38, %v4848
    %v4850 = vsel %vm4847, %v4849, %v4845
    %v4851 = vmul.f32 1.0, %v4850
    %4852 = vst [vmem:[#allocation22] sm:$0xff] %v4791
    %4853 = vst [vmem:[#allocation22 + $0x8] sm:$0xff] %v4806
    %4854 = vst [vmem:[#allocation22 + $0x10] sm:$0xff] %v4821
    %4855 = vst [vmem:[#allocation22 + $0x18] sm:$0xff] %v4836
    %4856 = vst [vmem:[#allocation22 + $0x20] sm:$0xff] %v4851
    // Predicated region
    $region126: #{tpu_custom_call.1} parent=1 // pred_check
      _
    $region127: #{tpu_custom_call.1} parent=1 // pred_check_branch
      %4858 = sbr.rel (0) target = $region129
    $region128: #{tpu_custom_call.1} parent=1 // pred_region
      %4860 = vsyncadd [#allocation4], 0
      %s4861 = sshll.u32 [#allocation22], 4
      %s4862 = int_to_ptr.vmem [resolvable:$true] %s4861
      %s4863 = sshll.u32 %s19, 4
      %s4864 = int_to_ptr.hbm [resolvable:$true] %s4863
      %4869 = dma.vmem_to_hbm [thread:$0]  %s4862, 640, %s4864, [#allocation4], 128, 128, 8
    $region129: #{tpu_custom_call.1} parent=1 // pred_fallthru
      _
    // Predicated region
    $region130: #{tpu_custom_call.1} parent=1 // pred_check
      _
    $region131: #{tpu_custom_call.1} parent=1 // pred_check_branch
      %4871 = sbr.rel (0) target = $region133
    $region132: #{tpu_custom_call.1} parent=1 // pred_region
      %4873 = dma.done [#allocation4], 640
    $region133: #{tpu_custom_call.1} parent=1 // pred_fallthru
      _
    %4874 = vsyncpa [#allocation3], 1
    %4875 = vsyncpa [#allocation6], 1
    %4876 = vsyncpa [#allocation9], 1
    %4877 = vsyncpa [#allocation12], 1
    %4878 = vsyncpa [#allocation15], 1
    %4879 = vsyncpa [#allocation18], 1
    %4880 = vsyncpa [#allocation21], 1
    %4881 = vsyncpa [#allocation4], 1

</llo_original>
